<compile_context>
chip_gen: v5e
topology: v5e:2x2
jax: 0.10.0
libtpu: 0.0.40
codegen_flags: <defaults>
</compile_context>

<pallas_src>
import math
from functools import partial

import jax
import jax.numpy as jnp
from jax.experimental import pallas as pl
from jax.experimental.pallas import tpu as pltpu

LN_EPS = 1e-5
GELU_C = math.sqrt(2.0 / math.pi)

# MXU operand dtype: bf16-native on v5e/v6e/v7x (f32 operands are emulated and
# cost 3-8x).  Accumulation / LN / softmax stats / bias+residual adds stay f32.
MATMUL_DTYPE = jnp.bfloat16

# Inter-kernel activation dtype.  bf16 would halve inter-kernel HBM traffic
# (worth flipping in production, esp. on v5e/v6e); kept f32 here so the
# end-to-end check against the f32 reference stays tight.
ACT_DTYPE = jnp.float32


def _tpu_tile_defaults():
    """Per-generation tile targets and scoped-VMEM limit."""
    vmem_cap = None
    try:
        info = pltpu.get_tpu_info()
        vmem_cap = getattr(info, "vmem_capacity_bytes", None)
    except Exception:
        vmem_cap = None
    if vmem_cap is not None and vmem_cap >= 96 * 1024 * 1024:
        # v5e / v6e: 128 MiB physical VMEM -> bigger tiles, higher scoped limit.
        return 512, 512, 512, 64 * 1024 * 1024
    # v7x (64 MiB physical VMEM) or unknown: conservative.
    return 256, 256, 512, 32 * 1024 * 1024


_TM, _TN, _TK, _VMEM_LIMIT = _tpu_tile_defaults()


def _pick_tile(dim, target, multiple):
    """Largest tile <= target that divides `dim` and is a multiple of
    `multiple`; falls back to the full dim (always a legal block shape)."""
    if dim <= target:
        return dim
    t = (target // multiple) * multiple
    while t >= multiple:
        if dim % t == 0:
            return t
        t -= multiple
    return dim


def _gelu_new(x):
    return 0.5 * x * (1.0 + jnp.tanh(GELU_C * (x + 0.044715 * x * x * x)))


# ---------------------------------------------------------------------------
# Fused LayerNorm + Linear (+ optional gelu) kernel.
# Grid (M/tm, N/tn); full K per step (row statistics).  The normalized rows
# are computed once per row-block (j == 0) into a VMEM scratch and reused for
# every N tile, so LN stats / rsqrt / scale are not recomputed N/tn times.
# ---------------------------------------------------------------------------
def _make_ln_linear_kernel(activation):
    def kernel(x_ref, g_ref, be_ref, w_ref, b_ref, o_ref, xn_ref):
        @pl.when(pl.program_id(1) == 0)
        def _compute_ln():
            x = x_ref[...].astype(jnp.float32)
            mu = jnp.mean(x, axis=-1, keepdims=True)
            xc = x - mu
            var = jnp.mean(xc * xc, axis=-1, keepdims=True)
            xn = xc * jax.lax.rsqrt(var + LN_EPS)
            xn = xn * g_ref[...].astype(jnp.float32) + be_ref[...].astype(jnp.float32)
            xn_ref[...] = xn.astype(xn_ref.dtype)

        acc = jnp.dot(
            xn_ref[...].astype(MATMUL_DTYPE),
            w_ref[...].astype(MATMUL_DTYPE),
            preferred_element_type=jnp.float32,
        )
        acc = acc + b_ref[...].astype(jnp.float32)
        if activation == "gelu_new":
            acc = _gelu_new(acc)
        o_ref[...] = acc.astype(o_ref.dtype)

    return kernel


def ln_linear_pallas(x, gamma, beta, w, b, activation=None, out_dtype=None):
    """y = act(layernorm(x) @ w + b).  LN fused into the matmul, normalized
    rows cached across N tiles.  M 'parallel', N 'arbitrary' (required for the
    scratch reuse)."""
    M, K = x.shape
    _, N = w.shape
    out_dtype = ACT_DTYPE if out_dtype is None else out_dtype
    tm = _pick_tile(M, _TM, 8)
    # v7x guard: the full-K weight panel (K, tn) is double-buffered; keep it
    # well inside the scoped VMEM limit as n_embd grows.
    w_bytes = jnp.dtype(w.dtype).itemsize
    tn_cap = max(128, (_VMEM_LIMIT // 3) // max(1, 2 * K * w_bytes))
    tn = _pick_tile(N, min(_TN, tn_cap), 128)
    grid = (M // tm, N // tn)
    return pl.pallas_call(
        _make_ln_linear_kernel(activation),
        out_shape=jax.ShapeDtypeStruct((M, N), out_dtype),
        grid=grid,
        in_specs=[
            pl.BlockSpec((tm, K), lambda i, j: (i, 0)),
            pl.BlockSpec((1, K), lambda i, j: (0, 0)),
            pl.BlockSpec((1, K), lambda i, j: (0, 0)),
            pl.BlockSpec((K, tn), lambda i, j: (0, j)),
            pl.BlockSpec((1, tn), lambda i, j: (0, j)),
        ],
        out_specs=pl.BlockSpec((tm, tn), lambda i, j: (i, j)),
        scratch_shapes=[pltpu.VMEM((tm, K), MATMUL_DTYPE)],
        compiler_params=pltpu.CompilerParams(
            dimension_semantics=("parallel", "arbitrary"),
            vmem_limit_bytes=_VMEM_LIMIT,
        ),
    )(x, gamma, beta, w, b)


# ---------------------------------------------------------------------------
# Tiled Linear (+ optional gelu, optional fused residual add) kernel.
# 3-D (M, N, K) grid, f32 VMEM accumulator, pl.when init/finalize on K.
# ---------------------------------------------------------------------------
def _make_linear_kernel(activation, has_residual):
    def body(x_ref, w_ref, b_ref, r_ref, o_ref, acc_ref):
        @pl.when(pl.program_id(2) == 0)
        def _init():
            acc_ref[...] = jnp.zeros_like(acc_ref)

        acc_ref[...] += jnp.dot(
            x_ref[...].astype(MATMUL_DTYPE),
            w_ref[...].astype(MATMUL_DTYPE),
            preferred_element_type=jnp.float32,
        )

        @pl.when(pl.program_id(2) == pl.num_programs(2) - 1)
        def _finalize():
            acc = acc_ref[...] + b_ref[...].astype(jnp.float32)
            if activation == "gelu_new":
                acc = _gelu_new(acc)
            if r_ref is not None:
                acc = acc + r_ref[...].astype(jnp.float32)
            o_ref[...] = acc.astype(o_ref.dtype)

    if has_residual:
        def kernel(x_ref, w_ref, b_ref, r_ref, o_ref, acc_ref):
            body(x_ref, w_ref, b_ref, r_ref, o_ref, acc_ref)
    else:
        def kernel(x_ref, w_ref, b_ref, o_ref, acc_ref):
            body(x_ref, w_ref, b_ref, None, o_ref, acc_ref)
    return kernel


def linear_pallas(x, w, b, residual=None, activation=None, residual_period=None):
    """y = act(x @ w + b) [+ residual].  K innermost ('arbitrary'), M/N
    'parallel' for megacore.  If residual_period=P is given, `residual` has
    shape (P, N) and output row r gets residual[r % P] (used to fuse the
    positional-embedding add into read_in without a tiled wpe copy in HBM)."""
    M, K = x.shape
    _, N = w.shape
    if residual is not None and residual_period is not None:
        # tm must divide the period so every row-block maps to one residual block.
        tm = _pick_tile(residual_period, min(_TM, residual_period), 8)
    else:
        tm = _pick_tile(M, _TM, 8)
    tn = _pick_tile(N, _TN, 128)
    tk = _pick_tile(K, _TK, 128)
    grid = (M // tm, N // tn, K // tk)
    in_specs = [
        pl.BlockSpec((tm, tk), lambda i, j, k: (i, k)),
        pl.BlockSpec((tk, tn), lambda i, j, k: (k, j)),
        pl.BlockSpec((1, tn), lambda i, j, k: (0, j)),
    ]
    args = [x, w, b]
    if residual is not None:
        if residual_period is not None:
            pb = residual_period // tm
            in_specs.append(pl.BlockSpec((tm, tn), lambda i, j, k, pb=pb: (i % pb, j)))
        else:
            in_specs.append(pl.BlockSpec((tm, tn), lambda i, j, k: (i, j)))
        args.append(residual)
        # Note: the residual is only read at the last k step; pl.Buffered(1)
        # would save one VMEM buffer here but is left at the default depth for
        # robustness.
    return pl.pallas_call(
        _make_linear_kernel(activation, residual is not None),
        out_shape=jax.ShapeDtypeStruct((M, N), ACT_DTYPE),
        grid=grid,
        in_specs=in_specs,
        out_specs=pl.BlockSpec((tm, tn), lambda i, j, k: (i, j)),
        scratch_shapes=[pltpu.VMEM((tm, tn), jnp.float32)],
        compiler_params=pltpu.CompilerParams(
            dimension_semantics=("parallel", "parallel", "arbitrary"),
            vmem_limit_bytes=_VMEM_LIMIT,
        ),
    )(*args)


# ---------------------------------------------------------------------------
# Masked softmax attention, one sequence per grid step, heads split in-kernel.
# Consumes the raw (bsz, 3*n_embd) qkv activation (GPT2 c_attn column order),
# writes the head-merged (bsz, n_embd) activation with a lane-dense store.
# The 1/sqrt(head_dim) scale is pre-folded into the q columns of c_attn.
# ---------------------------------------------------------------------------
def _make_attention_kernel(n_head, n_embd, head_dim):
    def kernel(qkv_ref, mb_ref, o_ref):
        qkv = qkv_ref[...]
        mb = mb_ref[...].astype(jnp.float32)
        outs = []
        for h in range(n_head):                       # static unroll over heads
            q = qkv[:, h * head_dim:(h + 1) * head_dim].astype(MATMUL_DTYPE)
            k = qkv[:, n_embd + h * head_dim:
                       n_embd + (h + 1) * head_dim].astype(MATMUL_DTYPE)
            v = qkv[:, 2 * n_embd + h * head_dim:
                       2 * n_embd + (h + 1) * head_dim].astype(MATMUL_DTYPE)
            # s = q @ k^T  (scale already folded into the q projection weights)
            s = jax.lax.dot_general(q, k, (((1,), (1,)), ((), ())),
                                    preferred_element_type=jnp.float32)
            s = s + mb                                 # additive (0 / -1e9) mask
            s = s - jnp.max(s, axis=-1, keepdims=True)
            p = jnp.exp(s)
            p = p * pl.reciprocal(jnp.sum(p, axis=-1, keepdims=True), approx=True)
            outs.append(jnp.dot(p.astype(MATMUL_DTYPE), v,
                                preferred_element_type=jnp.float32))
        # Single lane-dense (T, n_embd) store; heads land in their merged
        # column positions, so no XLA-side merge transpose is needed.
        o_ref[...] = jnp.concatenate(outs, axis=-1).astype(o_ref.dtype)

    return kernel


def attention_pallas(qkv, mask_bias, n_head, seq_len):
    """qkv: (bsz, 3*n_embd); mask_bias: (T, T) additive f32.  One sequence per
    'parallel' grid step (>= 2 steps whenever n_seq >= 2, so v7x's two
    TensorCores both get work)."""
    M, three_e = qkv.shape
    n_embd = three_e // 3
    head_dim = n_embd // n_head
    n_seq = M // seq_len
    return pl.pallas_call(
        _make_attention_kernel(n_head, n_embd, head_dim),
        out_shape=jax.ShapeDtypeStruct((M, n_embd), ACT_DTYPE),
        grid=(n_seq,),
        in_specs=[
            pl.BlockSpec((seq_len, three_e), lambda s: (s, 0)),
            pl.BlockSpec((seq_len, seq_len), lambda s: (0, 0)),
        ],
        out_specs=pl.BlockSpec((seq_len, n_embd), lambda s: (s, 0)),
        compiler_params=pltpu.CompilerParams(
            dimension_semantics=("parallel",),
            vmem_limit_bytes=_VMEM_LIMIT,
        ),
    )(qkv, mask_bias)


# ---------------------------------------------------------------------------
# Model glue (plain JAX) composing the Pallas kernels
# ---------------------------------------------------------------------------
def get_attention_mask(context_len):
    """JAX port of ESSL.models.get_attention_mask (without the (1,1,.,.) dims)."""
    T = context_len
    mask = jnp.tril(jnp.ones((T, T), jnp.float32))
    rows = jnp.arange(T)
    cols = jnp.arange(T)
    kill = (cols[None, :] == (rows[:, None] - 1)) & ((rows % 2 == 1))[:, None]
    return jnp.where(kill, 0.0, mask)


def gpt2_transformer_forward(x, params, n_head):
    bsz, _ = x.shape
    wpe = params["wpe"]
    T, n_embd = wpe.shape
    mask_bias = params["attn_mask_bias"]  # (T, T) additive f32

    # _read_in with the positional-embedding add fused in as a periodic residual
    # (row r gets wpe[r % T]); no tiled wpe copy materialized in HBM.
    h = linear_pallas(x, params["read_in_w"], params["read_in_b"],
                      residual=wpe, residual_period=T)

    for layer in params["layers"]:
        # --- attention block: ln_1 fused into the qkv projection -------------
        qkv = ln_linear_pallas(
            h, layer["ln1_g"], layer["ln1_b"], layer["c_attn_w"], layer["c_attn_b"]
        )
        # Attention straight on the (bsz, 3*n_embd) layout; output comes back
        # already head-merged as (bsz, n_embd) -> no XLA reshape/transpose.
        a = attention_pallas(qkv, mask_bias, n_head=n_head, seq_len=T)
        # c_proj with the residual add fused into the finalize step.
        h = linear_pallas(a, layer["attn_proj_w"], layer["attn_proj_b"], residual=h)

        # --- MLP block: ln_2 + c_fc + gelu fused; c_proj + residual fused ----
        mid = ln_linear_pallas(
            h, layer["ln2_g"], layer["ln2_b"], layer["fc_w"], layer["fc_b"],
            activation="gelu_new",
        )
        h = linear_pallas(mid, layer["proj_w"], layer["proj_b"], residual=h)

    # ln_f fused into _read_out.
    out = ln_linear_pallas(
        h, params["lnf_g"], params["lnf_b"],
        params["read_out_w"], params["read_out_b"], out_dtype=jnp.float32,
    )
    return out.reshape(bsz, -1)


# ---------------------------------------------------------------------------
# Parameter preparation for the kernel path (one-time, outside the hot loop):
#   * fold 1/sqrt(head_dim) into the q columns of c_attn_w / c_attn_b
#   * pre-cast matmul weight matrices to MATMUL_DTYPE (bf16) -> half the DMA
#   * build the additive attention-mask bias
# ---------------------------------------------------------------------------
def prepare_params(params, n_head):
    T, n_embd = params["wpe"].shape
    head_dim = n_embd // n_head
    scale = 1.0 / math.sqrt(head_dim)

    def cast_w(w):
        return w.astype(MATMUL_DTYPE)

    kp = {
        "wpe": params["wpe"],
        "read_in_w": cast_w(params["read_in_w"]),
        "read_in_b": params["read_in_b"],
        "lnf_g": params["lnf_g"],
        "lnf_b": params["lnf_b"],
        "read_out_w": cast_w(params["read_out_w"]),
        "read_out_b": params["read_out_b"],
        "attn_mask_bias": jnp.where(params["attn_mask"] > 0.5, 0.0, -1e9).astype(
            jnp.float32
        ),
        "layers": [],
    }
    for L in params["layers"]:
        c_attn_w = L["c_attn_w"].at[:, :n_embd].multiply(scale)
        c_attn_b = L["c_attn_b"].at[:, :n_embd].multiply(scale)
        kp["layers"].append(
            {
                "ln1_g": L["ln1_g"], "ln1_b": L["ln1_b"],
                "c_attn_w": cast_w(c_attn_w), "c_attn_b": c_attn_b,
                "attn_proj_w": cast_w(L["attn_proj_w"]),
                "attn_proj_b": L["attn_proj_b"],
                "ln2_g": L["ln2_g"], "ln2_b": L["ln2_b"],
                "fc_w": cast_w(L["fc_w"]), "fc_b": L["fc_b"],
                "proj_w": cast_w(L["proj_w"]), "proj_b": L["proj_b"],
            }
        )
    return kp


# ---------------------------------------------------------------------------
# Pure-JAX reference (f32, logical parametrization) for the sanity check
# ---------------------------------------------------------------------------
def _ref_forward(x, params, n_head):
    def ln(x, g, b):
        mu = jnp.mean(x, -1, keepdims=True)
        var = jnp.mean((x - mu) ** 2, -1, keepdims=True)
        return (x - mu) * jax.lax.rsqrt(var + LN_EPS) * g + b

    def gelu_new(x):
        return 0.5 * x * (1.0 + jnp.tanh(GELU_C * (x + 0.044715 * x**3)))

    bsz, _ = x.shape
    wpe = params["wpe"]
    T, n_embd = wpe.shape
    n_seq = bsz // T
    hd = n_embd // n_head
    mask = params["attn_mask"]
    h = (x @ params["read_in_w"] + params["read_in_b"]).reshape(n_seq, T, n_embd)
    h = h + wpe[None]
    for L in params["layers"]:
        y = ln(h, L["ln1_g"], L["ln1_b"])
        qkv = y @ L["c_attn_w"] + L["c_attn_b"]
        qkv = qkv.reshape(n_seq, T, 3, n_head, hd).transpose(2, 0, 3, 1, 4)
        q, k, v = qkv[0], qkv[1], qkv[2]
        s = jnp.einsum("bhqd,bhkd->bhqk", q, k) / math.sqrt(hd)
        s = jnp.where(mask[None, None] > 0.5, s, -1e9)
        p = jax.nn.softmax(s, axis=-1)
        a = jnp.einsum("bhqk,bhkd->bhqd", p, v).transpose(0, 2, 1, 3).reshape(
            n_seq, T, n_embd
        )
        h = h + (a @ L["attn_proj_w"] + L["attn_proj_b"])
        y = ln(h, L["ln2_g"], L["ln2_b"])
        h = h + (gelu_new(y @ L["fc_w"] + L["fc_b"]) @ L["proj_w"] + L["proj_b"])
    h = ln(h, params["lnf_g"], params["lnf_b"])
    out = h @ params["read_out_w"] + params["read_out_b"]
    return out.reshape(bsz, -1)


# ---------------------------------------------------------------------------
# Deterministic parameter construction (logical / f32, as the torch module)
# ---------------------------------------------------------------------------
def init_params(key, n_inputs, n_outputs, n_context, n_embd, n_layer, n_head):
    T = 2 * n_context
    keys = iter(jax.random.split(key, 8 + 8 * n_layer))

    def w(shape, scale=0.02):
        return (scale * jax.random.normal(next(keys), shape)).astype(jnp.float32)

    params = {
        "read_in_w": w((n_inputs, n_embd)),
        "read_in_b": jnp.zeros((1, n_embd), jnp.float32),
        "wpe": w((T, n_embd)),
        "lnf_g": jnp.ones((1, n_embd), jnp.float32),
        "lnf_b": jnp.zeros((1, n_embd), jnp.float32),
        "read_out_w": w((n_embd, n_outputs)),
        "read_out_b": jnp.zeros((1, n_outputs), jnp.float32),
        "attn_mask": get_attention_mask(T),
        "layers": [],
    }
    for _ in range(n_layer):
        params["layers"].append(
            {
                "ln1_g": jnp.ones((1, n_embd), jnp.float32),
                "ln1_b": jnp.zeros((1, n_embd), jnp.float32),
                "c_attn_w": w((n_embd, 3 * n_embd)),
                "c_attn_b": jnp.zeros((1, 3 * n_embd), jnp.float32),
                "attn_proj_w": w((n_embd, n_embd)),
                "attn_proj_b": jnp.zeros((1, n_embd), jnp.float32),
                "ln2_g": jnp.ones((1, n_embd), jnp.float32),
                "ln2_b": jnp.zeros((1, n_embd), jnp.float32),
                "fc_w": w((n_embd, 4 * n_embd)),
                "fc_b": jnp.zeros((1, 4 * n_embd), jnp.float32),
                "proj_w": w((4 * n_embd, n_embd)),
                "proj_b": jnp.zeros((1, n_embd), jnp.float32),
            }
        )
    return params


if __name__ == "__main__":
    # Small config consistent with the module: args.n_context=8 -> seq len 16,
    # n_inputs=4, n_embd=32, n_layer=2, n_head=2, n_outputs=4, n_seq=2.
    n_context, n_inputs, n_outputs = 8, 4, 4
    n_embd, n_layer, n_head = 32, 2, 2
    T = 2 * n_context
    n_seq = 2
    bsz = n_seq * T  # 32

    key = jax.random.PRNGKey(0)
    kx, kp = jax.random.split(key)
    x = jax.random.normal(kx, (bsz, n_inputs), jnp.float32)
    params = init_params(kp, n_inputs, n_outputs, n_context, n_embd, n_layer, n_head)
    kparams = prepare_params(params, n_head)   # scale-folded, bf16 weights

    fwd = jax.jit(partial(gpt2_transformer_forward, n_head=n_head))
    out = fwd(x, kparams)
    out = jax.block_until_ready(out)
    assert out.shape == (bsz, n_outputs), out.shape

    ref = _ref_forward(x, params, n_head)
    err = float(jnp.max(jnp.abs(out.astype(jnp.float32) - ref)))
    # bf16 MXU operands / bf16 weights -> slightly looser tolerance than the
    # pure-f32 path (accumulation and LN/softmax stats remain f32).
    assert err < 2e-2, err
    print("KERNEL_OK")
</pallas_src>

<mosaic_0001>
module attributes {stable_mosaic.version = 11 : i64} {
  func.func @kernel(%arg0: i32, %arg1: memref<16x96xf32, #tpu.memory_space<vmem>>, %arg2: memref<16x16xf32, #tpu.memory_space<vmem>>, %arg3: memref<16x32xf32, #tpu.memory_space<vmem>>) attributes {dimension_semantics = [#tpu.dimension_semantics<parallel>], iteration_bounds = array<i64: 2>, scalar_prefetch = 0 : i64, scratch_operands = 0 : i64, tpu.core_type = #tpu.core_type<tc>, window_params = [{transform_indices = @transform_0, window_bounds = array<i64: 16, 96>}, {pipeline_mode = #tpu.pipeline_mode<synchronous>, transform_indices = @transform_1, window_bounds = array<i64: 16, 16>}, {transform_indices = @transform_2, window_bounds = array<i64: 16, 32>}]} {
    %c0 = arith.constant 0 : index
    %c0_0 = arith.constant 0 : index
    %0 = vector.load %arg1[%c0, %c0_0] : memref<16x96xf32, #tpu.memory_space<vmem>>, vector<16x96xf32>
    %c0_1 = arith.constant 0 : index
    %c0_2 = arith.constant 0 : index
    %1 = vector.load %arg2[%c0_1, %c0_2] : memref<16x16xf32, #tpu.memory_space<vmem>>, vector<16x16xf32>
    %2 = vector.extract_strided_slice %0 {offsets = [0, 0], sizes = [16, 16], strides = [1, 1]} : vector<16x96xf32> to vector<16x16xf32>
    %3 = arith.truncf %2 : vector<16x16xf32> to vector<16x16xbf16>
    %4 = vector.extract_strided_slice %0 {offsets = [0, 32], sizes = [16, 16], strides = [1, 1]} : vector<16x96xf32> to vector<16x16xf32>
    %5 = arith.truncf %4 : vector<16x16xf32> to vector<16x16xbf16>
    %6 = vector.extract_strided_slice %0 {offsets = [0, 64], sizes = [16, 16], strides = [1, 1]} : vector<16x96xf32> to vector<16x16xf32>
    %7 = arith.truncf %6 : vector<16x16xf32> to vector<16x16xbf16>
    %cst = arith.constant dense<0.000000e+00> : vector<16x16xf32>
    %8 = tpu.matmul %3, %5, %cst {dimension_numbers = #tpu.dot_dimension_numbers<[1], [1], [0], [0], [0, 0, 1, 0], [], []>} : vector<16x16xbf16>, vector<16x16xbf16>, vector<16x16xf32> -> vector<16x16xf32>
    %9 = arith.addf %8, %1 : vector<16x16xf32>
    %cst_3 = arith.constant dense<0xFF800000> : vector<16xf32>
    %10 = vector.multi_reduction <maximumf>, %9, %cst_3 [1] : vector<16x16xf32> to vector<16xf32>
    %11 = vector.shape_cast %10 : vector<16xf32> to vector<16x1xf32>
    %12 = vector.broadcast %11 : vector<16x1xf32> to vector<16x16xf32>
    %13 = arith.subf %9, %12 : vector<16x16xf32>
    %14 = math.exp %13 : vector<16x16xf32>
    %cst_4 = arith.constant dense<0.000000e+00> : vector<16xf32>
    %15 = vector.multi_reduction <add>, %14, %cst_4 [1] : vector<16x16xf32> to vector<16xf32>
    %16 = vector.shape_cast %15 : vector<16xf32> to vector<16x1xf32>
    %17 = tpu.reciprocal %16 {approx = true} : vector<16x1xf32> -> vector<16x1xf32>
    %18 = vector.broadcast %17 : vector<16x1xf32> to vector<16x16xf32>
    %19 = arith.mulf %14, %18 : vector<16x16xf32>
    %20 = arith.truncf %19 : vector<16x16xf32> to vector<16x16xbf16>
    %cst_5 = arith.constant dense<0.000000e+00> : vector<16x16xf32>
    %21 = tpu.matmul %20, %7, %cst_5 {dimension_numbers = #tpu.dot_dimension_numbers<[1], [0], [0], [1], [0, 0, 1, 1], [], []>} : vector<16x16xbf16>, vector<16x16xbf16>, vector<16x16xf32> -> vector<16x16xf32>
    %22 = vector.extract_strided_slice %0 {offsets = [0, 16], sizes = [16, 16], strides = [1, 1]} : vector<16x96xf32> to vector<16x16xf32>
    %23 = arith.truncf %22 : vector<16x16xf32> to vector<16x16xbf16>
    %24 = vector.extract_strided_slice %0 {offsets = [0, 48], sizes = [16, 16], strides = [1, 1]} : vector<16x96xf32> to vector<16x16xf32>
    %25 = arith.truncf %24 : vector<16x16xf32> to vector<16x16xbf16>
    %26 = vector.extract_strided_slice %0 {offsets = [0, 80], sizes = [16, 16], strides = [1, 1]} : vector<16x96xf32> to vector<16x16xf32>
    %27 = arith.truncf %26 : vector<16x16xf32> to vector<16x16xbf16>
    %cst_6 = arith.constant dense<0.000000e+00> : vector<16x16xf32>
    %28 = tpu.matmul %23, %25, %cst_6 {dimension_numbers = #tpu.dot_dimension_numbers<[1], [1], [0], [0], [0, 0, 1, 0], [], []>} : vector<16x16xbf16>, vector<16x16xbf16>, vector<16x16xf32> -> vector<16x16xf32>
    %29 = arith.addf %28, %1 : vector<16x16xf32>
    %cst_7 = arith.constant dense<0xFF800000> : vector<16xf32>
    %30 = vector.multi_reduction <maximumf>, %29, %cst_7 [1] : vector<16x16xf32> to vector<16xf32>
    %31 = vector.shape_cast %30 : vector<16xf32> to vector<16x1xf32>
    %32 = vector.broadcast %31 : vector<16x1xf32> to vector<16x16xf32>
    %33 = arith.subf %29, %32 : vector<16x16xf32>
    %34 = math.exp %33 : vector<16x16xf32>
    %cst_8 = arith.constant dense<0.000000e+00> : vector<16xf32>
    %35 = vector.multi_reduction <add>, %34, %cst_8 [1] : vector<16x16xf32> to vector<16xf32>
    %36 = vector.shape_cast %35 : vector<16xf32> to vector<16x1xf32>
    %37 = tpu.reciprocal %36 {approx = true} : vector<16x1xf32> -> vector<16x1xf32>
    %38 = vector.broadcast %37 : vector<16x1xf32> to vector<16x16xf32>
    %39 = arith.mulf %34, %38 : vector<16x16xf32>
    %40 = arith.truncf %39 : vector<16x16xf32> to vector<16x16xbf16>
    %cst_9 = arith.constant dense<0.000000e+00> : vector<16x16xf32>
    %41 = tpu.matmul %40, %27, %cst_9 {dimension_numbers = #tpu.dot_dimension_numbers<[1], [0], [0], [1], [0, 0, 1, 1], [], []>} : vector<16x16xbf16>, vector<16x16xbf16>, vector<16x16xf32> -> vector<16x16xf32>
    %42 = tpu.concatenate %21, %41 in 1 : vector<16x16xf32>, vector<16x16xf32> -> vector<16x32xf32>
    %c0_10 = arith.constant 0 : index
    %c0_11 = arith.constant 0 : index
    %43 = vector.load %arg3[%c0_10, %c0_11] : memref<16x32xf32, #tpu.memory_space<vmem>>, vector<16x32xf32>
    tpu.vector_store %arg3[%c0_10, %c0_11], %42 {strides = array<i32>} : memref<16x32xf32, #tpu.memory_space<vmem>>, vector<16x32xf32>,
    return
  }
  func.func @transform_0(%arg0: i32) -> (i32, i32) {
    %c0_i32 = arith.constant 0 : i32
    %c0_i32_0 = arith.constant 0 : i32
    return %arg0, %c0_i32 : i32, i32
  }
  func.func @transform_1(%arg0: i32) -> (i32, i32) {
    %c0_i32 = arith.constant 0 : i32
    %c0_i32_0 = arith.constant 0 : i32
    %c0_i32_1 = arith.constant 0 : i32
    return %c0_i32, %c0_i32_0 : i32, i32
  }
  func.func @transform_2(%arg0: i32) -> (i32, i32) {
    %c0_i32 = arith.constant 0 : i32
    %c0_i32_0 = arith.constant 0 : i32
    return %arg0, %c0_i32 : i32, i32
  }
}

module attributes {stable_mosaic.version = 11 : i64} {
  func.func @kernel(%arg0: i32, %arg1: i32, %arg2: i32, %arg3: memref<16x4xf32, #tpu.memory_space<vmem>>, %arg4: memref<4x32xbf16, #tpu.memory_space<vmem>>, %arg5: memref<1x32xf32, #tpu.memory_space<vmem>>, %arg6: memref<16x32xf32, #tpu.memory_space<vmem>>, %arg7: memref<16x32xf32, #tpu.memory_space<vmem>>, %arg8: memref<16x32xf32, #tpu.memory_space<vmem>>) attributes {dimension_semantics = [#tpu.dimension_semantics<parallel>, #tpu.dimension_semantics<parallel>, #tpu.dimension_semantics<arbitrary>], iteration_bounds = array<i64: 2, 1, 1>, scalar_prefetch = 0 : i64, scratch_operands = 1 : i64, tpu.core_type = #tpu.core_type<tc>, window_params = [{transform_indices = @transform_0, window_bounds = array<i64: 16, 4>}, {transform_indices = @transform_1, window_bounds = array<i64: 4, 32>}, {transform_indices = @transform_2, window_bounds = array<i64: 1, 32>}, {transform_indices = @transform_3, window_bounds = array<i64: 16, 32>}, {transform_indices = @transform_4, window_bounds = array<i64: 16, 32>}]} {
    %c0_i32 = arith.constant 0 : i32
    %0 = arith.cmpi eq, %arg2, %c0_i32 : i32
    %1 = arith.extui %0 : i1 to i32
    %c0_i32_0 = arith.constant 0 : i32
    %2 = arith.cmpi ne, %1, %c0_i32_0 : i32
    scf.if %2 {
      %cst_10 = arith.constant 0.000000e+00 : f32
      %13 = vector.broadcast %cst_10 : f32 to vector<16x32xf32>
      %c0_11 = arith.constant 0 : index
      %c0_12 = arith.constant 0 : index
      %14 = vector.load %arg8[%c0_11, %c0_12] : memref<16x32xf32, #tpu.memory_space<vmem>>, vector<16x32xf32>
      tpu.vector_store %arg8[%c0_11, %c0_12], %13 {strides = array<i32>} : memref<16x32xf32, #tpu.memory_space<vmem>>, vector<16x32xf32>,
    } else {
    }
    %c0 = arith.constant 0 : index
    %c0_1 = arith.constant 0 : index
    %3 = vector.load %arg8[%c0, %c0_1] : memref<16x32xf32, #tpu.memory_space<vmem>>, vector<16x32xf32>
    %c0_2 = arith.constant 0 : index
    %c0_3 = arith.constant 0 : index
    %4 = vector.load %arg3[%c0_2, %c0_3] : memref<16x4xf32, #tpu.memory_space<vmem>>, vector<16x4xf32>
    %5 = arith.truncf %4 : vector<16x4xf32> to vector<16x4xbf16>
    %c0_4 = arith.constant 0 : index
    %c0_5 = arith.constant 0 : index
    %6 = vector.load %arg4[%c0_4, %c0_5] : memref<4x32xbf16, #tpu.memory_space<vmem>>, vector<4x32xbf16>
    %cst = arith.constant dense<0.000000e+00> : vector<16x32xf32>
    %7 = tpu.matmul %5, %6, %cst {dimension_numbers = #tpu.dot_dimension_numbers<[1], [0], [0], [1], [0, 0, 1, 1], [], []>} : vector<16x4xbf16>, vector<4x32xbf16>, vector<16x32xf32> -> vector<16x32xf32>
    %8 = arith.addf %3, %7 : vector<16x32xf32>
    %c0_6 = arith.constant 0 : index
    %c0_7 = arith.constant 0 : index
    %9 = vector.load %arg8[%c0_6, %c0_7] : memref<16x32xf32, #tpu.memory_space<vmem>>, vector<16x32xf32>
    tpu.vector_store %arg8[%c0_6, %c0_7], %8 {strides = array<i32>} : memref<16x32xf32, #tpu.memory_space<vmem>>, vector<16x32xf32>,
    %c0_i32_8 = arith.constant 0 : i32
    %10 = arith.cmpi eq, %arg2, %c0_i32_8 : i32
    %11 = arith.extui %10 : i1 to i32
    %c0_i32_9 = arith.constant 0 : i32
    %12 = arith.cmpi ne, %11, %c0_i32_9 : i32
    scf.if %12 {
      %c0_10 = arith.constant 0 : index
      %c0_11 = arith.constant 0 : index
      %13 = vector.load %arg8[%c0_10, %c0_11] : memref<16x32xf32, #tpu.memory_space<vmem>>, vector<16x32xf32>
      %c0_12 = arith.constant 0 : index
      %c0_13 = arith.constant 0 : index
      %14 = vector.load %arg5[%c0_12, %c0_13] : memref<1x32xf32, #tpu.memory_space<vmem>>, vector<1x32xf32>
      %15 = vector.broadcast %14 : vector<1x32xf32> to vector<16x32xf32>
      %16 = arith.addf %13, %15 : vector<16x32xf32>
      %c0_14 = arith.constant 0 : index
      %c0_15 = arith.constant 0 : index
      %17 = vector.load %arg6[%c0_14, %c0_15] : memref<16x32xf32, #tpu.memory_space<vmem>>, vector<16x32xf32>
      %18 = arith.addf %16, %17 : vector<16x32xf32>
      %c0_16 = arith.constant 0 : index
      %c0_17 = arith.constant 0 : index
      %19 = vector.load %arg7[%c0_16, %c0_17] : memref<16x32xf32, #tpu.memory_space<vmem>>, vector<16x32xf32>
      tpu.vector_store %arg7[%c0_16, %c0_17], %18 {strides = array<i32>} : memref<16x32xf32, #tpu.memory_space<vmem>>, vector<16x32xf32>,
    } else {
    }
    return
  }
  func.func @transform_0(%arg0: i32, %arg1: i32, %arg2: i32) -> (i32, i32) {
    %c0_i32 = arith.constant 0 : i32
    return %arg0, %arg2 : i32, i32
  }
  func.func @transform_1(%arg0: i32, %arg1: i32, %arg2: i32) -> (i32, i32) {
    %c0_i32 = arith.constant 0 : i32
    return %arg2, %arg1 : i32, i32
  }
  func.func @transform_2(%arg0: i32, %arg1: i32, %arg2: i32) -> (i32, i32) {
    %c0_i32 = arith.constant 0 : i32
    %c0_i32_0 = arith.constant 0 : i32
    return %c0_i32, %arg1 : i32, i32
  }
  func.func @transform_3(%arg0: i32, %arg1: i32, %arg2: i32) -> (i32, i32) {
    %c1_i32 = arith.constant 1 : i32
    %c0_i32 = arith.constant 0 : i32
    %0 = arith.cmpi eq, %c1_i32, %c0_i32 : i32
    %c1_i32_0 = arith.constant 1 : i32
    %1 = arith.select %0, %c1_i32_0, %c1_i32 : i32
    %2 = arith.remsi %arg0, %1 : i32
    %c0_i32_1 = arith.constant 0 : i32
    %3 = arith.cmpi ne, %2, %c0_i32_1 : i32
    %c0_i32_2 = arith.constant 0 : i32
    %4 = arith.cmpi slt, %2, %c0_i32_2 : i32
    %c0_i32_3 = arith.constant 0 : i32
    %5 = arith.cmpi slt, %1, %c0_i32_3 : i32
    %6 = arith.xori %4, %5 : i1
    %7 = arith.andi %6, %3 : i1
    %8 = arith.addi %2, %1 : i32
    %9 = arith.select %7, %8, %2 : i32
    %c0_i32_4 = arith.constant 0 : i32
    return %9, %arg1 : i32, i32
  }
  func.func @transform_4(%arg0: i32, %arg1: i32, %arg2: i32) -> (i32, i32) {
    %c0_i32 = arith.constant 0 : i32
    return %arg0, %arg1 : i32, i32
  }
}

module attributes {stable_mosaic.version = 11 : i64} {
  func.func @kernel(%arg0: i32, %arg1: i32, %arg2: memref<32x32xf32, #tpu.memory_space<vmem>>, %arg3: memref<1x32xf32, #tpu.memory_space<vmem>>, %arg4: memref<1x32xf32, #tpu.memory_space<vmem>>, %arg5: memref<32x96xbf16, #tpu.memory_space<vmem>>, %arg6: memref<1x96xf32, #tpu.memory_space<vmem>>, %arg7: memref<32x96xf32, #tpu.memory_space<vmem>>, %arg8: memref<32x32xbf16, #tpu.memory_space<vmem>>) attributes {dimension_semantics = [#tpu.dimension_semantics<parallel>, #tpu.dimension_semantics<arbitrary>], iteration_bounds = array<i64: 1, 1>, scalar_prefetch = 0 : i64, scratch_operands = 1 : i64, tpu.core_type = #tpu.core_type<tc>, window_params = [{transform_indices = @transform_0, window_bounds = array<i64: 32, 32>}, {pipeline_mode = #tpu.pipeline_mode<synchronous>, transform_indices = @transform_1, window_bounds = array<i64: 1, 32>}, {pipeline_mode = #tpu.pipeline_mode<synchronous>, transform_indices = @transform_2, window_bounds = array<i64: 1, 32>}, {transform_indices = @transform_3, window_bounds = array<i64: 32, 96>}, {transform_indices = @transform_4, window_bounds = array<i64: 1, 96>}, {transform_indices = @transform_5, window_bounds = array<i64: 32, 96>}]} {
    %c0_i32 = arith.constant 0 : i32
    %0 = arith.cmpi eq, %arg1, %c0_i32 : i32
    %1 = arith.extui %0 : i1 to i32
    %c0_i32_0 = arith.constant 0 : i32
    %2 = arith.cmpi ne, %1, %c0_i32_0 : i32
    scf.if %2 {
      %c0_8 = arith.constant 0 : index
      %c0_9 = arith.constant 0 : index
      %10 = vector.load %arg2[%c0_8, %c0_9] : memref<32x32xf32, #tpu.memory_space<vmem>>, vector<32x32xf32>
      %cst_10 = arith.constant dense<0.000000e+00> : vector<32xf32>
      %11 = vector.multi_reduction <add>, %10, %cst_10 [1] : vector<32x32xf32> to vector<32xf32>
      %12 = vector.shape_cast %11 : vector<32xf32> to vector<32x1xf32>
      %cst_11 = arith.constant 3.200000e+01 : f32
      %13 = vector.broadcast %cst_11 : f32 to vector<32x1xf32>
      %14 = arith.divf %12, %13 : vector<32x1xf32>
      %15 = vector.broadcast %14 : vector<32x1xf32> to vector<32x32xf32>
      %16 = arith.subf %10, %15 : vector<32x32xf32>
      %17 = arith.mulf %16, %16 : vector<32x32xf32>
      %cst_12 = arith.constant dense<0.000000e+00> : vector<32xf32>
      %18 = vector.multi_reduction <add>, %17, %cst_12 [1] : vector<32x32xf32> to vector<32xf32>
      %19 = vector.shape_cast %18 : vector<32xf32> to vector<32x1xf32>
      %cst_13 = arith.constant 3.200000e+01 : f32
      %20 = vector.broadcast %cst_13 : f32 to vector<32x1xf32>
      %21 = arith.divf %19, %20 : vector<32x1xf32>
      %cst_14 = arith.constant 9.99999974E-6 : f32
      %22 = vector.broadcast %cst_14 : f32 to vector<32x1xf32>
      %23 = arith.addf %21, %22 : vector<32x1xf32>
      %24 = math.rsqrt %23 : vector<32x1xf32>
      %25 = vector.broadcast %24 : vector<32x1xf32> to vector<32x32xf32>
      %26 = arith.mulf %16, %25 : vector<32x32xf32>
      %c0_15 = arith.constant 0 : index
      %c0_16 = arith.constant 0 : index
      %27 = vector.load %arg3[%c0_15, %c0_16] : memref<1x32xf32, #tpu.memory_space<vmem>>, vector<1x32xf32>
      %28 = vector.broadcast %27 : vector<1x32xf32> to vector<32x32xf32>
      %29 = arith.mulf %26, %28 : vector<32x32xf32>
      %c0_17 = arith.constant 0 : index
      %c0_18 = arith.constant 0 : index
      %30 = vector.load %arg4[%c0_17, %c0_18] : memref<1x32xf32, #tpu.memory_space<vmem>>, vector<1x32xf32>
      %31 = vector.broadcast %30 : vector<1x32xf32> to vector<32x32xf32>
      %32 = arith.addf %29, %31 : vector<32x32xf32>
      %33 = arith.truncf %32 : vector<32x32xf32> to vector<32x32xbf16>
      %c0_19 = arith.constant 0 : index
      %c0_20 = arith.constant 0 : index
      %34 = vector.load %arg8[%c0_19, %c0_20] : memref<32x32xbf16, #tpu.memory_space<vmem>>, vector<32x32xbf16>
      tpu.vector_store %arg8[%c0_19, %c0_20], %33 {strides = array<i32>} : memref<32x32xbf16, #tpu.memory_space<vmem>>, vector<32x32xbf16>,
    } else {
    }
    %c0 = arith.constant 0 : index
    %c0_1 = arith.constant 0 : index
    %3 = vector.load %arg8[%c0, %c0_1] : memref<32x32xbf16, #tpu.memory_space<vmem>>, vector<32x32xbf16>
    %c0_2 = arith.constant 0 : index
    %c0_3 = arith.constant 0 : index
    %4 = vector.load %arg5[%c0_2, %c0_3] : memref<32x96xbf16, #tpu.memory_space<vmem>>, vector<32x96xbf16>
    %cst = arith.constant dense<0.000000e+00> : vector<32x96xf32>
    %5 = tpu.matmul %3, %4, %cst {dimension_numbers = #tpu.dot_dimension_numbers<[1], [0], [0], [1], [0, 0, 1, 1], [], []>} : vector<32x32xbf16>, vector<32x96xbf16>, vector<32x96xf32> -> vector<32x96xf32>
    %c0_4 = arith.constant 0 : index
    %c0_5 = arith.constant 0 : index
    %6 = vector.load %arg6[%c0_4, %c0_5] : memref<1x96xf32, #tpu.memory_space<vmem>>, vector<1x96xf32>
    %7 = vector.broadcast %6 : vector<1x96xf32> to vector<32x96xf32>
    %8 = arith.addf %5, %7 : vector<32x96xf32>
    %c0_6 = arith.constant 0 : index
    %c0_7 = arith.constant 0 : index
    %9 = vector.load %arg7[%c0_6, %c0_7] : memref<32x96xf32, #tpu.memory_space<vmem>>, vector<32x96xf32>
    tpu.vector_store %arg7[%c0_6, %c0_7], %8 {strides = array<i32>} : memref<32x96xf32, #tpu.memory_space<vmem>>, vector<32x96xf32>,
    return
  }
  func.func @transform_0(%arg0: i32, %arg1: i32) -> (i32, i32) {
    %c0_i32 = arith.constant 0 : i32
    %c0_i32_0 = arith.constant 0 : i32
    return %arg0, %c0_i32 : i32, i32
  }
  func.func @transform_1(%arg0: i32, %arg1: i32) -> (i32, i32) {
    %c0_i32 = arith.constant 0 : i32
    %c0_i32_0 = arith.constant 0 : i32
    %c0_i32_1 = arith.constant 0 : i32
    return %c0_i32, %c0_i32_0 : i32, i32
  }
  func.func @transform_2(%arg0: i32, %arg1: i32) -> (i32, i32) {
    %c0_i32 = arith.constant 0 : i32
    %c0_i32_0 = arith.constant 0 : i32
    %c0_i32_1 = arith.constant 0 : i32
    return %c0_i32, %c0_i32_0 : i32, i32
  }
  func.func @transform_3(%arg0: i32, %arg1: i32) -> (i32, i32) {
    %c0_i32 = arith.constant 0 : i32
    %c0_i32_0 = arith.constant 0 : i32
    return %c0_i32, %arg1 : i32, i32
  }
  func.func @transform_4(%arg0: i32, %arg1: i32) -> (i32, i32) {
    %c0_i32 = arith.constant 0 : i32
    %c0_i32_0 = arith.constant 0 : i32
    return %c0_i32, %arg1 : i32, i32
  }
  func.func @transform_5(%arg0: i32, %arg1: i32) -> (i32, i32) {
    %c0_i32 = arith.constant 0 : i32
    return %arg0, %arg1 : i32, i32
  }
}

module attributes {stable_mosaic.version = 11 : i64} {
  func.func @kernel(%arg0: i32, %arg1: i32, %arg2: i32, %arg3: memref<32x32xf32, #tpu.memory_space<vmem>>, %arg4: memref<32x32xbf16, #tpu.memory_space<vmem>>, %arg5: memref<1x32xf32, #tpu.memory_space<vmem>>, %arg6: memref<32x32xf32, #tpu.memory_space<vmem>>, %arg7: memref<32x32xf32, #tpu.memory_space<vmem>>, %arg8: memref<32x32xf32, #tpu.memory_space<vmem>>) attributes {dimension_semantics = [#tpu.dimension_semantics<parallel>, #tpu.dimension_semantics<parallel>, #tpu.dimension_semantics<arbitrary>], iteration_bounds = array<i64: 1, 1, 1>, scalar_prefetch = 0 : i64, scratch_operands = 1 : i64, tpu.core_type = #tpu.core_type<tc>, window_params = [{transform_indices = @transform_0, window_bounds = array<i64: 32, 32>}, {transform_indices = @transform_1, window_bounds = array<i64: 32, 32>}, {transform_indices = @transform_2, window_bounds = array<i64: 1, 32>}, {transform_indices = @transform_3, window_bounds = array<i64: 32, 32>}, {transform_indices = @transform_4, window_bounds = array<i64: 32, 32>}]} {
    %c0_i32 = arith.constant 0 : i32
    %0 = arith.cmpi eq, %arg2, %c0_i32 : i32
    %1 = arith.extui %0 : i1 to i32
    %c0_i32_0 = arith.constant 0 : i32
    %2 = arith.cmpi ne, %1, %c0_i32_0 : i32
    scf.if %2 {
      %cst_10 = arith.constant 0.000000e+00 : f32
      %13 = vector.broadcast %cst_10 : f32 to vector<32x32xf32>
      %c0_11 = arith.constant 0 : index
      %c0_12 = arith.constant 0 : index
      %14 = vector.load %arg8[%c0_11, %c0_12] : memref<32x32xf32, #tpu.memory_space<vmem>>, vector<32x32xf32>
      tpu.vector_store %arg8[%c0_11, %c0_12], %13 {strides = array<i32>} : memref<32x32xf32, #tpu.memory_space<vmem>>, vector<32x32xf32>,
    } else {
    }
    %c0 = arith.constant 0 : index
    %c0_1 = arith.constant 0 : index
    %3 = vector.load %arg8[%c0, %c0_1] : memref<32x32xf32, #tpu.memory_space<vmem>>, vector<32x32xf32>
    %c0_2 = arith.constant 0 : index
    %c0_3 = arith.constant 0 : index
    %4 = vector.load %arg3[%c0_2, %c0_3] : memref<32x32xf32, #tpu.memory_space<vmem>>, vector<32x32xf32>
    %5 = arith.truncf %4 : vector<32x32xf32> to vector<32x32xbf16>
    %c0_4 = arith.constant 0 : index
    %c0_5 = arith.constant 0 : index
    %6 = vector.load %arg4[%c0_4, %c0_5] : memref<32x32xbf16, #tpu.memory_space<vmem>>, vector<32x32xbf16>
    %cst = arith.constant dense<0.000000e+00> : vector<32x32xf32>
    %7 = tpu.matmul %5, %6, %cst {dimension_numbers = #tpu.dot_dimension_numbers<[1], [0], [0], [1], [0, 0, 1, 1], [], []>} : vector<32x32xbf16>, vector<32x32xbf16>, vector<32x32xf32> -> vector<32x32xf32>
    %8 = arith.addf %3, %7 : vector<32x32xf32>
    %c0_6 = arith.constant 0 : index
    %c0_7 = arith.constant 0 : index
    %9 = vector.load %arg8[%c0_6, %c0_7] : memref<32x32xf32, #tpu.memory_space<vmem>>, vector<32x32xf32>
    tpu.vector_store %arg8[%c0_6, %c0_7], %8 {strides = array<i32>} : memref<32x32xf32, #tpu.memory_space<vmem>>, vector<32x32xf32>,
    %c0_i32_8 = arith.constant 0 : i32
    %10 = arith.cmpi eq, %arg2, %c0_i32_8 : i32
    %11 = arith.extui %10 : i1 to i32
    %c0_i32_9 = arith.constant 0 : i32
    %12 = arith.cmpi ne, %11, %c0_i32_9 : i32
    scf.if %12 {
      %c0_10 = arith.constant 0 : index
      %c0_11 = arith.constant 0 : index
      %13 = vector.load %arg8[%c0_10, %c0_11] : memref<32x32xf32, #tpu.memory_space<vmem>>, vector<32x32xf32>
      %c0_12 = arith.constant 0 : index
      %c0_13 = arith.constant 0 : index
      %14 = vector.load %arg5[%c0_12, %c0_13] : memref<1x32xf32, #tpu.memory_space<vmem>>, vector<1x32xf32>
      %15 = vector.broadcast %14 : vector<1x32xf32> to vector<32x32xf32>
      %16 = arith.addf %13, %15 : vector<32x32xf32>
      %c0_14 = arith.constant 0 : index
      %c0_15 = arith.constant 0 : index
      %17 = vector.load %arg6[%c0_14, %c0_15] : memref<32x32xf32, #tpu.memory_space<vmem>>, vector<32x32xf32>
      %18 = arith.addf %16, %17 : vector<32x32xf32>
      %c0_16 = arith.constant 0 : index
      %c0_17 = arith.constant 0 : index
      %19 = vector.load %arg7[%c0_16, %c0_17] : memref<32x32xf32, #tpu.memory_space<vmem>>, vector<32x32xf32>
      tpu.vector_store %arg7[%c0_16, %c0_17], %18 {strides = array<i32>} : memref<32x32xf32, #tpu.memory_space<vmem>>, vector<32x32xf32>,
    } else {
    }
    return
  }
  func.func @transform_0(%arg0: i32, %arg1: i32, %arg2: i32) -> (i32, i32) {
    %c0_i32 = arith.constant 0 : i32
    return %arg0, %arg2 : i32, i32
  }
  func.func @transform_1(%arg0: i32, %arg1: i32, %arg2: i32) -> (i32, i32) {
    %c0_i32 = arith.constant 0 : i32
    return %arg2, %arg1 : i32, i32
  }
  func.func @transform_2(%arg0: i32, %arg1: i32, %arg2: i32) -> (i32, i32) {
    %c0_i32 = arith.constant 0 : i32
    %c0_i32_0 = arith.constant 0 : i32
    return %c0_i32, %arg1 : i32, i32
  }
  func.func @transform_3(%arg0: i32, %arg1: i32, %arg2: i32) -> (i32, i32) {
    %c0_i32 = arith.constant 0 : i32
    return %arg0, %arg1 : i32, i32
  }
  func.func @transform_4(%arg0: i32, %arg1: i32, %arg2: i32) -> (i32, i32) {
    %c0_i32 = arith.constant 0 : i32
    return %arg0, %arg1 : i32, i32
  }
}

module attributes {stable_mosaic.version = 11 : i64} {
  func.func @kernel(%arg0: i32, %arg1: i32, %arg2: memref<32x32xf32, #tpu.memory_space<vmem>>, %arg3: memref<1x32xf32, #tpu.memory_space<vmem>>, %arg4: memref<1x32xf32, #tpu.memory_space<vmem>>, %arg5: memref<32x128xbf16, #tpu.memory_space<vmem>>, %arg6: memref<1x128xf32, #tpu.memory_space<vmem>>, %arg7: memref<32x128xf32, #tpu.memory_space<vmem>>, %arg8: memref<32x32xbf16, #tpu.memory_space<vmem>>) attributes {dimension_semantics = [#tpu.dimension_semantics<parallel>, #tpu.dimension_semantics<arbitrary>], iteration_bounds = array<i64: 1, 1>, scalar_prefetch = 0 : i64, scratch_operands = 1 : i64, tpu.core_type = #tpu.core_type<tc>, window_params = [{transform_indices = @transform_0, window_bounds = array<i64: 32, 32>}, {pipeline_mode = #tpu.pipeline_mode<synchronous>, transform_indices = @transform_1, window_bounds = array<i64: 1, 32>}, {pipeline_mode = #tpu.pipeline_mode<synchronous>, transform_indices = @transform_2, window_bounds = array<i64: 1, 32>}, {transform_indices = @transform_3, window_bounds = array<i64: 32, 128>}, {transform_indices = @transform_4, window_bounds = array<i64: 1, 128>}, {transform_indices = @transform_5, window_bounds = array<i64: 32, 128>}]} {
    %c0_i32 = arith.constant 0 : i32
    %0 = arith.cmpi eq, %arg1, %c0_i32 : i32
    %1 = arith.extui %0 : i1 to i32
    %c0_i32_0 = arith.constant 0 : i32
    %2 = arith.cmpi ne, %1, %c0_i32_0 : i32
    scf.if %2 {
      %c0_12 = arith.constant 0 : index
      %c0_13 = arith.constant 0 : index
      %23 = vector.load %arg2[%c0_12, %c0_13] : memref<32x32xf32, #tpu.memory_space<vmem>>, vector<32x32xf32>
      %cst_14 = arith.constant dense<0.000000e+00> : vector<32xf32>
      %24 = vector.multi_reduction <add>, %23, %cst_14 [1] : vector<32x32xf32> to vector<32xf32>
      %25 = vector.shape_cast %24 : vector<32xf32> to vector<32x1xf32>
      %cst_15 = arith.constant 3.200000e+01 : f32
      %26 = vector.broadcast %cst_15 : f32 to vector<32x1xf32>
      %27 = arith.divf %25, %26 : vector<32x1xf32>
      %28 = vector.broadcast %27 : vector<32x1xf32> to vector<32x32xf32>
      %29 = arith.subf %23, %28 : vector<32x32xf32>
      %30 = arith.mulf %29, %29 : vector<32x32xf32>
      %cst_16 = arith.constant dense<0.000000e+00> : vector<32xf32>
      %31 = vector.multi_reduction <add>, %30, %cst_16 [1] : vector<32x32xf32> to vector<32xf32>
      %32 = vector.shape_cast %31 : vector<32xf32> to vector<32x1xf32>
      %cst_17 = arith.constant 3.200000e+01 : f32
      %33 = vector.broadcast %cst_17 : f32 to vector<32x1xf32>
      %34 = arith.divf %32, %33 : vector<32x1xf32>
      %cst_18 = arith.constant 9.99999974E-6 : f32
      %35 = vector.broadcast %cst_18 : f32 to vector<32x1xf32>
      %36 = arith.addf %34, %35 : vector<32x1xf32>
      %37 = math.rsqrt %36 : vector<32x1xf32>
      %38 = vector.broadcast %37 : vector<32x1xf32> to vector<32x32xf32>
      %39 = arith.mulf %29, %38 : vector<32x32xf32>
      %c0_19 = arith.constant 0 : index
      %c0_20 = arith.constant 0 : index
      %40 = vector.load %arg3[%c0_19, %c0_20] : memref<1x32xf32, #tpu.memory_space<vmem>>, vector<1x32xf32>
      %41 = vector.broadcast %40 : vector<1x32xf32> to vector<32x32xf32>
      %42 = arith.mulf %39, %41 : vector<32x32xf32>
      %c0_21 = arith.constant 0 : index
      %c0_22 = arith.constant 0 : index
      %43 = vector.load %arg4[%c0_21, %c0_22] : memref<1x32xf32, #tpu.memory_space<vmem>>, vector<1x32xf32>
      %44 = vector.broadcast %43 : vector<1x32xf32> to vector<32x32xf32>
      %45 = arith.addf %42, %44 : vector<32x32xf32>
      %46 = arith.truncf %45 : vector<32x32xf32> to vector<32x32xbf16>
      %c0_23 = arith.constant 0 : index
      %c0_24 = arith.constant 0 : index
      %47 = vector.load %arg8[%c0_23, %c0_24] : memref<32x32xbf16, #tpu.memory_space<vmem>>, vector<32x32xbf16>
      tpu.vector_store %arg8[%c0_23, %c0_24], %46 {strides = array<i32>} : memref<32x32xbf16, #tpu.memory_space<vmem>>, vector<32x32xbf16>,
    } else {
    }
    %c0 = arith.constant 0 : index
    %c0_1 = arith.constant 0 : index
    %3 = vector.load %arg8[%c0, %c0_1] : memref<32x32xbf16, #tpu.memory_space<vmem>>, vector<32x32xbf16>
    %c0_2 = arith.constant 0 : index
    %c0_3 = arith.constant 0 : index
    %4 = vector.load %arg5[%c0_2, %c0_3] : memref<32x128xbf16, #tpu.memory_space<vmem>>, vector<32x128xbf16>
    %cst = arith.constant dense<0.000000e+00> : vector<32x128xf32>
    %5 = tpu.matmul %3, %4, %cst {dimension_numbers = #tpu.dot_dimension_numbers<[1], [0], [0], [1], [0, 0, 1, 1], [], []>} : vector<32x32xbf16>, vector<32x128xbf16>, vector<32x128xf32> -> vector<32x128xf32>
    %c0_4 = arith.constant 0 : index
    %c0_5 = arith.constant 0 : index
    %6 = vector.load %arg6[%c0_4, %c0_5] : memref<1x128xf32, #tpu.memory_space<vmem>>, vector<1x128xf32>
    %7 = vector.broadcast %6 : vector<1x128xf32> to vector<32x128xf32>
    %8 = arith.addf %5, %7 : vector<32x128xf32>
    %cst_6 = arith.constant 5.000000e-01 : f32
    %9 = vector.broadcast %cst_6 : f32 to vector<32x128xf32>
    %10 = arith.mulf %9, %8 : vector<32x128xf32>
    %cst_7 = arith.constant 4.471500e-02 : f32
    %11 = vector.broadcast %cst_7 : f32 to vector<32x128xf32>
    %12 = arith.mulf %11, %8 : vector<32x128xf32>
    %13 = arith.mulf %12, %8 : vector<32x128xf32>
    %14 = arith.mulf %13, %8 : vector<32x128xf32>
    %15 = arith.addf %8, %14 : vector<32x128xf32>
    %cst_8 = arith.constant 0.797884583 : f32
    %16 = vector.broadcast %cst_8 : f32 to vector<32x128xf32>
    %17 = arith.mulf %16, %15 : vector<32x128xf32>
    %18 = math.tanh %17 : vector<32x128xf32>
    %cst_9 = arith.constant 1.000000e+00 : f32
    %19 = vector.broadcast %cst_9 : f32 to vector<32x128xf32>
    %20 = arith.addf %19, %18 : vector<32x128xf32>
    %21 = arith.mulf %10, %20 : vector<32x128xf32>
    %c0_10 = arith.constant 0 : index
    %c0_11 = arith.constant 0 : index
    %22 = vector.load %arg7[%c0_10, %c0_11] : memref<32x128xf32, #tpu.memory_space<vmem>>, vector<32x128xf32>
    tpu.vector_store %arg7[%c0_10, %c0_11], %21 {strides = array<i32>} : memref<32x128xf32, #tpu.memory_space<vmem>>, vector<32x128xf32>,
    return
  }
  func.func @transform_0(%arg0: i32, %arg1: i32) -> (i32, i32) {
    %c0_i32 = arith.constant 0 : i32
    %c0_i32_0 = arith.constant 0 : i32
    return %arg0, %c0_i32 : i32, i32
  }
  func.func @transform_1(%arg0: i32, %arg1: i32) -> (i32, i32) {
    %c0_i32 = arith.constant 0 : i32
    %c0_i32_0 = arith.constant 0 : i32
    %c0_i32_1 = arith.constant 0 : i32
    return %c0_i32, %c0_i32_0 : i32, i32
  }
  func.func @transform_2(%arg0: i32, %arg1: i32) -> (i32, i32) {
    %c0_i32 = arith.constant 0 : i32
    %c0_i32_0 = arith.constant 0 : i32
    %c0_i32_1 = arith.constant 0 : i32
    return %c0_i32, %c0_i32_0 : i32, i32
  }
  func.func @transform_3(%arg0: i32, %arg1: i32) -> (i32, i32) {
    %c0_i32 = arith.constant 0 : i32
    %c0_i32_0 = arith.constant 0 : i32
    return %c0_i32, %arg1 : i32, i32
  }
  func.func @transform_4(%arg0: i32, %arg1: i32) -> (i32, i32) {
    %c0_i32 = arith.constant 0 : i32
    %c0_i32_0 = arith.constant 0 : i32
    return %c0_i32, %arg1 : i32, i32
  }
  func.func @transform_5(%arg0: i32, %arg1: i32) -> (i32, i32) {
    %c0_i32 = arith.constant 0 : i32
    return %arg0, %arg1 : i32, i32
  }
}

module attributes {stable_mosaic.version = 11 : i64} {
  func.func @kernel(%arg0: i32, %arg1: i32, %arg2: i32, %arg3: memref<32x128xf32, #tpu.memory_space<vmem>>, %arg4: memref<128x32xbf16, #tpu.memory_space<vmem>>, %arg5: memref<1x32xf32, #tpu.memory_space<vmem>>, %arg6: memref<32x32xf32, #tpu.memory_space<vmem>>, %arg7: memref<32x32xf32, #tpu.memory_space<vmem>>, %arg8: memref<32x32xf32, #tpu.memory_space<vmem>>) attributes {dimension_semantics = [#tpu.dimension_semantics<parallel>, #tpu.dimension_semantics<parallel>, #tpu.dimension_semantics<arbitrary>], iteration_bounds = array<i64: 1, 1, 1>, scalar_prefetch = 0 : i64, scratch_operands = 1 : i64, tpu.core_type = #tpu.core_type<tc>, window_params = [{transform_indices = @transform_0, window_bounds = array<i64: 32, 128>}, {transform_indices = @transform_1, window_bounds = array<i64: 128, 32>}, {transform_indices = @transform_2, window_bounds = array<i64: 1, 32>}, {transform_indices = @transform_3, window_bounds = array<i64: 32, 32>}, {transform_indices = @transform_4, window_bounds = array<i64: 32, 32>}]} {
    %c0_i32 = arith.constant 0 : i32
    %0 = arith.cmpi eq, %arg2, %c0_i32 : i32
    %1 = arith.extui %0 : i1 to i32
    %c0_i32_0 = arith.constant 0 : i32
    %2 = arith.cmpi ne, %1, %c0_i32_0 : i32
    scf.if %2 {
      %cst_10 = arith.constant 0.000000e+00 : f32
      %13 = vector.broadcast %cst_10 : f32 to vector<32x32xf32>
      %c0_11 = arith.constant 0 : index
      %c0_12 = arith.constant 0 : index
      %14 = vector.load %arg8[%c0_11, %c0_12] : memref<32x32xf32, #tpu.memory_space<vmem>>, vector<32x32xf32>
      tpu.vector_store %arg8[%c0_11, %c0_12], %13 {strides = array<i32>} : memref<32x32xf32, #tpu.memory_space<vmem>>, vector<32x32xf32>,
    } else {
    }
    %c0 = arith.constant 0 : index
    %c0_1 = arith.constant 0 : index
    %3 = vector.load %arg8[%c0, %c0_1] : memref<32x32xf32, #tpu.memory_space<vmem>>, vector<32x32xf32>
    %c0_2 = arith.constant 0 : index
    %c0_3 = arith.constant 0 : index
    %4 = vector.load %arg3[%c0_2, %c0_3] : memref<32x128xf32, #tpu.memory_space<vmem>>, vector<32x128xf32>
    %5 = arith.truncf %4 : vector<32x128xf32> to vector<32x128xbf16>
    %c0_4 = arith.constant 0 : index
    %c0_5 = arith.constant 0 : index
    %6 = vector.load %arg4[%c0_4, %c0_5] : memref<128x32xbf16, #tpu.memory_space<vmem>>, vector<128x32xbf16>
    %cst = arith.constant dense<0.000000e+00> : vector<32x32xf32>
    %7 = tpu.matmul %5, %6, %cst {dimension_numbers = #tpu.dot_dimension_numbers<[1], [0], [0], [1], [0, 0, 1, 1], [], []>} : vector<32x128xbf16>, vector<128x32xbf16>, vector<32x32xf32> -> vector<32x32xf32>
    %8 = arith.addf %3, %7 : vector<32x32xf32>
    %c0_6 = arith.constant 0 : index
    %c0_7 = arith.constant 0 : index
    %9 = vector.load %arg8[%c0_6, %c0_7] : memref<32x32xf32, #tpu.memory_space<vmem>>, vector<32x32xf32>
    tpu.vector_store %arg8[%c0_6, %c0_7], %8 {strides = array<i32>} : memref<32x32xf32, #tpu.memory_space<vmem>>, vector<32x32xf32>,
    %c0_i32_8 = arith.constant 0 : i32
    %10 = arith.cmpi eq, %arg2, %c0_i32_8 : i32
    %11 = arith.extui %10 : i1 to i32
    %c0_i32_9 = arith.constant 0 : i32
    %12 = arith.cmpi ne, %11, %c0_i32_9 : i32
    scf.if %12 {
      %c0_10 = arith.constant 0 : index
      %c0_11 = arith.constant 0 : index
      %13 = vector.load %arg8[%c0_10, %c0_11] : memref<32x32xf32, #tpu.memory_space<vmem>>, vector<32x32xf32>
      %c0_12 = arith.constant 0 : index
      %c0_13 = arith.constant 0 : index
      %14 = vector.load %arg5[%c0_12, %c0_13] : memref<1x32xf32, #tpu.memory_space<vmem>>, vector<1x32xf32>
      %15 = vector.broadcast %14 : vector<1x32xf32> to vector<32x32xf32>
      %16 = arith.addf %13, %15 : vector<32x32xf32>
      %c0_14 = arith.constant 0 : index
      %c0_15 = arith.constant 0 : index
      %17 = vector.load %arg6[%c0_14, %c0_15] : memref<32x32xf32, #tpu.memory_space<vmem>>, vector<32x32xf32>
      %18 = arith.addf %16, %17 : vector<32x32xf32>
      %c0_16 = arith.constant 0 : index
      %c0_17 = arith.constant 0 : index
      %19 = vector.load %arg7[%c0_16, %c0_17] : memref<32x32xf32, #tpu.memory_space<vmem>>, vector<32x32xf32>
      tpu.vector_store %arg7[%c0_16, %c0_17], %18 {strides = array<i32>} : memref<32x32xf32, #tpu.memory_space<vmem>>, vector<32x32xf32>,
    } else {
    }
    return
  }
  func.func @transform_0(%arg0: i32, %arg1: i32, %arg2: i32) -> (i32, i32) {
    %c0_i32 = arith.constant 0 : i32
    return %arg0, %arg2 : i32, i32
  }
  func.func @transform_1(%arg0: i32, %arg1: i32, %arg2: i32) -> (i32, i32) {
    %c0_i32 = arith.constant 0 : i32
    return %arg2, %arg1 : i32, i32
  }
  func.func @transform_2(%arg0: i32, %arg1: i32, %arg2: i32) -> (i32, i32) {
    %c0_i32 = arith.constant 0 : i32
    %c0_i32_0 = arith.constant 0 : i32
    return %c0_i32, %arg1 : i32, i32
  }
  func.func @transform_3(%arg0: i32, %arg1: i32, %arg2: i32) -> (i32, i32) {
    %c0_i32 = arith.constant 0 : i32
    return %arg0, %arg1 : i32, i32
  }
  func.func @transform_4(%arg0: i32, %arg1: i32, %arg2: i32) -> (i32, i32) {
    %c0_i32 = arith.constant 0 : i32
    return %arg0, %arg1 : i32, i32
  }
}

module attributes {stable_mosaic.version = 11 : i64} {
  func.func @kernel(%arg0: i32, %arg1: memref<16x96xf32, #tpu.memory_space<vmem>>, %arg2: memref<16x16xf32, #tpu.memory_space<vmem>>, %arg3: memref<16x32xf32, #tpu.memory_space<vmem>>) attributes {dimension_semantics = [#tpu.dimension_semantics<parallel>], iteration_bounds = array<i64: 2>, scalar_prefetch = 0 : i64, scratch_operands = 0 : i64, tpu.core_type = #tpu.core_type<tc>, window_params = [{transform_indices = @transform_0, window_bounds = array<i64: 16, 96>}, {pipeline_mode = #tpu.pipeline_mode<synchronous>, transform_indices = @transform_1, window_bounds = array<i64: 16, 16>}, {transform_indices = @transform_2, window_bounds = array<i64: 16, 32>}]} {
    %c0 = arith.constant 0 : index
    %c0_0 = arith.constant 0 : index
    %0 = vector.load %arg1[%c0, %c0_0] : memref<16x96xf32, #tpu.memory_space<vmem>>, vector<16x96xf32>
    %c0_1 = arith.constant 0 : index
    %c0_2 = arith.constant 0 : index
    %1 = vector.load %arg2[%c0_1, %c0_2] : memref<16x16xf32, #tpu.memory_space<vmem>>, vector<16x16xf32>
    %2 = vector.extract_strided_slice %0 {offsets = [0, 0], sizes = [16, 16], strides = [1, 1]} : vector<16x96xf32> to vector<16x16xf32>
    %3 = arith.truncf %2 : vector<16x16xf32> to vector<16x16xbf16>
    %4 = vector.extract_strided_slice %0 {offsets = [0, 32], sizes = [16, 16], strides = [1, 1]} : vector<16x96xf32> to vector<16x16xf32>
    %5 = arith.truncf %4 : vector<16x16xf32> to vector<16x16xbf16>
    %6 = vector.extract_strided_slice %0 {offsets = [0, 64], sizes = [16, 16], strides = [1, 1]} : vector<16x96xf32> to vector<16x16xf32>
    %7 = arith.truncf %6 : vector<16x16xf32> to vector<16x16xbf16>
    %cst = arith.constant dense<0.000000e+00> : vector<16x16xf32>
    %8 = tpu.matmul %3, %5, %cst {dimension_numbers = #tpu.dot_dimension_numbers<[1], [1], [0], [0], [0, 0, 1, 0], [], []>} : vector<16x16xbf16>, vector<16x16xbf16>, vector<16x16xf32> -> vector<16x16xf32>
    %9 = arith.addf %8, %1 : vector<16x16xf32>
    %cst_3 = arith.constant dense<0xFF800000> : vector<16xf32>
    %10 = vector.multi_reduction <maximumf>, %9, %cst_3 [1] : vector<16x16xf32> to vector<16xf32>
    %11 = vector.shape_cast %10 : vector<16xf32> to vector<16x1xf32>
    %12 = vector.broadcast %11 : vector<16x1xf32> to vector<16x16xf32>
    %13 = arith.subf %9, %12 : vector<16x16xf32>
    %14 = math.exp %13 : vector<16x16xf32>
    %cst_4 = arith.constant dense<0.000000e+00> : vector<16xf32>
    %15 = vector.multi_reduction <add>, %14, %cst_4 [1] : vector<16x16xf32> to vector<16xf32>
    %16 = vector.shape_cast %15 : vector<16xf32> to vector<16x1xf32>
    %17 = tpu.reciprocal %16 {approx = true} : vector<16x1xf32> -> vector<16x1xf32>
    %18 = vector.broadcast %17 : vector<16x1xf32> to vector<16x16xf32>
    %19 = arith.mulf %14, %18 : vector<16x16xf32>
    %20 = arith.truncf %19 : vector<16x16xf32> to vector<16x16xbf16>
    %cst_5 = arith.constant dense<0.000000e+00> : vector<16x16xf32>
    %21 = tpu.matmul %20, %7, %cst_5 {dimension_numbers = #tpu.dot_dimension_numbers<[1], [0], [0], [1], [0, 0, 1, 1], [], []>} : vector<16x16xbf16>, vector<16x16xbf16>, vector<16x16xf32> -> vector<16x16xf32>
    %22 = vector.extract_strided_slice %0 {offsets = [0, 16], sizes = [16, 16], strides = [1, 1]} : vector<16x96xf32> to vector<16x16xf32>
    %23 = arith.truncf %22 : vector<16x16xf32> to vector<16x16xbf16>
    %24 = vector.extract_strided_slice %0 {offsets = [0, 48], sizes = [16, 16], strides = [1, 1]} : vector<16x96xf32> to vector<16x16xf32>
    %25 = arith.truncf %24 : vector<16x16xf32> to vector<16x16xbf16>
    %26 = vector.extract_strided_slice %0 {offsets = [0, 80], sizes = [16, 16], strides = [1, 1]} : vector<16x96xf32> to vector<16x16xf32>
    %27 = arith.truncf %26 : vector<16x16xf32> to vector<16x16xbf16>
    %cst_6 = arith.constant dense<0.000000e+00> : vector<16x16xf32>
    %28 = tpu.matmul %23, %25, %cst_6 {dimension_numbers = #tpu.dot_dimension_numbers<[1], [1], [0], [0], [0, 0, 1, 0], [], []>} : vector<16x16xbf16>, vector<16x16xbf16>, vector<16x16xf32> -> vector<16x16xf32>
    %29 = arith.addf %28, %1 : vector<16x16xf32>
    %cst_7 = arith.constant dense<0xFF800000> : vector<16xf32>
    %30 = vector.multi_reduction <maximumf>, %29, %cst_7 [1] : vector<16x16xf32> to vector<16xf32>
    %31 = vector.shape_cast %30 : vector<16xf32> to vector<16x1xf32>
    %32 = vector.broadcast %31 : vector<16x1xf32> to vector<16x16xf32>
    %33 = arith.subf %29, %32 : vector<16x16xf32>
    %34 = math.exp %33 : vector<16x16xf32>
    %cst_8 = arith.constant dense<0.000000e+00> : vector<16xf32>
    %35 = vector.multi_reduction <add>, %34, %cst_8 [1] : vector<16x16xf32> to vector<16xf32>
    %36 = vector.shape_cast %35 : vector<16xf32> to vector<16x1xf32>
    %37 = tpu.reciprocal %36 {approx = true} : vector<16x1xf32> -> vector<16x1xf32>
    %38 = vector.broadcast %37 : vector<16x1xf32> to vector<16x16xf32>
    %39 = arith.mulf %34, %38 : vector<16x16xf32>
    %40 = arith.truncf %39 : vector<16x16xf32> to vector<16x16xbf16>
    %cst_9 = arith.constant dense<0.000000e+00> : vector<16x16xf32>
    %41 = tpu.matmul %40, %27, %cst_9 {dimension_numbers = #tpu.dot_dimension_numbers<[1], [0], [0], [1], [0, 0, 1, 1], [], []>} : vector<16x16xbf16>, vector<16x16xbf16>, vector<16x16xf32> -> vector<16x16xf32>
    %42 = tpu.concatenate %21, %41 in 1 : vector<16x16xf32>, vector<16x16xf32> -> vector<16x32xf32>
    %c0_10 = arith.constant 0 : index
    %c0_11 = arith.constant 0 : index
    %43 = vector.load %arg3[%c0_10, %c0_11] : memref<16x32xf32, #tpu.memory_space<vmem>>, vector<16x32xf32>
    tpu.vector_store %arg3[%c0_10, %c0_11], %42 {strides = array<i32>} : memref<16x32xf32, #tpu.memory_space<vmem>>, vector<16x32xf32>,
    return
  }
  func.func @transform_0(%arg0: i32) -> (i32, i32) {
    %c0_i32 = arith.constant 0 : i32
    %c0_i32_0 = arith.constant 0 : i32
    return %arg0, %c0_i32 : i32, i32
  }
  func.func @transform_1(%arg0: i32) -> (i32, i32) {
    %c0_i32 = arith.constant 0 : i32
    %c0_i32_0 = arith.constant 0 : i32
    %c0_i32_1 = arith.constant 0 : i32
    return %c0_i32, %c0_i32_0 : i32, i32
  }
  func.func @transform_2(%arg0: i32) -> (i32, i32) {
    %c0_i32 = arith.constant 0 : i32
    %c0_i32_0 = arith.constant 0 : i32
    return %arg0, %c0_i32 : i32, i32
  }
}

module attributes {stable_mosaic.version = 11 : i64} {
  func.func @kernel(%arg0: i32, %arg1: i32, %arg2: i32, %arg3: memref<32x32xf32, #tpu.memory_space<vmem>>, %arg4: memref<32x32xbf16, #tpu.memory_space<vmem>>, %arg5: memref<1x32xf32, #tpu.memory_space<vmem>>, %arg6: memref<32x32xf32, #tpu.memory_space<vmem>>, %arg7: memref<32x32xf32, #tpu.memory_space<vmem>>, %arg8: memref<32x32xf32, #tpu.memory_space<vmem>>) attributes {dimension_semantics = [#tpu.dimension_semantics<parallel>, #tpu.dimension_semantics<parallel>, #tpu.dimension_semantics<arbitrary>], iteration_bounds = array<i64: 1, 1, 1>, scalar_prefetch = 0 : i64, scratch_operands = 1 : i64, tpu.core_type = #tpu.core_type<tc>, window_params = [{transform_indices = @transform_0, window_bounds = array<i64: 32, 32>}, {transform_indices = @transform_1, window_bounds = array<i64: 32, 32>}, {transform_indices = @transform_2, window_bounds = array<i64: 1, 32>}, {transform_indices = @transform_3, window_bounds = array<i64: 32, 32>}, {transform_indices = @transform_4, window_bounds = array<i64: 32, 32>}]} {
    %c0_i32 = arith.constant 0 : i32
    %0 = arith.cmpi eq, %arg2, %c0_i32 : i32
    %1 = arith.extui %0 : i1 to i32
    %c0_i32_0 = arith.constant 0 : i32
    %2 = arith.cmpi ne, %1, %c0_i32_0 : i32
    scf.if %2 {
      %cst_10 = arith.constant 0.000000e+00 : f32
      %13 = vector.broadcast %cst_10 : f32 to vector<32x32xf32>
      %c0_11 = arith.constant 0 : index
      %c0_12 = arith.constant 0 : index
      %14 = vector.load %arg8[%c0_11, %c0_12] : memref<32x32xf32, #tpu.memory_space<vmem>>, vector<32x32xf32>
      tpu.vector_store %arg8[%c0_11, %c0_12], %13 {strides = array<i32>} : memref<32x32xf32, #tpu.memory_space<vmem>>, vector<32x32xf32>,
    } else {
    }
    %c0 = arith.constant 0 : index
    %c0_1 = arith.constant 0 : index
    %3 = vector.load %arg8[%c0, %c0_1] : memref<32x32xf32, #tpu.memory_space<vmem>>, vector<32x32xf32>
    %c0_2 = arith.constant 0 : index
    %c0_3 = arith.constant 0 : index
    %4 = vector.load %arg3[%c0_2, %c0_3] : memref<32x32xf32, #tpu.memory_space<vmem>>, vector<32x32xf32>
    %5 = arith.truncf %4 : vector<32x32xf32> to vector<32x32xbf16>
    %c0_4 = arith.constant 0 : index
    %c0_5 = arith.constant 0 : index
    %6 = vector.load %arg4[%c0_4, %c0_5] : memref<32x32xbf16, #tpu.memory_space<vmem>>, vector<32x32xbf16>
    %cst = arith.constant dense<0.000000e+00> : vector<32x32xf32>
    %7 = tpu.matmul %5, %6, %cst {dimension_numbers = #tpu.dot_dimension_numbers<[1], [0], [0], [1], [0, 0, 1, 1], [], []>} : vector<32x32xbf16>, vector<32x32xbf16>, vector<32x32xf32> -> vector<32x32xf32>
    %8 = arith.addf %3, %7 : vector<32x32xf32>
    %c0_6 = arith.constant 0 : index
    %c0_7 = arith.constant 0 : index
    %9 = vector.load %arg8[%c0_6, %c0_7] : memref<32x32xf32, #tpu.memory_space<vmem>>, vector<32x32xf32>
    tpu.vector_store %arg8[%c0_6, %c0_7], %8 {strides = array<i32>} : memref<32x32xf32, #tpu.memory_space<vmem>>, vector<32x32xf32>,
    %c0_i32_8 = arith.constant 0 : i32
    %10 = arith.cmpi eq, %arg2, %c0_i32_8 : i32
    %11 = arith.extui %10 : i1 to i32
    %c0_i32_9 = arith.constant 0 : i32
    %12 = arith.cmpi ne, %11, %c0_i32_9 : i32
    scf.if %12 {
      %c0_10 = arith.constant 0 : index
      %c0_11 = arith.constant 0 : index
      %13 = vector.load %arg8[%c0_10, %c0_11] : memref<32x32xf32, #tpu.memory_space<vmem>>, vector<32x32xf32>
      %c0_12 = arith.constant 0 : index
      %c0_13 = arith.constant 0 : index
      %14 = vector.load %arg5[%c0_12, %c0_13] : memref<1x32xf32, #tpu.memory_space<vmem>>, vector<1x32xf32>
      %15 = vector.broadcast %14 : vector<1x32xf32> to vector<32x32xf32>
      %16 = arith.addf %13, %15 : vector<32x32xf32>
      %c0_14 = arith.constant 0 : index
      %c0_15 = arith.constant 0 : index
      %17 = vector.load %arg6[%c0_14, %c0_15] : memref<32x32xf32, #tpu.memory_space<vmem>>, vector<32x32xf32>
      %18 = arith.addf %16, %17 : vector<32x32xf32>
      %c0_16 = arith.constant 0 : index
      %c0_17 = arith.constant 0 : index
      %19 = vector.load %arg7[%c0_16, %c0_17] : memref<32x32xf32, #tpu.memory_space<vmem>>, vector<32x32xf32>
      tpu.vector_store %arg7[%c0_16, %c0_17], %18 {strides = array<i32>} : memref<32x32xf32, #tpu.memory_space<vmem>>, vector<32x32xf32>,
    } else {
    }
    return
  }
  func.func @transform_0(%arg0: i32, %arg1: i32, %arg2: i32) -> (i32, i32) {
    %c0_i32 = arith.constant 0 : i32
    return %arg0, %arg2 : i32, i32
  }
  func.func @transform_1(%arg0: i32, %arg1: i32, %arg2: i32) -> (i32, i32) {
    %c0_i32 = arith.constant 0 : i32
    return %arg2, %arg1 : i32, i32
  }
  func.func @transform_2(%arg0: i32, %arg1: i32, %arg2: i32) -> (i32, i32) {
    %c0_i32 = arith.constant 0 : i32
    %c0_i32_0 = arith.constant 0 : i32
    return %c0_i32, %arg1 : i32, i32
  }
  func.func @transform_3(%arg0: i32, %arg1: i32, %arg2: i32) -> (i32, i32) {
    %c0_i32 = arith.constant 0 : i32
    return %arg0, %arg1 : i32, i32
  }
  func.func @transform_4(%arg0: i32, %arg1: i32, %arg2: i32) -> (i32, i32) {
    %c0_i32 = arith.constant 0 : i32
    return %arg0, %arg1 : i32, i32
  }
}

module attributes {stable_mosaic.version = 11 : i64} {
  func.func @kernel(%arg0: i32, %arg1: i32, %arg2: memref<32x32xf32, #tpu.memory_space<vmem>>, %arg3: memref<1x32xf32, #tpu.memory_space<vmem>>, %arg4: memref<1x32xf32, #tpu.memory_space<vmem>>, %arg5: memref<32x128xbf16, #tpu.memory_space<vmem>>, %arg6: memref<1x128xf32, #tpu.memory_space<vmem>>, %arg7: memref<32x128xf32, #tpu.memory_space<vmem>>, %arg8: memref<32x32xbf16, #tpu.memory_space<vmem>>) attributes {dimension_semantics = [#tpu.dimension_semantics<parallel>, #tpu.dimension_semantics<arbitrary>], iteration_bounds = array<i64: 1, 1>, scalar_prefetch = 0 : i64, scratch_operands = 1 : i64, tpu.core_type = #tpu.core_type<tc>, window_params = [{transform_indices = @transform_0, window_bounds = array<i64: 32, 32>}, {pipeline_mode = #tpu.pipeline_mode<synchronous>, transform_indices = @transform_1, window_bounds = array<i64: 1, 32>}, {pipeline_mode = #tpu.pipeline_mode<synchronous>, transform_indices = @transform_2, window_bounds = array<i64: 1, 32>}, {transform_indices = @transform_3, window_bounds = array<i64: 32, 128>}, {transform_indices = @transform_4, window_bounds = array<i64: 1, 128>}, {transform_indices = @transform_5, window_bounds = array<i64: 32, 128>}]} {
    %c0_i32 = arith.constant 0 : i32
    %0 = arith.cmpi eq, %arg1, %c0_i32 : i32
    %1 = arith.extui %0 : i1 to i32
    %c0_i32_0 = arith.constant 0 : i32
    %2 = arith.cmpi ne, %1, %c0_i32_0 : i32
    scf.if %2 {
      %c0_12 = arith.constant 0 : index
      %c0_13 = arith.constant 0 : index
      %23 = vector.load %arg2[%c0_12, %c0_13] : memref<32x32xf32, #tpu.memory_space<vmem>>, vector<32x32xf32>
      %cst_14 = arith.constant dense<0.000000e+00> : vector<32xf32>
      %24 = vector.multi_reduction <add>, %23, %cst_14 [1] : vector<32x32xf32> to vector<32xf32>
      %25 = vector.shape_cast %24 : vector<32xf32> to vector<32x1xf32>
      %cst_15 = arith.constant 3.200000e+01 : f32
      %26 = vector.broadcast %cst_15 : f32 to vector<32x1xf32>
      %27 = arith.divf %25, %26 : vector<32x1xf32>
      %28 = vector.broadcast %27 : vector<32x1xf32> to vector<32x32xf32>
      %29 = arith.subf %23, %28 : vector<32x32xf32>
      %30 = arith.mulf %29, %29 : vector<32x32xf32>
      %cst_16 = arith.constant dense<0.000000e+00> : vector<32xf32>
      %31 = vector.multi_reduction <add>, %30, %cst_16 [1] : vector<32x32xf32> to vector<32xf32>
      %32 = vector.shape_cast %31 : vector<32xf32> to vector<32x1xf32>
      %cst_17 = arith.constant 3.200000e+01 : f32
      %33 = vector.broadcast %cst_17 : f32 to vector<32x1xf32>
      %34 = arith.divf %32, %33 : vector<32x1xf32>
      %cst_18 = arith.constant 9.99999974E-6 : f32
      %35 = vector.broadcast %cst_18 : f32 to vector<32x1xf32>
      %36 = arith.addf %34, %35 : vector<32x1xf32>
      %37 = math.rsqrt %36 : vector<32x1xf32>
      %38 = vector.broadcast %37 : vector<32x1xf32> to vector<32x32xf32>
      %39 = arith.mulf %29, %38 : vector<32x32xf32>
      %c0_19 = arith.constant 0 : index
      %c0_20 = arith.constant 0 : index
      %40 = vector.load %arg3[%c0_19, %c0_20] : memref<1x32xf32, #tpu.memory_space<vmem>>, vector<1x32xf32>
      %41 = vector.broadcast %40 : vector<1x32xf32> to vector<32x32xf32>
      %42 = arith.mulf %39, %41 : vector<32x32xf32>
      %c0_21 = arith.constant 0 : index
      %c0_22 = arith.constant 0 : index
      %43 = vector.load %arg4[%c0_21, %c0_22] : memref<1x32xf32, #tpu.memory_space<vmem>>, vector<1x32xf32>
      %44 = vector.broadcast %43 : vector<1x32xf32> to vector<32x32xf32>
      %45 = arith.addf %42, %44 : vector<32x32xf32>
      %46 = arith.truncf %45 : vector<32x32xf32> to vector<32x32xbf16>
      %c0_23 = arith.constant 0 : index
      %c0_24 = arith.constant 0 : index
      %47 = vector.load %arg8[%c0_23, %c0_24] : memref<32x32xbf16, #tpu.memory_space<vmem>>, vector<32x32xbf16>
      tpu.vector_store %arg8[%c0_23, %c0_24], %46 {strides = array<i32>} : memref<32x32xbf16, #tpu.memory_space<vmem>>, vector<32x32xbf16>,
    } else {
    }
    %c0 = arith.constant 0 : index
    %c0_1 = arith.constant 0 : index
    %3 = vector.load %arg8[%c0, %c0_1] : memref<32x32xbf16, #tpu.memory_space<vmem>>, vector<32x32xbf16>
    %c0_2 = arith.constant 0 : index
    %c0_3 = arith.constant 0 : index
    %4 = vector.load %arg5[%c0_2, %c0_3] : memref<32x128xbf16, #tpu.memory_space<vmem>>, vector<32x128xbf16>
    %cst = arith.constant dense<0.000000e+00> : vector<32x128xf32>
    %5 = tpu.matmul %3, %4, %cst {dimension_numbers = #tpu.dot_dimension_numbers<[1], [0], [0], [1], [0, 0, 1, 1], [], []>} : vector<32x32xbf16>, vector<32x128xbf16>, vector<32x128xf32> -> vector<32x128xf32>
    %c0_4 = arith.constant 0 : index
    %c0_5 = arith.constant 0 : index
    %6 = vector.load %arg6[%c0_4, %c0_5] : memref<1x128xf32, #tpu.memory_space<vmem>>, vector<1x128xf32>
    %7 = vector.broadcast %6 : vector<1x128xf32> to vector<32x128xf32>
    %8 = arith.addf %5, %7 : vector<32x128xf32>
    %cst_6 = arith.constant 5.000000e-01 : f32
    %9 = vector.broadcast %cst_6 : f32 to vector<32x128xf32>
    %10 = arith.mulf %9, %8 : vector<32x128xf32>
    %cst_7 = arith.constant 4.471500e-02 : f32
    %11 = vector.broadcast %cst_7 : f32 to vector<32x128xf32>
    %12 = arith.mulf %11, %8 : vector<32x128xf32>
    %13 = arith.mulf %12, %8 : vector<32x128xf32>
    %14 = arith.mulf %13, %8 : vector<32x128xf32>
    %15 = arith.addf %8, %14 : vector<32x128xf32>
    %cst_8 = arith.constant 0.797884583 : f32
    %16 = vector.broadcast %cst_8 : f32 to vector<32x128xf32>
    %17 = arith.mulf %16, %15 : vector<32x128xf32>
    %18 = math.tanh %17 : vector<32x128xf32>
    %cst_9 = arith.constant 1.000000e+00 : f32
    %19 = vector.broadcast %cst_9 : f32 to vector<32x128xf32>
    %20 = arith.addf %19, %18 : vector<32x128xf32>
    %21 = arith.mulf %10, %20 : vector<32x128xf32>
    %c0_10 = arith.constant 0 : index
    %c0_11 = arith.constant 0 : index
    %22 = vector.load %arg7[%c0_10, %c0_11] : memref<32x128xf32, #tpu.memory_space<vmem>>, vector<32x128xf32>
    tpu.vector_store %arg7[%c0_10, %c0_11], %21 {strides = array<i32>} : memref<32x128xf32, #tpu.memory_space<vmem>>, vector<32x128xf32>,
    return
  }
  func.func @transform_0(%arg0: i32, %arg1: i32) -> (i32, i32) {
    %c0_i32 = arith.constant 0 : i32
    %c0_i32_0 = arith.constant 0 : i32
    return %arg0, %c0_i32 : i32, i32
  }
  func.func @transform_1(%arg0: i32, %arg1: i32) -> (i32, i32) {
    %c0_i32 = arith.constant 0 : i32
    %c0_i32_0 = arith.constant 0 : i32
    %c0_i32_1 = arith.constant 0 : i32
    return %c0_i32, %c0_i32_0 : i32, i32
  }
  func.func @transform_2(%arg0: i32, %arg1: i32) -> (i32, i32) {
    %c0_i32 = arith.constant 0 : i32
    %c0_i32_0 = arith.constant 0 : i32
    %c0_i32_1 = arith.constant 0 : i32
    return %c0_i32, %c0_i32_0 : i32, i32
  }
  func.func @transform_3(%arg0: i32, %arg1: i32) -> (i32, i32) {
    %c0_i32 = arith.constant 0 : i32
    %c0_i32_0 = arith.constant 0 : i32
    return %c0_i32, %arg1 : i32, i32
  }
  func.func @transform_4(%arg0: i32, %arg1: i32) -> (i32, i32) {
    %c0_i32 = arith.constant 0 : i32
    %c0_i32_0 = arith.constant 0 : i32
    return %c0_i32, %arg1 : i32, i32
  }
  func.func @transform_5(%arg0: i32, %arg1: i32) -> (i32, i32) {
    %c0_i32 = arith.constant 0 : i32
    return %arg0, %arg1 : i32, i32
  }
}

module attributes {stable_mosaic.version = 11 : i64} {
  func.func @kernel(%arg0: i32, %arg1: i32, %arg2: memref<32x32xf32, #tpu.memory_space<vmem>>, %arg3: memref<1x32xf32, #tpu.memory_space<vmem>>, %arg4: memref<1x32xf32, #tpu.memory_space<vmem>>, %arg5: memref<32x4xbf16, #tpu.memory_space<vmem>>, %arg6: memref<1x4xf32, #tpu.memory_space<vmem>>, %arg7: memref<32x4xf32, #tpu.memory_space<vmem>>, %arg8: memref<32x32xbf16, #tpu.memory_space<vmem>>) attributes {dimension_semantics = [#tpu.dimension_semantics<parallel>, #tpu.dimension_semantics<arbitrary>], iteration_bounds = array<i64: 1, 1>, scalar_prefetch = 0 : i64, scratch_operands = 1 : i64, tpu.core_type = #tpu.core_type<tc>, window_params = [{transform_indices = @transform_0, window_bounds = array<i64: 32, 32>}, {pipeline_mode = #tpu.pipeline_mode<synchronous>, transform_indices = @transform_1, window_bounds = array<i64: 1, 32>}, {pipeline_mode = #tpu.pipeline_mode<synchronous>, transform_indices = @transform_2, window_bounds = array<i64: 1, 32>}, {transform_indices = @transform_3, window_bounds = array<i64: 32, 4>}, {transform_indices = @transform_4, window_bounds = array<i64: 1, 4>}, {transform_indices = @transform_5, window_bounds = array<i64: 32, 4>}]} {
    %c0_i32 = arith.constant 0 : i32
    %0 = arith.cmpi eq, %arg1, %c0_i32 : i32
    %1 = arith.extui %0 : i1 to i32
    %c0_i32_0 = arith.constant 0 : i32
    %2 = arith.cmpi ne, %1, %c0_i32_0 : i32
    scf.if %2 {
      %c0_8 = arith.constant 0 : index
      %c0_9 = arith.constant 0 : index
      %10 = vector.load %arg2[%c0_8, %c0_9] : memref<32x32xf32, #tpu.memory_space<vmem>>, vector<32x32xf32>
      %cst_10 = arith.constant dense<0.000000e+00> : vector<32xf32>
      %11 = vector.multi_reduction <add>, %10, %cst_10 [1] : vector<32x32xf32> to vector<32xf32>
      %12 = vector.shape_cast %11 : vector<32xf32> to vector<32x1xf32>
      %cst_11 = arith.constant 3.200000e+01 : f32
      %13 = vector.broadcast %cst_11 : f32 to vector<32x1xf32>
      %14 = arith.divf %12, %13 : vector<32x1xf32>
      %15 = vector.broadcast %14 : vector<32x1xf32> to vector<32x32xf32>
      %16 = arith.subf %10, %15 : vector<32x32xf32>
      %17 = arith.mulf %16, %16 : vector<32x32xf32>
      %cst_12 = arith.constant dense<0.000000e+00> : vector<32xf32>
      %18 = vector.multi_reduction <add>, %17, %cst_12 [1] : vector<32x32xf32> to vector<32xf32>
      %19 = vector.shape_cast %18 : vector<32xf32> to vector<32x1xf32>
      %cst_13 = arith.constant 3.200000e+01 : f32
      %20 = vector.broadcast %cst_13 : f32 to vector<32x1xf32>
      %21 = arith.divf %19, %20 : vector<32x1xf32>
      %cst_14 = arith.constant 9.99999974E-6 : f32
      %22 = vector.broadcast %cst_14 : f32 to vector<32x1xf32>
      %23 = arith.addf %21, %22 : vector<32x1xf32>
      %24 = math.rsqrt %23 : vector<32x1xf32>
      %25 = vector.broadcast %24 : vector<32x1xf32> to vector<32x32xf32>
      %26 = arith.mulf %16, %25 : vector<32x32xf32>
      %c0_15 = arith.constant 0 : index
      %c0_16 = arith.constant 0 : index
      %27 = vector.load %arg3[%c0_15, %c0_16] : memref<1x32xf32, #tpu.memory_space<vmem>>, vector<1x32xf32>
      %28 = vector.broadcast %27 : vector<1x32xf32> to vector<32x32xf32>
      %29 = arith.mulf %26, %28 : vector<32x32xf32>
      %c0_17 = arith.constant 0 : index
      %c0_18 = arith.constant 0 : index
      %30 = vector.load %arg4[%c0_17, %c0_18] : memref<1x32xf32, #tpu.memory_space<vmem>>, vector<1x32xf32>
      %31 = vector.broadcast %30 : vector<1x32xf32> to vector<32x32xf32>
      %32 = arith.addf %29, %31 : vector<32x32xf32>
      %33 = arith.truncf %32 : vector<32x32xf32> to vector<32x32xbf16>
      %c0_19 = arith.constant 0 : index
      %c0_20 = arith.constant 0 : index
      %34 = vector.load %arg8[%c0_19, %c0_20] : memref<32x32xbf16, #tpu.memory_space<vmem>>, vector<32x32xbf16>
      tpu.vector_store %arg8[%c0_19, %c0_20], %33 {strides = array<i32>} : memref<32x32xbf16, #tpu.memory_space<vmem>>, vector<32x32xbf16>,
    } else {
    }
    %c0 = arith.constant 0 : index
    %c0_1 = arith.constant 0 : index
    %3 = vector.load %arg8[%c0, %c0_1] : memref<32x32xbf16, #tpu.memory_space<vmem>>, vector<32x32xbf16>
    %c0_2 = arith.constant 0 : index
    %c0_3 = arith.constant 0 : index
    %4 = vector.load %arg5[%c0_2, %c0_3] : memref<32x4xbf16, #tpu.memory_space<vmem>>, vector<32x4xbf16>
    %cst = arith.constant dense<0.000000e+00> : vector<32x4xf32>
    %5 = tpu.matmul %3, %4, %cst {dimension_numbers = #tpu.dot_dimension_numbers<[1], [0], [0], [1], [0, 0, 1, 1], [], []>} : vector<32x32xbf16>, vector<32x4xbf16>, vector<32x4xf32> -> vector<32x4xf32>
    %c0_4 = arith.constant 0 : index
    %c0_5 = arith.constant 0 : index
    %6 = vector.load %arg6[%c0_4, %c0_5] : memref<1x4xf32, #tpu.memory_space<vmem>>, vector<1x4xf32>
    %7 = vector.broadcast %6 : vector<1x4xf32> to vector<32x4xf32>
    %8 = arith.addf %5, %7 : vector<32x4xf32>
    %c0_6 = arith.constant 0 : index
    %c0_7 = arith.constant 0 : index
    %9 = vector.load %arg7[%c0_6, %c0_7] : memref<32x4xf32, #tpu.memory_space<vmem>>, vector<32x4xf32>
    tpu.vector_store %arg7[%c0_6, %c0_7], %8 {strides = array<i32>} : memref<32x4xf32, #tpu.memory_space<vmem>>, vector<32x4xf32>,
    return
  }
  func.func @transform_0(%arg0: i32, %arg1: i32) -> (i32, i32) {
    %c0_i32 = arith.constant 0 : i32
    %c0_i32_0 = arith.constant 0 : i32
    return %arg0, %c0_i32 : i32, i32
  }
  func.func @transform_1(%arg0: i32, %arg1: i32) -> (i32, i32) {
    %c0_i32 = arith.constant 0 : i32
    %c0_i32_0 = arith.constant 0 : i32
    %c0_i32_1 = arith.constant 0 : i32
    return %c0_i32, %c0_i32_0 : i32, i32
  }
  func.func @transform_2(%arg0: i32, %arg1: i32) -> (i32, i32) {
    %c0_i32 = arith.constant 0 : i32
    %c0_i32_0 = arith.constant 0 : i32
    %c0_i32_1 = arith.constant 0 : i32
    return %c0_i32, %c0_i32_0 : i32, i32
  }
  func.func @transform_3(%arg0: i32, %arg1: i32) -> (i32, i32) {
    %c0_i32 = arith.constant 0 : i32
    %c0_i32_0 = arith.constant 0 : i32
    return %c0_i32, %arg1 : i32, i32
  }
  func.func @transform_4(%arg0: i32, %arg1: i32) -> (i32, i32) {
    %c0_i32 = arith.constant 0 : i32
    %c0_i32_0 = arith.constant 0 : i32
    return %c0_i32, %arg1 : i32, i32
  }
  func.func @transform_5(%arg0: i32, %arg1: i32) -> (i32, i32) {
    %c0_i32 = arith.constant 0 : i32
    return %arg0, %arg1 : i32, i32
  }
}

</mosaic_0001>

<llo_original>
// kernel: gpt2_transformer_forward.13
$region0: #{gpt2_transformer_forward.13}
  #allocation0 [shape = 'u32[]', space=smem, size = 0x4, offset = 0x4, fixed_abs, tag = 'smem constant byte address 0x4 - core index']
  #allocation1 [shape = 'u32[72,128]{1,0:T(1,128)}', space=vmem, size = 0x9000, scoped, tag = 'internal scratch']
  #allocation2 [shape = 'bf16[32,32]{1,0:T(8,128)(2,1)}', space=vmem, size = 0x2000, scoped, tag = 'scratch operand']
  %s0 = inlined_call_operand.vmem [shape: f32[32,32], index: 0, kind: input, shape index: {}]
  %s1 = inlined_call_operand.vmem [shape: f32[1,32], index: 1, kind: input, shape index: {}]
  %s2 = inlined_call_operand.vmem [shape: f32[1,32], index: 2, kind: input, shape index: {}]
  %s3 = inlined_call_operand.vmem [shape: bf16[32,96], index: 3, kind: input, shape index: {}]
  %s4 = inlined_call_operand.vmem [shape: f32[1,96], index: 4, kind: input, shape index: {}]
  %s5 = inlined_call_operand.vmem [shape: f32[32,96], index: 5, kind: output, shape index: {}]
  %s6 = sld [smem:[#allocation0]]
  $region34: #{gpt2_transformer_forward.13} parent=0
    _
  %s8 = ssub.s32 1, %s6
  %s9 = scalar_select 0, %s8, %s6
  // Predicated region
  $region2: #{gpt2_transformer_forward.13} parent=0 // pred_check
    _
  $region3: #{gpt2_transformer_forward.13} parent=0 // pred_check_branch
    %11 = sbr.rel (0) target = $region5
  $region4: #{gpt2_transformer_forward.13} parent=0 // pred_region
    _
  $region5: #{gpt2_transformer_forward.13} parent=0 // pred_fallthru
    _
  // Predicated region
  $region6: #{gpt2_transformer_forward.13} parent=0 // pred_check
    _
  $region7: #{gpt2_transformer_forward.13} parent=0 // pred_check_branch
    %13 = sbr.rel (0) target = $region9
  $region8: #{gpt2_transformer_forward.13} parent=0 // pred_region
    _
  $region9: #{gpt2_transformer_forward.13} parent=0 // pred_fallthru
    _
  // Predicated region
  $region10: #{gpt2_transformer_forward.13} parent=0 // pred_check
    _
  $region11: #{gpt2_transformer_forward.13} parent=0 // pred_check_branch
    %15 = sbr.rel (0) target = $region13
  $region12: #{gpt2_transformer_forward.13} parent=0 // pred_region
    _
  $region13: #{gpt2_transformer_forward.13} parent=0 // pred_fallthru
    _
  // Predicated region
  $region14: #{gpt2_transformer_forward.13} parent=0 // pred_check
    _
  $region15: #{gpt2_transformer_forward.13} parent=0 // pred_check_branch
    %17 = sbr.rel (0) target = $region17
  $region16: #{gpt2_transformer_forward.13} parent=0 // pred_region
    _
  $region17: #{gpt2_transformer_forward.13} parent=0 // pred_fallthru
    _
  // Predicated region
  $region18: #{gpt2_transformer_forward.13} parent=0 // pred_check
    _
  $region19: #{gpt2_transformer_forward.13} parent=0 // pred_check_branch
    %19 = sbr.rel (0) target = $region21
  $region20: #{gpt2_transformer_forward.13} parent=0 // pred_region
    _
  $region21: #{gpt2_transformer_forward.13} parent=0 // pred_fallthru
    _
  %p21 = scmp.eq.s32.totalorder 0, 0
  // Predicated region
  $region22: #{gpt2_transformer_forward.13} parent=0 // pred_check
    %p22 = pneg %p21
  $region23: #{gpt2_transformer_forward.13} parent=0 // pred_check_branch
    %24 = sbr.rel (%p22) target = $region25
  $region24: #{gpt2_transformer_forward.13} parent=0 // pred_region
    %v25 = vld [vmem:[%s0] sm:$0xff]
    %v26 = vld [vmem:[%s0 + $0x8] sm:$0xff]
    %v27 = vld [vmem:[%s0 + $0x10] sm:$0xff]
    %v28 = vld [vmem:[%s0 + $0x18] sm:$0xff]
    %vm29 = vcmask 261120
    %v30 = vsel %vm29, %v25, 0.0
    %31 = vadd.xlane.f32.xlu0 %v30
    %v32 = vpop.xlane.xlu0 %31
    %v33 = vsel %vm29, %v26, 0.0
    %34 = vadd.xlane.f32.xlu0 %v33
    %v35 = vpop.xlane.xlu0 %34
    %v36 = vsel %vm29, %v27, 0.0
    %37 = vadd.xlane.f32.xlu0 %v36
    %v38 = vpop.xlane.xlu0 %37
    %v39 = vsel %vm29, %v28, 0.0
    %40 = vadd.xlane.f32.xlu0 %v39
    %v41 = vpop.xlane.xlu0 %40
    %v42 = vrcp.pop 32.0
    %v43 = vmul.f32 32.0, %v42
    %v44 = vsub.f32 1.0, %v43
    %v45 = vmul.f32 %v42, %v44
    %v46 = vadd.f32 %v42, %v45
    %vm47 = vweird.f32 %v42
    %v48 = vsel %vm47, %v42, %v46
    %v49 = vmul.f32 %v32, %v48
    %v50 = vmul.f32 %v35, %v48
    %v51 = vmul.f32 %v38, %v48
    %v52 = vmul.f32 %v41, %v48
    %v53 = vsub.f32 %v25, %v49
    %v54 = vsub.f32 %v26, %v50
    %v55 = vsub.f32 %v27, %v51
    %v56 = vsub.f32 %v28, %v52
    %v57 = vmul.f32 %v53, %v53
    %v58 = vmul.f32 %v54, %v54
    %v59 = vmul.f32 %v55, %v55
    %v60 = vmul.f32 %v56, %v56
    %v61 = vsel %vm29, %v57, 0.0
    %62 = vadd.xlane.f32.xlu0 %v61
    %v63 = vpop.xlane.xlu0 %62
    %v64 = vsel %vm29, %v58, 0.0
    %65 = vadd.xlane.f32.xlu0 %v64
    %v66 = vpop.xlane.xlu0 %65
    %v67 = vsel %vm29, %v59, 0.0
    %68 = vadd.xlane.f32.xlu0 %v67
    %v69 = vpop.xlane.xlu0 %68
    %v70 = vsel %vm29, %v60, 0.0
    %71 = vadd.xlane.f32.xlu0 %v70
    %v72 = vpop.xlane.xlu0 %71
    %v73 = vmul.f32 %v63, %v48
    %v74 = vmul.f32 %v66, %v48
    %v75 = vmul.f32 %v69, %v48
    %v76 = vmul.f32 %v72, %v48
    %v77 = vadd.f32 %v73, 1e-05
    %v78 = vadd.f32 %v74, 1e-05
    %v79 = vadd.f32 %v75, 1e-05
    %v80 = vadd.f32 %v76, 1e-05
    %v81 = vrsqrt.pop %v77
    %v82 = vmul.f32 %v81, %v77
    %v83 = vmul.f32 %v82, %v81
    %v84 = vmul.f32 0.5, %v83
    %v85 = vsub.f32 1.5, %v84
    %v86 = vmul.f32 %v81, %v85
    %vm87 = vweird.f32 %v77
    %vm88 = vweird.f32 %v81
    %vm89 = vmor %vm87, %vm88
    %v90 = vsel %vm89, %v81, %v86
    %v91 = vrsqrt.pop %v78
    %v92 = vmul.f32 %v91, %v78
    %v93 = vmul.f32 %v92, %v91
    %v94 = vmul.f32 0.5, %v93
    %v95 = vsub.f32 1.5, %v94
    %v96 = vmul.f32 %v91, %v95
    %vm97 = vweird.f32 %v78
    %vm98 = vweird.f32 %v91
    %vm99 = vmor %vm97, %vm98
    %v100 = vsel %vm99, %v91, %v96
    %v101 = vrsqrt.pop %v79
    %v102 = vmul.f32 %v101, %v79
    %v103 = vmul.f32 %v102, %v101
    %v104 = vmul.f32 0.5, %v103
    %v105 = vsub.f32 1.5, %v104
    %v106 = vmul.f32 %v101, %v105
    %vm107 = vweird.f32 %v79
    %vm108 = vweird.f32 %v101
    %vm109 = vmor %vm107, %vm108
    %v110 = vsel %vm109, %v101, %v106
    %v111 = vrsqrt.pop %v80
    %v112 = vmul.f32 %v111, %v80
    %v113 = vmul.f32 %v112, %v111
    %v114 = vmul.f32 0.5, %v113
    %v115 = vsub.f32 1.5, %v114
    %v116 = vmul.f32 %v111, %v115
    %vm117 = vweird.f32 %v80
    %vm118 = vweird.f32 %v111
    %vm119 = vmor %vm117, %vm118
    %v120 = vsel %vm119, %v111, %v116
    %v121 = vmul.f32 %v53, %v90
    %v122 = vmul.f32 %v54, %v100
    %v123 = vmul.f32 %v55, %v110
    %v124 = vmul.f32 %v56, %v120
    %v125 = vld [vmem:[%s1] sm:$0x1]
    %v127 = vperm.slane %v125, 0
    %v129 = vmul.f32 %v121, %v127
    %v130 = vmul.f32 %v122, %v127
    %v131 = vmul.f32 %v123, %v127
    %v132 = vmul.f32 %v124, %v127
    %v133 = vld [vmem:[%s2] sm:$0x1]
    %v135 = vperm.slane %v133, 0
    %v137 = vadd.f32 %v129, %v135
    %v138 = vadd.f32 %v130, %v135
    %v139 = vadd.f32 %v131, %v135
    %v140 = vadd.f32 %v132, %v135
    %v141 = vpack.c.bf16 %v137, %v137
    %v142 = vpack.c.bf16 %v138, %v138
    %v143 = vpack.c.bf16 %v139, %v139
    %v144 = vpack.c.bf16 %v140, %v140
    %vm145 = vcmask 257024
    %146 = vst.msk [vmem:[#allocation2] sm:$0xf] %vm145, %v141
    %147 = vst.msk [vmem:[#allocation2 + $0x4] sm:$0xf] %vm145, %v142
    %148 = vst.msk [vmem:[#allocation2 + $0x8] sm:$0xf] %vm145, %v143
    %149 = vst.msk [vmem:[#allocation2 + $0xc] sm:$0xf] %vm145, %v144
  $region25: #{gpt2_transformer_forward.13} parent=0 // pred_fallthru
    _
  %v150 = vld [vmem:[#allocation2] sm:$0xf]
  %v151 = vld [vmem:[#allocation2 + $0x4] sm:$0xf]
  %v152 = vld [vmem:[#allocation2 + $0x8] sm:$0xf]
  %v153 = vld [vmem:[#allocation2 + $0xc] sm:$0xf]
  %v154 = vld [vmem:[%s3] sm:$0xf]
  %v155 = vld [vmem:[%s3 + $0x4] sm:$0xf]
  %v156 = vld [vmem:[%s3 + $0x8] sm:$0xf]
  %v157 = vld [vmem:[%s3 + $0xc] sm:$0xf]
  %v158 = vld [vmem:[%s4] sm:$0x1]
  %v160 = vperm.slane %v158, 0
  %v166 = vunpack.c.l.b16 %v150
  %v167 = vunpack.c.l.b16 %v151
  %v168 = vunpack.c.l.b16 %v152
  %v169 = vunpack.c.l.b16 %v153
  %v170 = vpack.c.b16 %v167, %v166
  %v171 = vpack.c.b16 %v169, %v168
  %v176 = vunpack.c.l.b16 %v154
  %v177 = vunpack.c.l.b16 %v155
  %v178 = vunpack.c.l.b16 %v156
  %v179 = vunpack.c.l.b16 %v157
  %v180 = vpack.c.b16 %v177, %v176
  %v181 = vpack.c.b16 %v179, %v178
  %vm184 = vcmask 261120
  %v186 = vsel %vm184, %v170, 0
  %v189 = vsel %vm184, %v171, 0
  %191 = vmatpush.bf16.msra.mxu0 0
  %192 = vmatpush.bf16.msra.mxu0 0
  %193 = vmatpush.bf16.msra.mxu0 0
  %194 = vmatpush.bf16.msra.mxu0 0
  %195 = vmatpush.bf16.msra.mxu0 0
  %196 = vmatpush.bf16.msra.mxu0 0
  %197 = vmatpush.bf16.msra.mxu0 %v181
  %198 = vmatpush.bf16.msra.mxu0 %v180
  %199 = vmatmul.bf16.gmra.mxu0 %v186
  %v200 = vpop.f32.mrf.mxu0
  %v201 = vadd.f32 %v160, %v200
  %v202 = vpop.f32.mrf.mxu0
  %v203 = vadd.f32 %v160, %v202
  %204 = vmatmul.bf16.gmra.mxu0 %v189
  %v205 = vpop.f32.mrf.mxu0
  %v206 = vadd.f32 %v160, %v205
  %v207 = vpop.f32.mrf.mxu0
  %v208 = vadd.f32 %v160, %v207
  %209 = vdwg.mxu0
  %vm210 = vcmask 785408
  %211 = vst.msk [vmem:[%s5] sm:$0xff] %vm210, %v201
  %212 = vst.msk [vmem:[%s5 + $0x8] sm:$0xff] %vm210, %v203
  %213 = vst.msk [vmem:[%s5 + $0x10] sm:$0xff] %vm210, %v206
  %214 = vst.msk [vmem:[%s5 + $0x18] sm:$0xff] %vm210, %v208
  // Predicated region
  $region26: #{gpt2_transformer_forward.13} parent=0 // pred_check
    _
  $region27: #{gpt2_transformer_forward.13} parent=0 // pred_check_branch
    %216 = sbr.rel (0) target = $region29
  $region28: #{gpt2_transformer_forward.13} parent=0 // pred_region
    _
  $region29: #{gpt2_transformer_forward.13} parent=0 // pred_fallthru
    _
  // Predicated region
  $region30: #{gpt2_transformer_forward.13} parent=0 // pred_check
    _
  $region31: #{gpt2_transformer_forward.13} parent=0 // pred_check_branch
    %218 = sbr.rel (0) target = $region33
  $region32: #{gpt2_transformer_forward.13} parent=0 // pred_region
    _
  $region33: #{gpt2_transformer_forward.13} parent=0 // pred_fallthru
    _

// kernel: gpt2_transformer_forward.12
$region0: #{gpt2_transformer_forward.12}
  #allocation0 [shape = 'u32[]', space=smem, size = 0x4, offset = 0x4, fixed_abs, tag = 'smem constant byte address 0x4 - core index']
  #allocation1 [shape = 'u32[72,128]{1,0:T(1,128)}', space=vmem, size = 0x9000, scoped, tag = 'internal scratch']
  #allocation2 [shape = 'f32[16,32]{1,0:T(8,128)}', space=vmem, size = 0x2000, scoped, tag = 'scratch operand']
  %s0 = inlined_call_operand.vmem [shape: f32[32,4], index: 0, kind: input, shape index: {}]
  %s1 = inlined_call_operand.vmem [shape: bf16[4,32], index: 1, kind: input, shape index: {}]
  %s2 = inlined_call_operand.vmem [shape: f32[1,32], index: 2, kind: input, shape index: {}]
  %s3 = inlined_call_operand.vmem [shape: f32[16,32], index: 3, kind: input, shape index: {}]
  %s4 = inlined_call_operand.vmem [shape: f32[32,32], index: 4, kind: output, shape index: {}]
  %s5 = sld [smem:[#allocation0]]
  $region57: #{gpt2_transformer_forward.12} parent=0
    _
  %s7 = ssub.s32 1, %s5
  %s8 = scalar_select 0, %s7, %s5
  loop: start=0, step=1, limit=4
  $region2: #{gpt2_transformer_forward.12} parent=0 // loop_pre_header
    _
  $region3: #{gpt2_transformer_forward.12} parent=0 // loop_header
    %s10 = sphi 0, %s14
    %p11 = scmp.ge.s32.totalorder %s10, 4
    %s17 = sphi 0, %s36
    %s18 = sphi 0, %s32
    %s19 = sphi 0, %s28
    %s20 = sphi 0, %s17
    %s21 = sphi 0, %s18
    %s22 = sphi 0, %s19
    %s23 = sphi 0, %s20
    %s24 = sphi 0, %s21
    %s25 = sphi 0, %s22
    %s41 = sphi 0, %s43
    %s44 = sphi 0, %s41
    %s45 = sphi 0, %s44
    %s61 = sphi 0, %s45
    %s69 = sphi 0, %s71
    %s72 = sphi 0, %s69
    %s73 = sphi 0, %s72
    %s89 = sphi 0, %s73
    %s95 = sphi 0, %s97
    %s98 = sphi 0, %s95
    %s99 = sphi 0, %s98
    %s115 = sphi 0, %s99
    %s121 = sphi 0, %s123
    %s124 = sphi 0, %s121
    %s125 = sphi 0, %s124
    %s141 = sphi 0, %s125
    %s149 = sphi 0, %s151
    %s152 = sphi 0, %s149
    %s153 = sphi 0, %s152
    %s169 = sphi 0, %s153
  $region4: #{gpt2_transformer_forward.12} parent=0 // loop_header_branch
    %13 = sbr.rel (%p11) target = $region8
  $region5: #{gpt2_transformer_forward.12} parent=0 // loop_body
    %s15 = ssub.s32 %s10, 1
    %s16 = ssub.s32 %s10, 2
    %s26 = sadd.s32 1, %s19
    %p27 = scmp.ge.s32.totalorder %s26, 1
    %s28 = scalar_select %p27, 0, %s26
    %s29 = sadd.s32 1, %s18
    %s30 = scalar_select %p27, %s29, %s18
    %p31 = scmp.ge.s32.totalorder %s30, 1
    %s32 = scalar_select %p31, 0, %s30
    %s33 = sadd.s32 1, %s17
    %s34 = scalar_select %p31, %s33, %s17
    %p35 = scmp.ge.s32.totalorder %s34, 2
    %s36 = scalar_select %p35, 0, %s34
    %s37 = ssub.s32 %s17, %s36
    %s38 = ssub.s32 %s19, %s28
    %s39 = sor.u32 %s37, %s38
    %p40 = scmp.eq.s32.totalorder %s39, 0
    %s42 = sadd.s32 %s41, 1
    %s43 = scalar_select %p40, %s41, %s42
    %p46 = pneg %p40
    %p47 = scmp.eq.s32.totalorder %s10, 1
    %p48 = por %p46, %p47
    %p49 = scmp.ne.s32.totalorder %s41, %s44
    %p50 = scmp.eq.s32.totalorder %s10, 0
    %p51 = por %p49, %p50
    %p52 = scmp.ne.s32.totalorder %s41, %s44
    %p53 = scmp.eq.s32.totalorder %s15, 1
    %p54 = por %p52, %p53
    %p55 = scmp.ne.s32.totalorder %s44, %s45
    %p56 = scmp.eq.s32.totalorder %s15, 0
    %p57 = por %p55, %p56
    %p58 = scmp.ne.s32.totalorder %s44, %s45
    %p59 = scmp.eq.s32.totalorder %s16, 1
    %p60 = por %p58, %p59
    %p62 = scmp.ne.s32.totalorder %s45, %s61
    %p63 = scmp.eq.s32.totalorder %s16, 0
    %p64 = por %p62, %p63
    %s65 = ssub.s32 %s19, %s28
    %s66 = ssub.s32 %s18, %s32
    %s67 = sor.u32 %s65, %s66
    %p68 = scmp.eq.s32.totalorder %s67, 0
    %s70 = sadd.s32 %s69, 1
    %s71 = scalar_select %p68, %s69, %s70
    %p74 = pneg %p68
    %p75 = scmp.eq.s32.totalorder %s10, 1
    %p76 = por %p74, %p75
    %p77 = scmp.ne.s32.totalorder %s69, %s72
    %p78 = scmp.eq.s32.totalorder %s10, 0
    %p79 = por %p77, %p78
    %p80 = scmp.ne.s32.totalorder %s69, %s72
    %p81 = scmp.eq.s32.totalorder %s15, 1
    %p82 = por %p80, %p81
    %p83 = scmp.ne.s32.totalorder %s72, %s73
    %p84 = scmp.eq.s32.totalorder %s15, 0
    %p85 = por %p83, %p84
    %p86 = scmp.ne.s32.totalorder %s72, %s73
    %p87 = scmp.eq.s32.totalorder %s16, 1
    %p88 = por %p86, %p87
    %p90 = scmp.ne.s32.totalorder %s73, %s89
    %p91 = scmp.eq.s32.totalorder %s16, 0
    %p92 = por %p90, %p91
    %s93 = ssub.s32 %s18, %s32
    %p94 = scmp.eq.s32.totalorder %s93, 0
    %s96 = sadd.s32 %s95, 1
    %s97 = scalar_select %p94, %s95, %s96
    %p100 = pneg %p94
    %p101 = scmp.eq.s32.totalorder %s10, 1
    %p102 = por %p100, %p101
    %p103 = scmp.ne.s32.totalorder %s95, %s98
    %p104 = scmp.eq.s32.totalorder %s10, 0
    %p105 = por %p103, %p104
    %p106 = scmp.ne.s32.totalorder %s95, %s98
    %p107 = scmp.eq.s32.totalorder %s15, 1
    %p108 = por %p106, %p107
    %p109 = scmp.ne.s32.totalorder %s98, %s99
    %p110 = scmp.eq.s32.totalorder %s15, 0
    %p111 = por %p109, %p110
    %p112 = scmp.ne.s32.totalorder %s98, %s99
    %p113 = scmp.eq.s32.totalorder %s16, 1
    %p114 = por %p112, %p113
    %p116 = scmp.ne.s32.totalorder %s99, %s115
    %p117 = scmp.eq.s32.totalorder %s16, 0
    %p118 = por %p116, %p117
    %s119 = ssub.s32 %s18, %s32
    %p120 = scmp.eq.s32.totalorder %s119, 0
    %s122 = sadd.s32 %s121, 1
    %s123 = scalar_select %p120, %s121, %s122
    %p126 = pneg %p120
    %p127 = scmp.eq.s32.totalorder %s10, 1
    %p128 = por %p126, %p127
    %p129 = scmp.ne.s32.totalorder %s121, %s124
    %p130 = scmp.eq.s32.totalorder %s10, 0
    %p131 = por %p129, %p130
    %p132 = scmp.ne.s32.totalorder %s121, %s124
    %p133 = scmp.eq.s32.totalorder %s15, 1
    %p134 = por %p132, %p133
    %p135 = scmp.ne.s32.totalorder %s124, %s125
    %p136 = scmp.eq.s32.totalorder %s15, 0
    %p137 = por %p135, %p136
    %p138 = scmp.ne.s32.totalorder %s124, %s125
    %p139 = scmp.eq.s32.totalorder %s16, 1
    %p140 = por %p138, %p139
    %p142 = scmp.ne.s32.totalorder %s125, %s141
    %p143 = scmp.eq.s32.totalorder %s16, 0
    %p144 = por %p142, %p143
    %s145 = ssub.s32 %s17, %s36
    %s146 = ssub.s32 %s18, %s32
    %s147 = sor.u32 %s145, %s146
    %p148 = scmp.eq.s32.totalorder %s147, 0
    %s150 = sadd.s32 %s149, 1
    %s151 = scalar_select %p148, %s149, %s150
    %p154 = pneg %p148
    %p155 = scmp.eq.s32.totalorder %s10, 1
    %p156 = por %p154, %p155
    %p157 = scmp.ne.s32.totalorder %s149, %s152
    %p158 = scmp.eq.s32.totalorder %s10, 0
    %p159 = por %p157, %p158
    %p160 = scmp.ne.s32.totalorder %s149, %s152
    %p161 = scmp.eq.s32.totalorder %s15, 1
    %p162 = por %p160, %p161
    %p163 = scmp.ne.s32.totalorder %s152, %s153
    %p164 = scmp.eq.s32.totalorder %s15, 0
    %p165 = por %p163, %p164
    %p166 = scmp.ne.s32.totalorder %s152, %s153
    %p167 = scmp.eq.s32.totalorder %s16, 1
    %p168 = por %p166, %p167
    %p170 = scmp.ne.s32.totalorder %s153, %s169
    %p171 = scmp.eq.s32.totalorder %s16, 0
    %p172 = por %p170, %p171
    %p173 = scmp.le.s32.totalorder 1, %s10
    %p174 = scmp.lt.s32.totalorder %s10, 3
    %p175 = pnand %p173, %p174
    %p176 = pneg %p175
    // Predicated region
    $region9: #{gpt2_transformer_forward.12} parent=5 // pred_check
      _
    $region10: #{gpt2_transformer_forward.12} parent=5 // pred_check_branch
      %178 = sbr.rel (%p175) target = $region12
    $region11: #{gpt2_transformer_forward.12} parent=5 // pred_region
      %s179 = ssub.s32 %s10, 1
      // Predicated region
      $region13: #{gpt2_transformer_forward.12} parent=11 // pred_check
        %p180 = pneg %p85
      $region14: #{gpt2_transformer_forward.12} parent=11 // pred_check_branch
        %182 = sbr.rel (%p180) target = $region16
      $region15: #{gpt2_transformer_forward.12} parent=11 // pred_region
        %p183 = scmp.lt.s32.totalorder %s22, 0
        %s184 = scalar_select %p183, %s22, 0
        %p185 = scmp.lt.s32.totalorder %s21, 0
        %s186 = scalar_select %p185, %s21, 0
        %s187 = sadd.s32 %s186, %s184
        %s188 = smul.addr %s187, 2
        %s189 = scalar_lea.vmem %s1, %s188
      $region16: #{gpt2_transformer_forward.12} parent=11 // pred_fallthru
        _
      // Predicated region
      $region17: #{gpt2_transformer_forward.12} parent=11 // pred_check
        %p190 = pneg %p111
      $region18: #{gpt2_transformer_forward.12} parent=11 // pred_check_branch
        %192 = sbr.rel (%p190) target = $region20
      $region19: #{gpt2_transformer_forward.12} parent=11 // pred_region
        %p193 = scmp.lt.s32.totalorder %s21, 0
        %s194 = scalar_select %p193, %s21, 0
        %s195 = scalar_lea.vmem %s2, %s194
      $region20: #{gpt2_transformer_forward.12} parent=11 // pred_fallthru
        _
      // Predicated region
      $region21: #{gpt2_transformer_forward.12} parent=11 // pred_check
        %p196 = pneg %p137
      $region22: #{gpt2_transformer_forward.12} parent=11 // pred_check_branch
        %198 = sbr.rel (%p196) target = $region24
      $region23: #{gpt2_transformer_forward.12} parent=11 // pred_region
        %p199 = scmp.lt.s32.totalorder %s21, 0
        %s200 = scalar_select %p199, %s21, 0
        %s201 = smul.addr %s200, 8
        %s202 = scalar_lea.vmem %s3, %s201
      $region24: #{gpt2_transformer_forward.12} parent=11 // pred_fallthru
        _
    $region12: #{gpt2_transformer_forward.12} parent=5 // pred_fallthru
      _
    %p203 = scmp.lt.s32.totalorder %s10, 2
    // Predicated region
    $region25: #{gpt2_transformer_forward.12} parent=5 // pred_check
      %p204 = pneg %p203
    $region26: #{gpt2_transformer_forward.12} parent=5 // pred_check_branch
      %206 = sbr.rel (%p204) target = $region28
    $region27: #{gpt2_transformer_forward.12} parent=5 // pred_region
      // Predicated region
      $region29: #{gpt2_transformer_forward.12} parent=27 // pred_check
        %p207 = pneg %p51
      $region30: #{gpt2_transformer_forward.12} parent=27 // pred_check_branch
        %209 = sbr.rel (%p207) target = $region32
      $region31: #{gpt2_transformer_forward.12} parent=27 // pred_region
        %s210 = smul.u32 2, %s17
        %p211 = scmp.lt.s32.totalorder %s210, 3
        %s212 = scalar_select %p211, %s210, 3
        %p213 = scmp.lt.s32.totalorder %s19, 0
        %s214 = scalar_select %p213, %s19, 0
        %s215 = sadd.s32 %s214, %s212
        %s216 = smul.addr %s215, 8
        %s217 = scalar_lea.vmem %s0, %s216
        %s218 = smul.u32 2, %s17
      $region32: #{gpt2_transformer_forward.12} parent=27 // pred_fallthru
        _
    $region28: #{gpt2_transformer_forward.12} parent=5 // pred_fallthru
      _
    %p219 = scmp.le.s32.totalorder 1, %s10
    %p220 = scmp.lt.s32.totalorder %s10, 3
    %p221 = pnand %p219, %p220
    %p222 = pneg %p221
    // Predicated region
    $region33: #{gpt2_transformer_forward.12} parent=5 // pred_check
      _
    $region34: #{gpt2_transformer_forward.12} parent=5 // pred_check_branch
      %224 = sbr.rel (%p221) target = $region36
    $region35: #{gpt2_transformer_forward.12} parent=5 // pred_region
      %s225 = ssub.s32 %s10, 1
      %s226 = smul.u32 2, %s20
      %p227 = scmp.lt.s32.totalorder %s226, 3
      %s228 = scalar_select %p227, %s226, 3
      %p229 = scmp.lt.s32.totalorder %s22, 0
      %s230 = scalar_select %p229, %s22, 0
      %s231 = sadd.s32 %s230, %s228
      %s232 = smul.addr %s231, 8
      %s233 = scalar_lea.vmem %s0, %s232
      %p234 = pneg %p57
      %p235 = pneg %p54
      %p236 = scmp.lt.s32.totalorder %s22, 0
      %s237 = scalar_select %p236, %s22, 0
      %p238 = scmp.lt.s32.totalorder %s21, 0
      %s239 = scalar_select %p238, %s21, 0
      %s240 = sadd.s32 %s239, %s237
      %s241 = smul.addr %s240, 2
      %s242 = scalar_lea.vmem %s1, %s241
      %p243 = pneg %p85
      %p244 = pneg %p82
      %p245 = scmp.lt.s32.totalorder %s21, 0
      %s246 = scalar_select %p245, %s21, 0
      %s247 = scalar_lea.vmem %s2, %s246
      %p248 = pneg %p111
      %p249 = pneg %p108
      %p250 = scmp.lt.s32.totalorder %s21, 0
      %s251 = scalar_select %p250, %s21, 0
      %s252 = smul.addr %s251, 8
      %s253 = scalar_lea.vmem %s3, %s252
      %p254 = pneg %p137
      %p255 = pneg %p134
      %p256 = pneg %p165
      %p257 = pneg %p162
      %s258 = smul.u32 2, %s20
      %p259 = scmp.lt.s32.totalorder %s258, 3
      %s260 = scalar_select %p259, %s258, 3
      %p261 = scmp.lt.s32.totalorder %s21, 0
      %s262 = scalar_select %p261, %s21, 0
      %s263 = sadd.s32 %s262, %s260
      %s264 = smul.addr %s263, 8
      %s265 = scalar_lea.vmem %s4, %s264
      %s266 = smul.u32 2, %s20
      %p267 = scmp.lt.s32.totalorder %s266, 3
      %s268 = scalar_select %p267, %s266, 3
      %p269 = scmp.lt.s32.totalorder %s22, 0
      %s270 = scalar_select %p269, %s22, 0
      %s271 = sadd.s32 %s270, %s268
      %s272 = smul.addr %s271, 8
      %s273 = scalar_lea.vmem %s0, %s272
      %s274 = smul.u32 2, %s20
      %p275 = scmp.lt.s32.totalorder %s22, 0
      %s276 = scalar_select %p275, %s22, 0
      %p277 = scmp.lt.s32.totalorder %s21, 0
      %s278 = scalar_select %p277, %s21, 0
      %s279 = sadd.s32 %s278, %s276
      %s280 = smul.addr %s279, 2
      %s281 = scalar_lea.vmem %s1, %s280
      %p282 = scmp.lt.s32.totalorder %s21, 0
      %s283 = scalar_select %p282, %s21, 0
      %s284 = scalar_lea.vmem %s2, %s283
      %p285 = scmp.lt.s32.totalorder %s21, 0
      %s286 = scalar_select %p285, %s21, 0
      %s287 = smul.addr %s286, 8
      %s288 = scalar_lea.vmem %s3, %s287
      %s289 = smul.u32 2, %s20
      %p290 = scmp.lt.s32.totalorder %s289, 3
      %s291 = scalar_select %p290, %s289, 3
      %p292 = scmp.lt.s32.totalorder %s21, 0
      %s293 = scalar_select %p292, %s21, 0
      %s294 = sadd.s32 %s293, %s291
      %s295 = smul.addr %s294, 8
      %s296 = scalar_lea.vmem %s4, %s295
      %s297 = smul.u32 2, %s20
      %p299 = scmp.eq.s32.totalorder %s22, 0
      // Predicated region
      $region37: #{gpt2_transformer_forward.12} parent=35 // pred_check
        %p300 = pneg %p299
      $region38: #{gpt2_transformer_forward.12} parent=35 // pred_check_branch
        %302 = sbr.rel (%p300) target = $region40
      $region39: #{gpt2_transformer_forward.12} parent=35 // pred_region
        %vm303 = vcmask 261120
        %304 = vst.msk [vmem:[#allocation2] sm:$0xff] %vm303, 0.0
        %305 = vst.msk [vmem:[#allocation2 + $0x8] sm:$0xff] %vm303, 0.0
      $region40: #{gpt2_transformer_forward.12} parent=35 // pred_fallthru
        _
      %v306 = vld [vmem:[#allocation2] sm:$0xff]
      %v307 = vld [vmem:[#allocation2 + $0x8] sm:$0xff]
      %v308 = vld [vmem:[%s273] sm:$0xff]
      %v309 = vld [vmem:[%s273 + $0x8] sm:$0xff]
      %v310 = vpack.c.bf16 %v309, %v308
      %v311 = vld [vmem:[%s281] sm:$0x3]
      %vm312 = vcmask 31744
      %v314 = vsel %vm312, %v310, 0
      %vm316 = vcmask 1041408
      %v318 = vsel %vm316, %v311, 0
      %320 = vmatpush.bf16.msra.mxu0 0
      %321 = vmatpush.bf16.msra.mxu0 0
      %322 = vmatpush.bf16.msra.mxu0 0
      %323 = vmatpush.bf16.msra.mxu0 0
      %324 = vmatpush.bf16.msra.mxu0 0
      %325 = vmatpush.bf16.msra.mxu0 0
      %326 = vmatpush.bf16.msra.mxu0 0
      %327 = vmatpush.bf16.msra.mxu0 %v318
      %328 = vmatmul.bf16.gmra.mxu0 %v314
      %v329 = vpop.f32.mrf.mxu0
      %v330 = vadd.f32 0.0, %v329
      %v331 = vpop.f32.mrf.mxu0
      %v332 = vadd.f32 0.0, %v331
      %333 = vdwg.mxu0
      %v334 = vadd.f32 %v306, %v330
      %v335 = vadd.f32 %v307, %v332
      %vm336 = vcmask 261120
      %337 = vst.msk [vmem:[#allocation2] sm:$0xff] %vm336, %v334
      %338 = vst.msk [vmem:[#allocation2 + $0x8] sm:$0xff] %vm336, %v335
      // Predicated region
      $region41: #{gpt2_transformer_forward.12} parent=35 // pred_check
        %p339 = pneg %p299
      $region42: #{gpt2_transformer_forward.12} parent=35 // pred_check_branch
        %341 = sbr.rel (%p339) target = $region44
      $region43: #{gpt2_transformer_forward.12} parent=35 // pred_region
        %v342 = vld [vmem:[#allocation2] sm:$0xff]
        %v343 = vld [vmem:[#allocation2 + $0x8] sm:$0xff]
        %v344 = vld [vmem:[%s284] sm:$0x1]
        %v346 = vperm.slane %v344, 0
        %v348 = vadd.f32 %v342, %v346
        %v349 = vadd.f32 %v343, %v346
        %v350 = vld [vmem:[%s288] sm:$0xff]
        %v351 = vld [vmem:[%s288 + $0x8] sm:$0xff]
        %v352 = vadd.f32 %v348, %v350
        %v353 = vadd.f32 %v349, %v351
        %354 = vst.msk [vmem:[%s296] sm:$0xff] %vm336, %v352
        %355 = vst.msk [vmem:[%s296 + $0x8] sm:$0xff] %vm336, %v353
      $region44: #{gpt2_transformer_forward.12} parent=35 // pred_fallthru
        _
      %s356 = smul.u32 2, %s20
      %p357 = scmp.lt.s32.totalorder %s356, 3
      %s358 = scalar_select %p357, %s356, 3
      %p359 = scmp.lt.s32.totalorder %s21, 0
      %s360 = scalar_select %p359, %s21, 0
      %s361 = sadd.s32 %s360, %s358
      %s362 = smul.addr %s361, 8
      %s363 = scalar_lea.vmem %s4, %s362
      // Predicated region
      $region45: #{gpt2_transformer_forward.12} parent=35 // pred_check
        %p364 = pneg %p162
      $region46: #{gpt2_transformer_forward.12} parent=35 // pred_check_branch
        %366 = sbr.rel (%p364) target = $region48
      $region47: #{gpt2_transformer_forward.12} parent=35 // pred_region
        %s367 = smul.u32 2, %s20
      $region48: #{gpt2_transformer_forward.12} parent=35 // pred_fallthru
        _
    $region36: #{gpt2_transformer_forward.12} parent=5 // pred_fallthru
      _
    %p368 = scmp.le.s32.totalorder 2, %s10
    // Predicated region
    $region49: #{gpt2_transformer_forward.12} parent=5 // pred_check
      %p369 = pneg %p368
    $region50: #{gpt2_transformer_forward.12} parent=5 // pred_check_branch
      %371 = sbr.rel (%p369) target = $region52
    $region51: #{gpt2_transformer_forward.12} parent=5 // pred_region
      %s372 = ssub.s32 %s10, 2
      // Predicated region
      $region53: #{gpt2_transformer_forward.12} parent=51 // pred_check
        %p373 = pneg %p168
      $region54: #{gpt2_transformer_forward.12} parent=51 // pred_check_branch
        %375 = sbr.rel (%p373) target = $region56
      $region55: #{gpt2_transformer_forward.12} parent=51 // pred_region
        %s376 = smul.u32 2, %s23
        %p377 = scmp.lt.s32.totalorder %s376, 3
        %s378 = scalar_select %p377, %s376, 3
        %p379 = scmp.lt.s32.totalorder %s24, 0
        %s380 = scalar_select %p379, %s24, 0
        %s381 = sadd.s32 %s380, %s378
        %s382 = smul.addr %s381, 8
        %s383 = scalar_lea.vmem %s4, %s382
      $region56: #{gpt2_transformer_forward.12} parent=51 // pred_fallthru
        _
    $region52: #{gpt2_transformer_forward.12} parent=5 // pred_fallthru
      _
  $region6: #{gpt2_transformer_forward.12} parent=0 // loop_footer
    %s14 = sadd.s32 1, %s10
  $region7: #{gpt2_transformer_forward.12} parent=0 // loop_footer_branch
    %9 = sbr.rel target = $region3
  $region8: #{gpt2_transformer_forward.12} parent=0 // loop_exit
    _

// kernel: gpt2_transformer_forward.14
$region0: #{gpt2_transformer_forward.14}
  #allocation0 [shape = 'u32[]', space=smem, size = 0x4, offset = 0x4, fixed_abs, tag = 'smem constant byte address 0x4 - core index']
  #allocation1 [shape = 'u32[72,128]{1,0:T(1,128)}', space=vmem, size = 0x9000, scoped, tag = 'internal scratch']
  %s0 = inlined_call_operand.vmem [shape: f32[32,96], index: 0, kind: input, shape index: {}]
  %s1 = inlined_call_operand.hbm [shape: f32[16,16], index: 1, kind: input, shape index: {}]
  %s2 = inlined_call_operand.vmem [shape: f32[32,32], index: 2, kind: output, shape index: {}]
  %s3 = sld [smem:[#allocation0]]
  $region45: #{gpt2_transformer_forward.14} parent=0
    _
  %s5 = ssub.s32 1, %s3
  %s6 = scalar_select 0, %s5, %s3
  $region1: #{gpt2_transformer_forward.14} parent=0
    #allocation2 [shape = 'u8[8192]{0}', space=vmem, size = 0x2000, scoped, tag = 'input window, operand 1, single buffered']
    #allocation3 [shape = 's32[2]{0}', space=sflag, size = 0x8, scoped, tag = 'scoped memory for gpt2_transformer_forward.14']
    %7 = vsyncpa [#allocation3], 0
    loop: start=0, step=1, limit=4
    $region2: #{gpt2_transformer_forward.14} parent=1 // loop_pre_header
      _
    $region3: #{gpt2_transformer_forward.14} parent=1 // loop_header
      %s9 = sphi 0, %s13
      %p10 = scmp.ge.s32.totalorder %s9, 4
      %s19 = sphi 0, %s21
      %s22 = sphi 0, %s19
      %s23 = sphi 0, %s22
      %s39 = sphi 0, %s23
      %s43 = sphi 0, %s43
      %s45 = sphi 0, %s43
      %s46 = sphi 0, %s45
      %s60 = sphi 0, %s46
      %s66 = sphi 0, %s68
      %s69 = sphi 0, %s66
      %s70 = sphi 0, %s69
      %s86 = sphi 0, %s70
    $region4: #{gpt2_transformer_forward.14} parent=1 // loop_header_branch
      %12 = sbr.rel (%p10) target = $region8
    $region5: #{gpt2_transformer_forward.14} parent=1 // loop_body
      %s14 = ssub.s32 %s9, 1
      %s15 = ssub.s32 %s9, 2
      %s16 = sadd.s32 %s9, 1
      %s17 = ssub.s32 %s9, %s16
      %p18 = scmp.eq.s32.totalorder %s17, 0
      %s20 = sadd.s32 %s19, 1
      %s21 = scalar_select %p18, %s19, %s20
      %p24 = pneg %p18
      %p25 = scmp.eq.s32.totalorder %s9, 1
      %p26 = por %p24, %p25
      %p27 = scmp.ne.s32.totalorder %s19, %s22
      %p28 = scmp.eq.s32.totalorder %s9, 0
      %p29 = por %p27, %p28
      %p30 = scmp.ne.s32.totalorder %s19, %s22
      %p31 = scmp.eq.s32.totalorder %s14, 1
      %p32 = por %p30, %p31
      %p33 = scmp.ne.s32.totalorder %s22, %s23
      %p34 = scmp.eq.s32.totalorder %s14, 0
      %p35 = por %p33, %p34
      %p36 = scmp.ne.s32.totalorder %s22, %s23
      %p37 = scmp.eq.s32.totalorder %s15, 1
      %p38 = por %p36, %p37
      %p40 = scmp.ne.s32.totalorder %s23, %s39
      %p41 = scmp.eq.s32.totalorder %s15, 0
      %p42 = por %p40, %p41
      %s44 = sadd.s32 %s43, 1
      %p47 = scmp.eq.s32.totalorder %s9, 1
      %p48 = scmp.ne.s32.totalorder %s43, %s45
      %p49 = scmp.eq.s32.totalorder %s9, 0
      %p50 = por %p48, %p49
      %p51 = scmp.ne.s32.totalorder %s43, %s45
      %p52 = scmp.eq.s32.totalorder %s14, 1
      %p53 = por %p51, %p52
      %p54 = scmp.ne.s32.totalorder %s45, %s46
      %p55 = scmp.eq.s32.totalorder %s14, 0
      %p56 = por %p54, %p55
      %p57 = scmp.ne.s32.totalorder %s45, %s46
      %p58 = scmp.eq.s32.totalorder %s15, 1
      %p59 = por %p57, %p58
      %p61 = scmp.ne.s32.totalorder %s46, %s60
      %p62 = scmp.eq.s32.totalorder %s15, 0
      %p63 = por %p61, %p62
      %s64 = ssub.s32 %s9, %s16
      %p65 = scmp.eq.s32.totalorder %s64, 0
      %s67 = sadd.s32 %s66, 1
      %s68 = scalar_select %p65, %s66, %s67
      %p71 = pneg %p65
      %p72 = scmp.eq.s32.totalorder %s9, 1
      %p73 = por %p71, %p72
      %p74 = scmp.ne.s32.totalorder %s66, %s69
      %p75 = scmp.eq.s32.totalorder %s9, 0
      %p76 = por %p74, %p75
      %p77 = scmp.ne.s32.totalorder %s66, %s69
      %p78 = scmp.eq.s32.totalorder %s14, 1
      %p79 = por %p77, %p78
      %p80 = scmp.ne.s32.totalorder %s69, %s70
      %p81 = scmp.eq.s32.totalorder %s14, 0
      %p82 = por %p80, %p81
      %p83 = scmp.ne.s32.totalorder %s69, %s70
      %p84 = scmp.eq.s32.totalorder %s15, 1
      %p85 = por %p83, %p84
      %p87 = scmp.ne.s32.totalorder %s70, %s86
      %p88 = scmp.eq.s32.totalorder %s15, 0
      %p89 = por %p87, %p88
      %p90 = scmp.le.s32.totalorder 1, %s9
      %p91 = scmp.lt.s32.totalorder %s9, 3
      %p92 = pnand %p90, %p91
      %p93 = pneg %p92
      // Predicated region
      $region9: #{gpt2_transformer_forward.14} parent=5 // pred_check
        _
      $region10: #{gpt2_transformer_forward.14} parent=5 // pred_check_branch
        %95 = sbr.rel (%p92) target = $region12
      $region11: #{gpt2_transformer_forward.14} parent=5 // pred_region
        %s96 = ssub.s32 %s9, 1
        // Predicated region
        $region13: #{gpt2_transformer_forward.14} parent=11 // pred_check
          %p97 = pneg %p56
        $region14: #{gpt2_transformer_forward.14} parent=11 // pred_check_branch
          %99 = sbr.rel (%p97) target = $region16
        $region15: #{gpt2_transformer_forward.14} parent=11 // pred_region
          %101 = vsyncadd [#allocation3], 0
          %s102 = sshll.u32 %s1, 4
          %s103 = int_to_ptr.hbm [resolvable:$true] %s102
          %s104 = sshll.u32 [#allocation2], 4
          %s105 = int_to_ptr.vmem [resolvable:$true] %s104
          %110 = dma.hbm_to_vmem [thread:$0]  %s103, 256, %s105, [#allocation3], 128, 128, 8
        $region16: #{gpt2_transformer_forward.14} parent=11 // pred_fallthru
          _
      $region12: #{gpt2_transformer_forward.14} parent=5 // pred_fallthru
        _
      %p111 = scmp.lt.s32.totalorder %s9, 2
      // Predicated region
      $region17: #{gpt2_transformer_forward.14} parent=5 // pred_check
        %p112 = pneg %p111
      $region18: #{gpt2_transformer_forward.14} parent=5 // pred_check_branch
        %114 = sbr.rel (%p112) target = $region20
      $region19: #{gpt2_transformer_forward.14} parent=5 // pred_region
        // Predicated region
        $region21: #{gpt2_transformer_forward.14} parent=19 // pred_check
          %p115 = pneg %p29
        $region22: #{gpt2_transformer_forward.14} parent=19 // pred_check_branch
          %117 = sbr.rel (%p115) target = $region24
        $region23: #{gpt2_transformer_forward.14} parent=19 // pred_region
          %s118 = smul.u32 2, %s9
          %p119 = scmp.lt.s32.totalorder %s118, 3
          %s120 = scalar_select %p119, %s118, 3
          %s121 = smul.addr %s120, 8
          %s122 = scalar_lea.vmem %s0, %s121
          %s123 = smul.u32 2, %s9
        $region24: #{gpt2_transformer_forward.14} parent=19 // pred_fallthru
          _
      $region20: #{gpt2_transformer_forward.14} parent=5 // pred_fallthru
        _
      %p124 = scmp.le.s32.totalorder 1, %s9
      %p125 = scmp.lt.s32.totalorder %s9, 3
      %p126 = pnand %p124, %p125
      %p127 = pneg %p126
      // Predicated region
      $region25: #{gpt2_transformer_forward.14} parent=5 // pred_check
        _
      $region26: #{gpt2_transformer_forward.14} parent=5 // pred_check_branch
        %129 = sbr.rel (%p126) target = $region28
      $region27: #{gpt2_transformer_forward.14} parent=5 // pred_region
        %s130 = ssub.s32 %s9, 1
        // Predicated region
        $region29: #{gpt2_transformer_forward.14} parent=27 // pred_check
          %p131 = pneg %p56
        $region30: #{gpt2_transformer_forward.14} parent=27 // pred_check_branch
          %133 = sbr.rel (%p131) target = $region32
        $region31: #{gpt2_transformer_forward.14} parent=27 // pred_region
          %135 = dma.done [#allocation3], 256
        $region32: #{gpt2_transformer_forward.14} parent=27 // pred_fallthru
          _
        %s136 = smul.u32 2, %s14
        %p137 = scmp.lt.s32.totalorder %s136, 3
        %s138 = scalar_select %p137, %s136, 3
        %s139 = smul.addr %s138, 8
        %s140 = scalar_lea.vmem %s0, %s139
        %p141 = pneg %p35
        %p142 = pneg %p32
        %p143 = pneg %p56
        %p144 = pneg %p53
        %p145 = pneg %p82
        %p146 = pneg %p79
        %s147 = smul.u32 2, %s14
        %p148 = scmp.lt.s32.totalorder %s147, 3
        %s149 = scalar_select %p148, %s147, 3
        %s150 = smul.addr %s149, 8
        %s151 = scalar_lea.vmem %s2, %s150
        %s152 = smul.u32 2, %s14
        %p153 = scmp.lt.s32.totalorder %s152, 3
        %s154 = scalar_select %p153, %s152, 3
        %s155 = smul.addr %s154, 8
        %s156 = scalar_lea.vmem %s0, %s155
        %s157 = smul.u32 2, %s14
        %s158 = smul.u32 2, %s14
        %p159 = scmp.lt.s32.totalorder %s158, 3
        %s160 = scalar_select %p159, %s158, 3
        %s161 = smul.addr %s160, 8
        %s162 = scalar_lea.vmem %s2, %s161
        %s163 = smul.u32 2, %s14
        %v165 = vld [vmem:[%s156] sm:$0xff]
        %v166 = vld [vmem:[%s156 + $0x8] sm:$0xff]
        %v167 = vld [vmem:[#allocation2] sm:$0xff]
        %v168 = vld [vmem:[#allocation2 + $0x8] sm:$0xff]
        %v169 = vpack.c.bf16 %v166, %v165
        %171 = vrot.lane.b32.xlu0 %v169, 96
        %v172 = vpop.permute.xlu0 %171
        %vm173 = vcmask 130048
        %v175 = vsel %vm173, %v169, 0
        %v178 = vsel %vm173, %v172, 0
        %180 = vmatpush.bf16.xpose.msra.mxu0 0
        %181 = vmatpush.bf16.xpose.msra.mxu0 0
        %182 = vmatpush.bf16.xpose.msra.mxu0 0
        %183 = vmatpush.bf16.xpose.msra.mxu0 0
        %184 = vmatpush.bf16.xpose.msra.mxu0 0
        %185 = vmatpush.bf16.xpose.msra.mxu0 0
        %186 = vmatpush.bf16.xpose.msra.mxu0 0
        %187 = vmatpush.bf16.xpose.msra.mxu0 %v178
        %188 = vmatmul.bf16.gmra.mxu0 %v175
        %v189 = vpop.f32.mrf.mxu0
        %v190 = vadd.f32 %v167, %v189
        %v191 = vpop.f32.mrf.mxu0
        %v192 = vadd.f32 %v168, %v191
        %193 = vdwg.mxu0
        %v194 = vsel %vm173, %v190, -inf
        %195 = vmax.xlane.f32.xlu0 %v194
        %v196 = vpop.xlane.xlu0 %195
        %v197 = vsel %vm173, %v192, -inf
        %198 = vmax.xlane.f32.xlu0 %v197
        %v199 = vpop.xlane.xlu0 %198
        %v200 = vsub.f32 %v190, %v196
        %v201 = vsub.f32 %v192, %v199
        %v202 = vmul.f32 %v200, 1.442695
        %v203 = vpow.pop %v202
        %v204 = vmul.f32 %v201, 1.442695
        %v205 = vpow.pop %v204
        %v206 = vsel %vm173, %v203, 0.0
        %207 = vadd.xlane.f32.xlu0 %v206
        %v208 = vpop.xlane.xlu0 %207
        %v209 = vsel %vm173, %v205, 0.0
        %210 = vadd.xlane.f32.xlu0 %v209
        %v211 = vpop.xlane.xlu0 %210
        %v212 = vrcp.pop %v208
        %v213 = vrcp.pop %v211
        %v214 = vmul.f32 %v203, %v212
        %v215 = vmul.f32 %v205, %v213
        %v216 = vpack.c.bf16 %v215, %v214
        %217 = vrot.lane.b32.xlu0 %v169, 64
        %v218 = vpop.permute.xlu0 %217
        %v221 = vsel %vm173, %v216, 0
        %223 = vmatpush.bf16.msra.mxu0 0
        %224 = vmatpush.bf16.msra.mxu0 0
        %225 = vmatpush.bf16.msra.mxu0 0
        %226 = vmatpush.bf16.msra.mxu0 0
        %227 = vmatpush.bf16.msra.mxu0 0
        %228 = vmatpush.bf16.msra.mxu0 0
        %229 = vmatpush.bf16.msra.mxu0 0
        %230 = vmatpush.bf16.msra.mxu0 %v218
        %231 = vmatmul.bf16.gmra.mxu0 %v221
        %v232 = vpop.f32.mrf.mxu0
        %v233 = vadd.f32 0.0, %v232
        %v234 = vpop.f32.mrf.mxu0
        %v235 = vadd.f32 0.0, %v234
        %236 = vdwg.mxu0
        %237 = vrot.lane.b32.xlu0 %v169, 112
        %v238 = vpop.permute.xlu0 %237
        %239 = vrot.lane.b32.xlu0 %v169, 80
        %v240 = vpop.permute.xlu0 %239
        %v242 = vsel %vm173, %v238, 0
        %v245 = vsel %vm173, %v240, 0
        %247 = vmatpush.bf16.xpose.msra.mxu0 0
        %248 = vmatpush.bf16.xpose.msra.mxu0 0
        %249 = vmatpush.bf16.xpose.msra.mxu0 0
        %250 = vmatpush.bf16.xpose.msra.mxu0 0
        %251 = vmatpush.bf16.xpose.msra.mxu0 0
        %252 = vmatpush.bf16.xpose.msra.mxu0 0
        %253 = vmatpush.bf16.xpose.msra.mxu0 0
        %254 = vmatpush.bf16.xpose.msra.mxu0 %v245
        %255 = vmatmul.bf16.gmra.mxu0 %v242
        %v256 = vpop.f32.mrf.mxu0
        %v257 = vadd.f32 %v167, %v256
        %v258 = vpop.f32.mrf.mxu0
        %v259 = vadd.f32 %v168, %v258
        %260 = vdwg.mxu0
        %v261 = vsel %vm173, %v257, -inf
        %262 = vmax.xlane.f32.xlu0 %v261
        %v263 = vpop.xlane.xlu0 %262
        %v264 = vsel %vm173, %v259, -inf
        %265 = vmax.xlane.f32.xlu0 %v264
        %v266 = vpop.xlane.xlu0 %265
        %v267 = vsub.f32 %v257, %v263
        %v268 = vsub.f32 %v259, %v266
        %v269 = vmul.f32 %v267, 1.442695
        %v270 = vpow.pop %v269
        %v271 = vmul.f32 %v268, 1.442695
        %v272 = vpow.pop %v271
        %v273 = vsel %vm173, %v270, 0.0
        %274 = vadd.xlane.f32.xlu0 %v273
        %v275 = vpop.xlane.xlu0 %274
        %v276 = vsel %vm173, %v272, 0.0
        %277 = vadd.xlane.f32.xlu0 %v276
        %v278 = vpop.xlane.xlu0 %277
        %v279 = vrcp.pop %v275
        %v280 = vrcp.pop %v278
        %v281 = vmul.f32 %v270, %v279
        %v282 = vmul.f32 %v272, %v280
        %v283 = vpack.c.bf16 %v282, %v281
        %284 = vrot.lane.b32.xlu0 %v169, 48
        %v285 = vpop.permute.xlu0 %284
        %v288 = vsel %vm173, %v283, 0
        %290 = vmatpush.bf16.msra.mxu0 0
        %291 = vmatpush.bf16.msra.mxu0 0
        %292 = vmatpush.bf16.msra.mxu0 0
        %293 = vmatpush.bf16.msra.mxu0 0
        %294 = vmatpush.bf16.msra.mxu0 0
        %295 = vmatpush.bf16.msra.mxu0 0
        %296 = vmatpush.bf16.msra.mxu0 0
        %297 = vmatpush.bf16.msra.mxu0 %v285
        %298 = vmatmul.bf16.gmra.mxu0 %v288
        %v299 = vpop.f32.mrf.mxu0
        %v300 = vadd.f32 0.0, %v299
        %v301 = vpop.f32.mrf.mxu0
        %v302 = vadd.f32 0.0, %v301
        %303 = vdwg.mxu0
        %306 = vrot.lane.b32.xlu0 %v300, 16
        %v307 = vpop.permute.xlu0 %306
        %308 = vrot.lane.b32.xlu0 %v302, 16
        %v309 = vpop.permute.xlu0 %308
        %v312 = vsel %vm173, %v233, %v307
        %v313 = vsel %vm173, %v235, %v309
        %vm314 = vcmask 261120
        %315 = vst.msk [vmem:[%s162] sm:$0xff] %vm314, %v312
        %316 = vst.msk [vmem:[%s162 + $0x8] sm:$0xff] %vm314, %v313
        %s317 = smul.u32 2, %s14
        %p318 = scmp.lt.s32.totalorder %s317, 3
        %s319 = scalar_select %p318, %s317, 3
        %s320 = smul.addr %s319, 8
        %s321 = scalar_lea.vmem %s2, %s320
        // Predicated region
        $region33: #{gpt2_transformer_forward.14} parent=27 // pred_check
          %p322 = pneg %p79
        $region34: #{gpt2_transformer_forward.14} parent=27 // pred_check_branch
          %324 = sbr.rel (%p322) target = $region36
        $region35: #{gpt2_transformer_forward.14} parent=27 // pred_region
          %s325 = smul.u32 2, %s14
        $region36: #{gpt2_transformer_forward.14} parent=27 // pred_fallthru
          _
      $region28: #{gpt2_transformer_forward.14} parent=5 // pred_fallthru
        _
      %p326 = scmp.le.s32.totalorder 2, %s9
      // Predicated region
      $region37: #{gpt2_transformer_forward.14} parent=5 // pred_check
        %p327 = pneg %p326
      $region38: #{gpt2_transformer_forward.14} parent=5 // pred_check_branch
        %329 = sbr.rel (%p327) target = $region40
      $region39: #{gpt2_transformer_forward.14} parent=5 // pred_region
        %s330 = ssub.s32 %s9, 2
        // Predicated region
        $region41: #{gpt2_transformer_forward.14} parent=39 // pred_check
          %p331 = pneg %p85
        $region42: #{gpt2_transformer_forward.14} parent=39 // pred_check_branch
          %333 = sbr.rel (%p331) target = $region44
        $region43: #{gpt2_transformer_forward.14} parent=39 // pred_region
          %s334 = smul.u32 2, %s15
          %p335 = scmp.lt.s32.totalorder %s334, 3
          %s336 = scalar_select %p335, %s334, 3
          %s337 = smul.addr %s336, 8
          %s338 = scalar_lea.vmem %s2, %s337
        $region44: #{gpt2_transformer_forward.14} parent=39 // pred_fallthru
          _
      $region40: #{gpt2_transformer_forward.14} parent=5 // pred_fallthru
        _
    $region6: #{gpt2_transformer_forward.14} parent=1 // loop_footer
      %s13 = sadd.s32 1, %s9
    $region7: #{gpt2_transformer_forward.14} parent=1 // loop_footer_branch
      %8 = sbr.rel target = $region3
    $region8: #{gpt2_transformer_forward.14} parent=1 // loop_exit
      _
    %339 = vsyncpa [#allocation3], 1
    %s340 = scalar_lea.sflag [#allocation3], 1
    %341 = vsyncpa %s340, 1

// kernel: gpt2_transformer_forward.15
$region0: #{gpt2_transformer_forward.15}
  #allocation0 [shape = 'u32[]', space=smem, size = 0x4, offset = 0x4, fixed_abs, tag = 'smem constant byte address 0x4 - core index']
  #allocation1 [shape = 'u32[72,128]{1,0:T(1,128)}', space=vmem, size = 0x9000, scoped, tag = 'internal scratch']
  #allocation2 [shape = 'f32[32,32]{1,0:T(8,128)}', space=vmem, size = 0x4000, scoped, tag = 'scratch operand']
  %s0 = inlined_call_operand.vmem [shape: f32[32,32], index: 0, kind: input, shape index: {}]
  %s1 = inlined_call_operand.hbm [shape: bf16[32,32], index: 1, kind: input, shape index: {}]
  %s2 = inlined_call_operand.vmem [shape: f32[1,32], index: 2, kind: input, shape index: {}]
  %s3 = inlined_call_operand.vmem [shape: f32[32,32], index: 3, kind: input, shape index: {}]
  %s4 = inlined_call_operand.vmem [shape: f32[32,32], index: 4, kind: output, shape index: {}]
  %s5 = sld [smem:[#allocation0]]
  $region38: #{gpt2_transformer_forward.15} parent=0
    _
  %s7 = ssub.s32 1, %s5
  %s8 = scalar_select 0, %s7, %s5
  $region1: #{gpt2_transformer_forward.15} parent=0
    #allocation3 [shape = 'u8[8192]{0}', space=vmem, size = 0x2000, scoped, tag = 'input window, operand 1, single buffered']
    #allocation4 [shape = 's32[1]{0}', space=sflag, size = 0x4, scoped, tag = 'scoped memory for gpt2_transformer_forward.15']
    %9 = vsyncpa [#allocation4], 0
    // Predicated region
    $region2: #{gpt2_transformer_forward.15} parent=1 // pred_check
      _
    $region3: #{gpt2_transformer_forward.15} parent=1 // pred_check_branch
      %11 = sbr.rel (0) target = $region5
    $region4: #{gpt2_transformer_forward.15} parent=1 // pred_region
      _
    $region5: #{gpt2_transformer_forward.15} parent=1 // pred_fallthru
      _
    // Predicated region
    $region6: #{gpt2_transformer_forward.15} parent=1 // pred_check
      _
    $region7: #{gpt2_transformer_forward.15} parent=1 // pred_check_branch
      %13 = sbr.rel (0) target = $region9
    $region8: #{gpt2_transformer_forward.15} parent=1 // pred_region
      %15 = vsyncadd [#allocation4], 0
      %s16 = sshll.u32 %s1, 4
      %s17 = int_to_ptr.hbm [resolvable:$true] %s16
      %s18 = sshll.u32 [#allocation3], 4
      %s19 = int_to_ptr.vmem [resolvable:$true] %s18
      %24 = dma.hbm_to_vmem [thread:$0]  %s17, 256, %s19, [#allocation4], 64, 64, 4
    $region9: #{gpt2_transformer_forward.15} parent=1 // pred_fallthru
      _
    // Predicated region
    $region10: #{gpt2_transformer_forward.15} parent=1 // pred_check
      _
    $region11: #{gpt2_transformer_forward.15} parent=1 // pred_check_branch
      %26 = sbr.rel (0) target = $region13
    $region12: #{gpt2_transformer_forward.15} parent=1 // pred_region
      _
    $region13: #{gpt2_transformer_forward.15} parent=1 // pred_fallthru
      _
    // Predicated region
    $region14: #{gpt2_transformer_forward.15} parent=1 // pred_check
      _
    $region15: #{gpt2_transformer_forward.15} parent=1 // pred_check_branch
      %28 = sbr.rel (0) target = $region17
    $region16: #{gpt2_transformer_forward.15} parent=1 // pred_region
      _
    $region17: #{gpt2_transformer_forward.15} parent=1 // pred_fallthru
      _
    // Predicated region
    $region18: #{gpt2_transformer_forward.15} parent=1 // pred_check
      _
    $region19: #{gpt2_transformer_forward.15} parent=1 // pred_check_branch
      %30 = sbr.rel (0) target = $region21
    $region20: #{gpt2_transformer_forward.15} parent=1 // pred_region
      %32 = dma.done [#allocation4], 256
    $region21: #{gpt2_transformer_forward.15} parent=1 // pred_fallthru
      _
    %p34 = scmp.eq.s32.totalorder 0, 0
    // Predicated region
    $region22: #{gpt2_transformer_forward.15} parent=1 // pred_check
      %p35 = pneg %p34
    $region23: #{gpt2_transformer_forward.15} parent=1 // pred_check_branch
      %37 = sbr.rel (%p35) target = $region25
    $region24: #{gpt2_transformer_forward.15} parent=1 // pred_region
      %vm38 = vcmask 261120
      %39 = vst.msk [vmem:[#allocation2] sm:$0xff] %vm38, 0.0
      %40 = vst.msk [vmem:[#allocation2 + $0x8] sm:$0xff] %vm38, 0.0
      %41 = vst.msk [vmem:[#allocation2 + $0x10] sm:$0xff] %vm38, 0.0
      %42 = vst.msk [vmem:[#allocation2 + $0x18] sm:$0xff] %vm38, 0.0
    $region25: #{gpt2_transformer_forward.15} parent=1 // pred_fallthru
      _
    %v43 = vld [vmem:[#allocation2] sm:$0xff]
    %v44 = vld [vmem:[#allocation2 + $0x8] sm:$0xff]
    %v45 = vld [vmem:[#allocation2 + $0x10] sm:$0xff]
    %v46 = vld [vmem:[#allocation2 + $0x18] sm:$0xff]
    %v47 = vld [vmem:[%s0] sm:$0xff]
    %v48 = vld [vmem:[%s0 + $0x8] sm:$0xff]
    %v49 = vld [vmem:[%s0 + $0x10] sm:$0xff]
    %v50 = vld [vmem:[%s0 + $0x18] sm:$0xff]
    %v51 = vpack.c.bf16 %v48, %v47
    %v52 = vpack.c.bf16 %v50, %v49
    %v53 = vld [vmem:[#allocation3] sm:$0xf]
    %v54 = vld [vmem:[#allocation3 + $0x4] sm:$0xf]
    %v55 = vld [vmem:[#allocation3 + $0x8] sm:$0xf]
    %v56 = vld [vmem:[#allocation3 + $0xc] sm:$0xf]
    %v61 = vunpack.c.l.b16 %v53
    %v62 = vunpack.c.l.b16 %v54
    %v63 = vunpack.c.l.b16 %v55
    %v64 = vunpack.c.l.b16 %v56
    %v65 = vpack.c.b16 %v62, %v61
    %v66 = vpack.c.b16 %v64, %v63
    %vm69 = vcmask 261120
    %v71 = vsel %vm69, %v51, 0
    %v74 = vsel %vm69, %v52, 0
    %76 = vmatpush.bf16.msra.mxu0 0
    %77 = vmatpush.bf16.msra.mxu0 0
    %78 = vmatpush.bf16.msra.mxu0 0
    %79 = vmatpush.bf16.msra.mxu0 0
    %80 = vmatpush.bf16.msra.mxu0 0
    %81 = vmatpush.bf16.msra.mxu0 0
    %82 = vmatpush.bf16.msra.mxu0 %v66
    %83 = vmatpush.bf16.msra.mxu0 %v65
    %84 = vmatmul.bf16.gmra.mxu0 %v71
    %v85 = vpop.f32.mrf.mxu0
    %v86 = vadd.f32 0.0, %v85
    %v87 = vpop.f32.mrf.mxu0
    %v88 = vadd.f32 0.0, %v87
    %89 = vmatmul.bf16.gmra.mxu0 %v74
    %v90 = vpop.f32.mrf.mxu0
    %v91 = vadd.f32 0.0, %v90
    %v92 = vpop.f32.mrf.mxu0
    %v93 = vadd.f32 0.0, %v92
    %94 = vdwg.mxu0
    %v95 = vadd.f32 %v43, %v86
    %v96 = vadd.f32 %v44, %v88
    %v97 = vadd.f32 %v45, %v91
    %v98 = vadd.f32 %v46, %v93
    %99 = vst.msk [vmem:[#allocation2] sm:$0xff] %vm69, %v95
    %100 = vst.msk [vmem:[#allocation2 + $0x8] sm:$0xff] %vm69, %v96
    %101 = vst.msk [vmem:[#allocation2 + $0x10] sm:$0xff] %vm69, %v97
    %102 = vst.msk [vmem:[#allocation2 + $0x18] sm:$0xff] %vm69, %v98
    // Predicated region
    $region26: #{gpt2_transformer_forward.15} parent=1 // pred_check
      %p103 = pneg %p34
    $region27: #{gpt2_transformer_forward.15} parent=1 // pred_check_branch
      %105 = sbr.rel (%p103) target = $region29
    $region28: #{gpt2_transformer_forward.15} parent=1 // pred_region
      %v106 = vld [vmem:[#allocation2] sm:$0xff]
      %v107 = vld [vmem:[#allocation2 + $0x8] sm:$0xff]
      %v108 = vld [vmem:[#allocation2 + $0x10] sm:$0xff]
      %v109 = vld [vmem:[#allocation2 + $0x18] sm:$0xff]
      %v110 = vld [vmem:[%s2] sm:$0x1]
      %v112 = vperm.slane %v110, 0
      %v114 = vadd.f32 %v106, %v112
      %v115 = vadd.f32 %v107, %v112
      %v116 = vadd.f32 %v108, %v112
      %v117 = vadd.f32 %v109, %v112
      %v118 = vld [vmem:[%s3] sm:$0xff]
      %v119 = vld [vmem:[%s3 + $0x8] sm:$0xff]
      %v120 = vld [vmem:[%s3 + $0x10] sm:$0xff]
      %v121 = vld [vmem:[%s3 + $0x18] sm:$0xff]
      %v122 = vadd.f32 %v114, %v118
      %v123 = vadd.f32 %v115, %v119
      %v124 = vadd.f32 %v116, %v120
      %v125 = vadd.f32 %v117, %v121
      %126 = vst.msk [vmem:[%s4] sm:$0xff] %vm69, %v122
      %127 = vst.msk [vmem:[%s4 + $0x8] sm:$0xff] %vm69, %v123
      %128 = vst.msk [vmem:[%s4 + $0x10] sm:$0xff] %vm69, %v124
      %129 = vst.msk [vmem:[%s4 + $0x18] sm:$0xff] %vm69, %v125
    $region29: #{gpt2_transformer_forward.15} parent=1 // pred_fallthru
      _
    // Predicated region
    $region30: #{gpt2_transformer_forward.15} parent=1 // pred_check
      _
    $region31: #{gpt2_transformer_forward.15} parent=1 // pred_check_branch
      %131 = sbr.rel (0) target = $region33
    $region32: #{gpt2_transformer_forward.15} parent=1 // pred_region
      _
    $region33: #{gpt2_transformer_forward.15} parent=1 // pred_fallthru
      _
    // Predicated region
    $region34: #{gpt2_transformer_forward.15} parent=1 // pred_check
      _
    $region35: #{gpt2_transformer_forward.15} parent=1 // pred_check_branch
      %133 = sbr.rel (0) target = $region37
    $region36: #{gpt2_transformer_forward.15} parent=1 // pred_region
      _
    $region37: #{gpt2_transformer_forward.15} parent=1 // pred_fallthru
      _
    %134 = vsyncpa [#allocation4], 1

// kernel: gpt2_transformer_forward.16
$region0: #{gpt2_transformer_forward.16}
  #allocation0 [shape = 'u32[]', space=smem, size = 0x4, offset = 0x4, fixed_abs, tag = 'smem constant byte address 0x4 - core index']
  #allocation1 [shape = 'u32[72,128]{1,0:T(1,128)}', space=vmem, size = 0x9000, scoped, tag = 'internal scratch']
  #allocation2 [shape = 'bf16[32,32]{1,0:T(8,128)(2,1)}', space=vmem, size = 0x2000, scoped, tag = 'scratch operand']
  %s0 = inlined_call_operand.vmem [shape: f32[32,32], index: 0, kind: input, shape index: {}]
  %s1 = inlined_call_operand.vmem [shape: f32[1,32], index: 1, kind: input, shape index: {}]
  %s2 = inlined_call_operand.hbm [shape: f32[1,32], index: 2, kind: input, shape index: {}]
  %s3 = inlined_call_operand.hbm [shape: bf16[32,128], index: 3, kind: input, shape index: {}]
  %s4 = inlined_call_operand.hbm [shape: f32[1,128], index: 4, kind: input, shape index: {}]
  %s5 = inlined_call_operand.vmem [shape: f32[32,128], index: 5, kind: output, shape index: {}]
  %s6 = sld [smem:[#allocation0]]
  $region46: #{gpt2_transformer_forward.16} parent=0
    _
  %s8 = ssub.s32 1, %s6
  %s9 = scalar_select 0, %s8, %s6
  $region1: #{gpt2_transformer_forward.16} parent=0
    #allocation3 [shape = 'u8[512]{0}', space=vmem, size = 0x400, scoped, tag = 'input window, operand 2, single buffered']
    #allocation4 [shape = 's32[1]{0}', space=sflag, size = 0x4, scoped, tag = 'scoped memory for gpt2_transformer_forward.16']
    #allocation5 [shape = 'u8[8192]{0}', space=vmem, size = 0x2000, scoped, tag = 'input window, operand 3, single buffered']
    #allocation6 [shape = 's32[1]{0}', space=sflag, size = 0x4, scoped, tag = 'scoped memory for gpt2_transformer_forward.16']
    #allocation7 [shape = 'u8[512]{0}', space=vmem, size = 0x400, scoped, tag = 'input window, operand 4, single buffered']
    %10 = vsyncpa [#allocation4], 0
    %11 = vsyncpa [#allocation6], 0
    // Predicated region
    $region2: #{gpt2_transformer_forward.16} parent=1 // pred_check
      _
    $region3: #{gpt2_transformer_forward.16} parent=1 // pred_check_branch
      %13 = sbr.rel (0) target = $region5
    $region4: #{gpt2_transformer_forward.16} parent=1 // pred_region
      _
    $region5: #{gpt2_transformer_forward.16} parent=1 // pred_fallthru
      _
    // Predicated region
    $region6: #{gpt2_transformer_forward.16} parent=1 // pred_check
      _
    $region7: #{gpt2_transformer_forward.16} parent=1 // pred_check_branch
      %15 = sbr.rel (0) target = $region9
    $region8: #{gpt2_transformer_forward.16} parent=1 // pred_region
      _
    $region9: #{gpt2_transformer_forward.16} parent=1 // pred_fallthru
      _
    // Predicated region
    $region10: #{gpt2_transformer_forward.16} parent=1 // pred_check
      _
    $region11: #{gpt2_transformer_forward.16} parent=1 // pred_check_branch
      %17 = sbr.rel (0) target = $region13
    $region12: #{gpt2_transformer_forward.16} parent=1 // pred_region
      %19 = vsyncadd [#allocation4], 0
      %s21 = sshll.u32 %s2, 4
      %s22 = int_to_ptr.hbm [resolvable:$true] %s21
      %s23 = sshll.u32 [#allocation3], 4
      %s24 = int_to_ptr.vmem [resolvable:$true] %s23
      %26 = dma.hbm_to_vmem [thread:$0]  %s22, 16, %s24, [#allocation4]
    $region13: #{gpt2_transformer_forward.16} parent=1 // pred_fallthru
      _
    // Predicated region
    $region14: #{gpt2_transformer_forward.16} parent=1 // pred_check
      _
    $region15: #{gpt2_transformer_forward.16} parent=1 // pred_check_branch
      %28 = sbr.rel (0) target = $region17
    $region16: #{gpt2_transformer_forward.16} parent=1 // pred_region
      %30 = vsyncadd [#allocation6], 0
      %s31 = sshll.u32 %s3, 4
      %s32 = int_to_ptr.hbm [resolvable:$true] %s31
      %s33 = sshll.u32 [#allocation5], 4
      %s34 = int_to_ptr.vmem [resolvable:$true] %s33
      %39 = dma.hbm_to_vmem [thread:$0]  %s32, 256, %s34, [#allocation6], 64, 64, 4
    $region17: #{gpt2_transformer_forward.16} parent=1 // pred_fallthru
      _
    // Predicated region
    $region18: #{gpt2_transformer_forward.16} parent=1 // pred_check
      _
    $region19: #{gpt2_transformer_forward.16} parent=1 // pred_check_branch
      %41 = sbr.rel (0) target = $region21
    $region20: #{gpt2_transformer_forward.16} parent=1 // pred_region
      %43 = vsyncadd [#allocation6], 0
      %s45 = sshll.u32 %s4, 4
      %s46 = int_to_ptr.hbm [resolvable:$true] %s45
      %s47 = sshll.u32 [#allocation7], 4
      %s48 = int_to_ptr.vmem [resolvable:$true] %s47
      %50 = dma.hbm_to_vmem [thread:$0]  %s46, 16, %s48, [#allocation6]
    $region21: #{gpt2_transformer_forward.16} parent=1 // pred_fallthru
      _
    // Predicated region
    $region22: #{gpt2_transformer_forward.16} parent=1 // pred_check
      _
    $region23: #{gpt2_transformer_forward.16} parent=1 // pred_check_branch
      %52 = sbr.rel (0) target = $region25
    $region24: #{gpt2_transformer_forward.16} parent=1 // pred_region
      %54 = dma.done [#allocation4], 16
    $region25: #{gpt2_transformer_forward.16} parent=1 // pred_fallthru
      _
    // Predicated region
    $region26: #{gpt2_transformer_forward.16} parent=1 // pred_check
      _
    $region27: #{gpt2_transformer_forward.16} parent=1 // pred_check_branch
      %56 = sbr.rel (0) target = $region29
    $region28: #{gpt2_transformer_forward.16} parent=1 // pred_region
      %58 = dma.done [#allocation6], 256
    $region29: #{gpt2_transformer_forward.16} parent=1 // pred_fallthru
      _
    // Predicated region
    $region30: #{gpt2_transformer_forward.16} parent=1 // pred_check
      _
    $region31: #{gpt2_transformer_forward.16} parent=1 // pred_check_branch
      %60 = sbr.rel (0) target = $region33
    $region32: #{gpt2_transformer_forward.16} parent=1 // pred_region
      %62 = dma.done [#allocation6], 16
    $region33: #{gpt2_transformer_forward.16} parent=1 // pred_fallthru
      _
    %p64 = scmp.eq.s32.totalorder 0, 0
    // Predicated region
    $region34: #{gpt2_transformer_forward.16} parent=1 // pred_check
      %p65 = pneg %p64
    $region35: #{gpt2_transformer_forward.16} parent=1 // pred_check_branch
      %67 = sbr.rel (%p65) target = $region37
    $region36: #{gpt2_transformer_forward.16} parent=1 // pred_region
      %v68 = vld [vmem:[%s0] sm:$0xff]
      %v69 = vld [vmem:[%s0 + $0x8] sm:$0xff]
      %v70 = vld [vmem:[%s0 + $0x10] sm:$0xff]
      %v71 = vld [vmem:[%s0 + $0x18] sm:$0xff]
      %vm72 = vcmask 261120
      %v73 = vsel %vm72, %v68, 0.0
      %74 = vadd.xlane.f32.xlu0 %v73
      %v75 = vpop.xlane.xlu0 %74
      %v76 = vsel %vm72, %v69, 0.0
      %77 = vadd.xlane.f32.xlu0 %v76
      %v78 = vpop.xlane.xlu0 %77
      %v79 = vsel %vm72, %v70, 0.0
      %80 = vadd.xlane.f32.xlu0 %v79
      %v81 = vpop.xlane.xlu0 %80
      %v82 = vsel %vm72, %v71, 0.0
      %83 = vadd.xlane.f32.xlu0 %v82
      %v84 = vpop.xlane.xlu0 %83
      %v85 = vrcp.pop 32.0
      %v86 = vmul.f32 32.0, %v85
      %v87 = vsub.f32 1.0, %v86
      %v88 = vmul.f32 %v85, %v87
      %v89 = vadd.f32 %v85, %v88
      %vm90 = vweird.f32 %v85
      %v91 = vsel %vm90, %v85, %v89
      %v92 = vmul.f32 %v75, %v91
      %v93 = vmul.f32 %v78, %v91
      %v94 = vmul.f32 %v81, %v91
      %v95 = vmul.f32 %v84, %v91
      %v96 = vsub.f32 %v68, %v92
      %v97 = vsub.f32 %v69, %v93
      %v98 = vsub.f32 %v70, %v94
      %v99 = vsub.f32 %v71, %v95
      %v100 = vmul.f32 %v96, %v96
      %v101 = vmul.f32 %v97, %v97
      %v102 = vmul.f32 %v98, %v98
      %v103 = vmul.f32 %v99, %v99
      %v104 = vsel %vm72, %v100, 0.0
      %105 = vadd.xlane.f32.xlu0 %v104
      %v106 = vpop.xlane.xlu0 %105
      %v107 = vsel %vm72, %v101, 0.0
      %108 = vadd.xlane.f32.xlu0 %v107
      %v109 = vpop.xlane.xlu0 %108
      %v110 = vsel %vm72, %v102, 0.0
      %111 = vadd.xlane.f32.xlu0 %v110
      %v112 = vpop.xlane.xlu0 %111
      %v113 = vsel %vm72, %v103, 0.0
      %114 = vadd.xlane.f32.xlu0 %v113
      %v115 = vpop.xlane.xlu0 %114
      %v116 = vmul.f32 %v106, %v91
      %v117 = vmul.f32 %v109, %v91
      %v118 = vmul.f32 %v112, %v91
      %v119 = vmul.f32 %v115, %v91
      %v120 = vadd.f32 %v116, 1e-05
      %v121 = vadd.f32 %v117, 1e-05
      %v122 = vadd.f32 %v118, 1e-05
      %v123 = vadd.f32 %v119, 1e-05
      %v124 = vrsqrt.pop %v120
      %v125 = vmul.f32 %v124, %v120
      %v126 = vmul.f32 %v125, %v124
      %v127 = vmul.f32 0.5, %v126
      %v128 = vsub.f32 1.5, %v127
      %v129 = vmul.f32 %v124, %v128
      %vm130 = vweird.f32 %v120
      %vm131 = vweird.f32 %v124
      %vm132 = vmor %vm130, %vm131
      %v133 = vsel %vm132, %v124, %v129
      %v134 = vrsqrt.pop %v121
      %v135 = vmul.f32 %v134, %v121
      %v136 = vmul.f32 %v135, %v134
      %v137 = vmul.f32 0.5, %v136
      %v138 = vsub.f32 1.5, %v137
      %v139 = vmul.f32 %v134, %v138
      %vm140 = vweird.f32 %v121
      %vm141 = vweird.f32 %v134
      %vm142 = vmor %vm140, %vm141
      %v143 = vsel %vm142, %v134, %v139
      %v144 = vrsqrt.pop %v122
      %v145 = vmul.f32 %v144, %v122
      %v146 = vmul.f32 %v145, %v144
      %v147 = vmul.f32 0.5, %v146
      %v148 = vsub.f32 1.5, %v147
      %v149 = vmul.f32 %v144, %v148
      %vm150 = vweird.f32 %v122
      %vm151 = vweird.f32 %v144
      %vm152 = vmor %vm150, %vm151
      %v153 = vsel %vm152, %v144, %v149
      %v154 = vrsqrt.pop %v123
      %v155 = vmul.f32 %v154, %v123
      %v156 = vmul.f32 %v155, %v154
      %v157 = vmul.f32 0.5, %v156
      %v158 = vsub.f32 1.5, %v157
      %v159 = vmul.f32 %v154, %v158
      %vm160 = vweird.f32 %v123
      %vm161 = vweird.f32 %v154
      %vm162 = vmor %vm160, %vm161
      %v163 = vsel %vm162, %v154, %v159
      %v164 = vmul.f32 %v96, %v133
      %v165 = vmul.f32 %v97, %v143
      %v166 = vmul.f32 %v98, %v153
      %v167 = vmul.f32 %v99, %v163
      %v168 = vld [vmem:[%s1] sm:$0x1]
      %v170 = vperm.slane %v168, 0
      %v172 = vmul.f32 %v164, %v170
      %v173 = vmul.f32 %v165, %v170
      %v174 = vmul.f32 %v166, %v170
      %v175 = vmul.f32 %v167, %v170
      %v176 = vld [vmem:[#allocation3] sm:$0x1]
      %v178 = vperm.slane %v176, 0
      %v180 = vadd.f32 %v172, %v178
      %v181 = vadd.f32 %v173, %v178
      %v182 = vadd.f32 %v174, %v178
      %v183 = vadd.f32 %v175, %v178
      %v184 = vpack.c.bf16 %v180, %v180
      %v185 = vpack.c.bf16 %v181, %v181
      %v186 = vpack.c.bf16 %v182, %v182
      %v187 = vpack.c.bf16 %v183, %v183
      %vm188 = vcmask 257024
      %189 = vst.msk [vmem:[#allocation2] sm:$0xf] %vm188, %v184
      %190 = vst.msk [vmem:[#allocation2 + $0x4] sm:$0xf] %vm188, %v185
      %191 = vst.msk [vmem:[#allocation2 + $0x8] sm:$0xf] %vm188, %v186
      %192 = vst.msk [vmem:[#allocation2 + $0xc] sm:$0xf] %vm188, %v187
    $region37: #{gpt2_transformer_forward.16} parent=1 // pred_fallthru
      _
    %v193 = vld [vmem:[#allocation2] sm:$0xf]
    %v194 = vld [vmem:[#allocation2 + $0x4] sm:$0xf]
    %v195 = vld [vmem:[#allocation2 + $0x8] sm:$0xf]
    %v196 = vld [vmem:[#allocation2 + $0xc] sm:$0xf]
    %v197 = vld [vmem:[#allocation5] sm:$0xf]
    %v198 = vld [vmem:[#allocation5 + $0x4] sm:$0xf]
    %v199 = vld [vmem:[#allocation5 + $0x8] sm:$0xf]
    %v200 = vld [vmem:[#allocation5 + $0xc] sm:$0xf]
    %v201 = vld [vmem:[#allocation7] sm:$0x1]
    %v203 = vperm.slane %v201, 0
    %v209 = vunpack.c.l.b16 %v193
    %v210 = vunpack.c.l.b16 %v194
    %v211 = vunpack.c.l.b16 %v195
    %v212 = vunpack.c.l.b16 %v196
    %v213 = vpack.c.b16 %v210, %v209
    %v214 = vpack.c.b16 %v212, %v211
    %v219 = vunpack.c.l.b16 %v197
    %v220 = vunpack.c.l.b16 %v198
    %v221 = vunpack.c.l.b16 %v199
    %v222 = vunpack.c.l.b16 %v200
    %v223 = vpack.c.b16 %v220, %v219
    %v224 = vpack.c.b16 %v222, %v221
    %vm227 = vcmask 261120
    %v229 = vsel %vm227, %v213, 0
    %v232 = vsel %vm227, %v214, 0
    %234 = vmatpush.bf16.msra.mxu0 0
    %235 = vmatpush.bf16.msra.mxu0 0
    %236 = vmatpush.bf16.msra.mxu0 0
    %237 = vmatpush.bf16.msra.mxu0 0
    %238 = vmatpush.bf16.msra.mxu0 0
    %239 = vmatpush.bf16.msra.mxu0 0
    %240 = vmatpush.bf16.msra.mxu0 %v224
    %241 = vmatpush.bf16.msra.mxu0 %v223
    %242 = vmatmul.bf16.gmra.mxu0 %v229
    %v243 = vpop.f32.mrf.mxu0
    %v244 = vadd.f32 %v203, %v243
    %v245 = vpop.f32.mrf.mxu0
    %v246 = vadd.f32 %v203, %v245
    %247 = vmatmul.bf16.gmra.mxu0 %v232
    %v248 = vpop.f32.mrf.mxu0
    %v249 = vadd.f32 %v203, %v248
    %v250 = vpop.f32.mrf.mxu0
    %v251 = vadd.f32 %v203, %v250
    %252 = vdwg.mxu0
    %v253 = vmul.f32 %v244, 0.5
    %v254 = vmul.f32 %v246, 0.5
    %v255 = vmul.f32 %v249, 0.5
    %v256 = vmul.f32 %v251, 0.5
    %v257 = vmul.f32 %v244, 0.044715
    %v258 = vmul.f32 %v246, 0.044715
    %v259 = vmul.f32 %v249, 0.044715
    %v260 = vmul.f32 %v251, 0.044715
    %v261 = vmul.f32 %v257, %v244
    %v262 = vmul.f32 %v258, %v246
    %v263 = vmul.f32 %v259, %v249
    %v264 = vmul.f32 %v260, %v251
    %v265 = vmul.f32 %v261, %v244
    %v266 = vmul.f32 %v262, %v246
    %v267 = vmul.f32 %v263, %v249
    %v268 = vmul.f32 %v264, %v251
    %v269 = vadd.f32 %v244, %v265
    %v270 = vadd.f32 %v246, %v266
    %v271 = vadd.f32 %v249, %v267
    %v272 = vadd.f32 %v251, %v268
    %v273 = vmul.f32 %v269, 0.7978846
    %v274 = vmul.f32 %v270, 0.7978846
    %v275 = vmul.f32 %v271, 0.7978846
    %v276 = vmul.f32 %v272, 0.7978846
    %v277 = vtanh.pop %v273
    %v278 = vtanh.pop %v274
    %v279 = vtanh.pop %v275
    %v280 = vtanh.pop %v276
    %v281 = vadd.f32 %v277, 1.0
    %v282 = vadd.f32 %v278, 1.0
    %v283 = vadd.f32 %v279, 1.0
    %v284 = vadd.f32 %v280, 1.0
    %v285 = vmul.f32 %v253, %v281
    %v286 = vmul.f32 %v254, %v282
    %v287 = vmul.f32 %v255, %v283
    %v288 = vmul.f32 %v256, %v284
    %289 = vst [vmem:[%s5] sm:$0xff] %v285
    %290 = vst [vmem:[%s5 + $0x8] sm:$0xff] %v286
    %291 = vst [vmem:[%s5 + $0x10] sm:$0xff] %v287
    %292 = vst [vmem:[%s5 + $0x18] sm:$0xff] %v288
    // Predicated region
    $region38: #{gpt2_transformer_forward.16} parent=1 // pred_check
      _
    $region39: #{gpt2_transformer_forward.16} parent=1 // pred_check_branch
      %294 = sbr.rel (0) target = $region41
    $region40: #{gpt2_transformer_forward.16} parent=1 // pred_region
      _
    $region41: #{gpt2_transformer_forward.16} parent=1 // pred_fallthru
      _
    // Predicated region
    $region42: #{gpt2_transformer_forward.16} parent=1 // pred_check
      _
    $region43: #{gpt2_transformer_forward.16} parent=1 // pred_check_branch
      %296 = sbr.rel (0) target = $region45
    $region44: #{gpt2_transformer_forward.16} parent=1 // pred_region
      _
    $region45: #{gpt2_transformer_forward.16} parent=1 // pred_fallthru
      _
    %297 = vsyncpa [#allocation4], 1
    %298 = vsyncpa [#allocation6], 1

// kernel: gpt2_transformer_forward.19
$region0: #{gpt2_transformer_forward.19}
  #allocation0 [shape = 'u32[]', space=smem, size = 0x4, offset = 0x4, fixed_abs, tag = 'smem constant byte address 0x4 - core index']
  #allocation1 [shape = 'u32[72,128]{1,0:T(1,128)}', space=vmem, size = 0x9000, scoped, tag = 'internal scratch']
  %s0 = inlined_call_operand.vmem [shape: f32[32,96], index: 0, kind: input, shape index: {}]
  %s1 = inlined_call_operand.vmem [shape: f32[16,16], index: 1, kind: input, shape index: {}]
  %s2 = inlined_call_operand.vmem [shape: f32[32,32], index: 2, kind: output, shape index: {}]
  %s3 = sld [smem:[#allocation0]]
  $region41: #{gpt2_transformer_forward.19} parent=0
    _
  %s5 = ssub.s32 1, %s3
  %s6 = scalar_select 0, %s5, %s3
  loop: start=0, step=1, limit=4
  $region2: #{gpt2_transformer_forward.19} parent=0 // loop_pre_header
    _
  $region3: #{gpt2_transformer_forward.19} parent=0 // loop_header
    %s8 = sphi 0, %s12
    %p9 = scmp.ge.s32.totalorder %s8, 4
    %s18 = sphi 0, %s20
    %s21 = sphi 0, %s18
    %s22 = sphi 0, %s21
    %s38 = sphi 0, %s22
    %s42 = sphi 0, %s42
    %s44 = sphi 0, %s42
    %s45 = sphi 0, %s44
    %s59 = sphi 0, %s45
    %s65 = sphi 0, %s67
    %s68 = sphi 0, %s65
    %s69 = sphi 0, %s68
    %s85 = sphi 0, %s69
  $region4: #{gpt2_transformer_forward.19} parent=0 // loop_header_branch
    %11 = sbr.rel (%p9) target = $region8
  $region5: #{gpt2_transformer_forward.19} parent=0 // loop_body
    %s13 = ssub.s32 %s8, 1
    %s14 = ssub.s32 %s8, 2
    %s15 = sadd.s32 %s8, 1
    %s16 = ssub.s32 %s8, %s15
    %p17 = scmp.eq.s32.totalorder %s16, 0
    %s19 = sadd.s32 %s18, 1
    %s20 = scalar_select %p17, %s18, %s19
    %p23 = pneg %p17
    %p24 = scmp.eq.s32.totalorder %s8, 1
    %p25 = por %p23, %p24
    %p26 = scmp.ne.s32.totalorder %s18, %s21
    %p27 = scmp.eq.s32.totalorder %s8, 0
    %p28 = por %p26, %p27
    %p29 = scmp.ne.s32.totalorder %s18, %s21
    %p30 = scmp.eq.s32.totalorder %s13, 1
    %p31 = por %p29, %p30
    %p32 = scmp.ne.s32.totalorder %s21, %s22
    %p33 = scmp.eq.s32.totalorder %s13, 0
    %p34 = por %p32, %p33
    %p35 = scmp.ne.s32.totalorder %s21, %s22
    %p36 = scmp.eq.s32.totalorder %s14, 1
    %p37 = por %p35, %p36
    %p39 = scmp.ne.s32.totalorder %s22, %s38
    %p40 = scmp.eq.s32.totalorder %s14, 0
    %p41 = por %p39, %p40
    %s43 = sadd.s32 %s42, 1
    %p46 = scmp.eq.s32.totalorder %s8, 1
    %p47 = scmp.ne.s32.totalorder %s42, %s44
    %p48 = scmp.eq.s32.totalorder %s8, 0
    %p49 = por %p47, %p48
    %p50 = scmp.ne.s32.totalorder %s42, %s44
    %p51 = scmp.eq.s32.totalorder %s13, 1
    %p52 = por %p50, %p51
    %p53 = scmp.ne.s32.totalorder %s44, %s45
    %p54 = scmp.eq.s32.totalorder %s13, 0
    %p55 = por %p53, %p54
    %p56 = scmp.ne.s32.totalorder %s44, %s45
    %p57 = scmp.eq.s32.totalorder %s14, 1
    %p58 = por %p56, %p57
    %p60 = scmp.ne.s32.totalorder %s45, %s59
    %p61 = scmp.eq.s32.totalorder %s14, 0
    %p62 = por %p60, %p61
    %s63 = ssub.s32 %s8, %s15
    %p64 = scmp.eq.s32.totalorder %s63, 0
    %s66 = sadd.s32 %s65, 1
    %s67 = scalar_select %p64, %s65, %s66
    %p70 = pneg %p64
    %p71 = scmp.eq.s32.totalorder %s8, 1
    %p72 = por %p70, %p71
    %p73 = scmp.ne.s32.totalorder %s65, %s68
    %p74 = scmp.eq.s32.totalorder %s8, 0
    %p75 = por %p73, %p74
    %p76 = scmp.ne.s32.totalorder %s65, %s68
    %p77 = scmp.eq.s32.totalorder %s13, 1
    %p78 = por %p76, %p77
    %p79 = scmp.ne.s32.totalorder %s68, %s69
    %p80 = scmp.eq.s32.totalorder %s13, 0
    %p81 = por %p79, %p80
    %p82 = scmp.ne.s32.totalorder %s68, %s69
    %p83 = scmp.eq.s32.totalorder %s14, 1
    %p84 = por %p82, %p83
    %p86 = scmp.ne.s32.totalorder %s69, %s85
    %p87 = scmp.eq.s32.totalorder %s14, 0
    %p88 = por %p86, %p87
    %p89 = scmp.le.s32.totalorder 1, %s8
    %p90 = scmp.lt.s32.totalorder %s8, 3
    %p91 = pnand %p89, %p90
    %p92 = pneg %p91
    // Predicated region
    $region9: #{gpt2_transformer_forward.19} parent=5 // pred_check
      _
    $region10: #{gpt2_transformer_forward.19} parent=5 // pred_check_branch
      %94 = sbr.rel (%p91) target = $region12
    $region11: #{gpt2_transformer_forward.19} parent=5 // pred_region
      %s95 = ssub.s32 %s8, 1
      // Predicated region
      $region13: #{gpt2_transformer_forward.19} parent=11 // pred_check
        %p96 = pneg %p55
      $region14: #{gpt2_transformer_forward.19} parent=11 // pred_check_branch
        %98 = sbr.rel (%p96) target = $region16
      $region15: #{gpt2_transformer_forward.19} parent=11 // pred_region
        _
      $region16: #{gpt2_transformer_forward.19} parent=11 // pred_fallthru
        _
    $region12: #{gpt2_transformer_forward.19} parent=5 // pred_fallthru
      _
    %p99 = scmp.lt.s32.totalorder %s8, 2
    // Predicated region
    $region17: #{gpt2_transformer_forward.19} parent=5 // pred_check
      %p100 = pneg %p99
    $region18: #{gpt2_transformer_forward.19} parent=5 // pred_check_branch
      %102 = sbr.rel (%p100) target = $region20
    $region19: #{gpt2_transformer_forward.19} parent=5 // pred_region
      // Predicated region
      $region21: #{gpt2_transformer_forward.19} parent=19 // pred_check
        %p103 = pneg %p28
      $region22: #{gpt2_transformer_forward.19} parent=19 // pred_check_branch
        %105 = sbr.rel (%p103) target = $region24
      $region23: #{gpt2_transformer_forward.19} parent=19 // pred_region
        %s106 = smul.u32 2, %s8
        %p107 = scmp.lt.s32.totalorder %s106, 3
        %s108 = scalar_select %p107, %s106, 3
        %s109 = smul.addr %s108, 8
        %s110 = scalar_lea.vmem %s0, %s109
        %s111 = smul.u32 2, %s8
      $region24: #{gpt2_transformer_forward.19} parent=19 // pred_fallthru
        _
    $region20: #{gpt2_transformer_forward.19} parent=5 // pred_fallthru
      _
    %p112 = scmp.le.s32.totalorder 1, %s8
    %p113 = scmp.lt.s32.totalorder %s8, 3
    %p114 = pnand %p112, %p113
    %p115 = pneg %p114
    // Predicated region
    $region25: #{gpt2_transformer_forward.19} parent=5 // pred_check
      _
    $region26: #{gpt2_transformer_forward.19} parent=5 // pred_check_branch
      %117 = sbr.rel (%p114) target = $region28
    $region27: #{gpt2_transformer_forward.19} parent=5 // pred_region
      %s118 = ssub.s32 %s8, 1
      %s119 = smul.u32 2, %s13
      %p120 = scmp.lt.s32.totalorder %s119, 3
      %s121 = scalar_select %p120, %s119, 3
      %s122 = smul.addr %s121, 8
      %s123 = scalar_lea.vmem %s0, %s122
      %p124 = pneg %p34
      %p125 = pneg %p31
      %p126 = pneg %p55
      %p127 = pneg %p52
      %p128 = pneg %p81
      %p129 = pneg %p78
      %s130 = smul.u32 2, %s13
      %p131 = scmp.lt.s32.totalorder %s130, 3
      %s132 = scalar_select %p131, %s130, 3
      %s133 = smul.addr %s132, 8
      %s134 = scalar_lea.vmem %s2, %s133
      %s135 = smul.u32 2, %s13
      %p136 = scmp.lt.s32.totalorder %s135, 3
      %s137 = scalar_select %p136, %s135, 3
      %s138 = smul.addr %s137, 8
      %s139 = scalar_lea.vmem %s0, %s138
      %s140 = smul.u32 2, %s13
      %s141 = smul.u32 2, %s13
      %p142 = scmp.lt.s32.totalorder %s141, 3
      %s143 = scalar_select %p142, %s141, 3
      %s144 = smul.addr %s143, 8
      %s145 = scalar_lea.vmem %s2, %s144
      %s146 = smul.u32 2, %s13
      %v148 = vld [vmem:[%s139] sm:$0xff]
      %v149 = vld [vmem:[%s139 + $0x8] sm:$0xff]
      %v150 = vld [vmem:[%s1] sm:$0xff]
      %v151 = vld [vmem:[%s1 + $0x8] sm:$0xff]
      %v152 = vpack.c.bf16 %v149, %v148
      %154 = vrot.lane.b32.xlu0 %v152, 96
      %v155 = vpop.permute.xlu0 %154
      %vm156 = vcmask 130048
      %v158 = vsel %vm156, %v152, 0
      %v161 = vsel %vm156, %v155, 0
      %163 = vmatpush.bf16.xpose.msra.mxu0 0
      %164 = vmatpush.bf16.xpose.msra.mxu0 0
      %165 = vmatpush.bf16.xpose.msra.mxu0 0
      %166 = vmatpush.bf16.xpose.msra.mxu0 0
      %167 = vmatpush.bf16.xpose.msra.mxu0 0
      %168 = vmatpush.bf16.xpose.msra.mxu0 0
      %169 = vmatpush.bf16.xpose.msra.mxu0 0
      %170 = vmatpush.bf16.xpose.msra.mxu0 %v161
      %171 = vmatmul.bf16.gmra.mxu0 %v158
      %v172 = vpop.f32.mrf.mxu0
      %v173 = vadd.f32 %v150, %v172
      %v174 = vpop.f32.mrf.mxu0
      %v175 = vadd.f32 %v151, %v174
      %176 = vdwg.mxu0
      %v177 = vsel %vm156, %v173, -inf
      %178 = vmax.xlane.f32.xlu0 %v177
      %v179 = vpop.xlane.xlu0 %178
      %v180 = vsel %vm156, %v175, -inf
      %181 = vmax.xlane.f32.xlu0 %v180
      %v182 = vpop.xlane.xlu0 %181
      %v183 = vsub.f32 %v173, %v179
      %v184 = vsub.f32 %v175, %v182
      %v185 = vmul.f32 %v183, 1.442695
      %v186 = vpow.pop %v185
      %v187 = vmul.f32 %v184, 1.442695
      %v188 = vpow.pop %v187
      %v189 = vsel %vm156, %v186, 0.0
      %190 = vadd.xlane.f32.xlu0 %v189
      %v191 = vpop.xlane.xlu0 %190
      %v192 = vsel %vm156, %v188, 0.0
      %193 = vadd.xlane.f32.xlu0 %v192
      %v194 = vpop.xlane.xlu0 %193
      %v195 = vrcp.pop %v191
      %v196 = vrcp.pop %v194
      %v197 = vmul.f32 %v186, %v195
      %v198 = vmul.f32 %v188, %v196
      %v199 = vpack.c.bf16 %v198, %v197
      %200 = vrot.lane.b32.xlu0 %v152, 64
      %v201 = vpop.permute.xlu0 %200
      %v204 = vsel %vm156, %v199, 0
      %206 = vmatpush.bf16.msra.mxu0 0
      %207 = vmatpush.bf16.msra.mxu0 0
      %208 = vmatpush.bf16.msra.mxu0 0
      %209 = vmatpush.bf16.msra.mxu0 0
      %210 = vmatpush.bf16.msra.mxu0 0
      %211 = vmatpush.bf16.msra.mxu0 0
      %212 = vmatpush.bf16.msra.mxu0 0
      %213 = vmatpush.bf16.msra.mxu0 %v201
      %214 = vmatmul.bf16.gmra.mxu0 %v204
      %v215 = vpop.f32.mrf.mxu0
      %v216 = vadd.f32 0.0, %v215
      %v217 = vpop.f32.mrf.mxu0
      %v218 = vadd.f32 0.0, %v217
      %219 = vdwg.mxu0
      %220 = vrot.lane.b32.xlu0 %v152, 112
      %v221 = vpop.permute.xlu0 %220
      %222 = vrot.lane.b32.xlu0 %v152, 80
      %v223 = vpop.permute.xlu0 %222
      %v225 = vsel %vm156, %v221, 0
      %v228 = vsel %vm156, %v223, 0
      %230 = vmatpush.bf16.xpose.msra.mxu0 0
      %231 = vmatpush.bf16.xpose.msra.mxu0 0
      %232 = vmatpush.bf16.xpose.msra.mxu0 0
      %233 = vmatpush.bf16.xpose.msra.mxu0 0
      %234 = vmatpush.bf16.xpose.msra.mxu0 0
      %235 = vmatpush.bf16.xpose.msra.mxu0 0
      %236 = vmatpush.bf16.xpose.msra.mxu0 0
      %237 = vmatpush.bf16.xpose.msra.mxu0 %v228
      %238 = vmatmul.bf16.gmra.mxu0 %v225
      %v239 = vpop.f32.mrf.mxu0
      %v240 = vadd.f32 %v150, %v239
      %v241 = vpop.f32.mrf.mxu0
      %v242 = vadd.f32 %v151, %v241
      %243 = vdwg.mxu0
      %v244 = vsel %vm156, %v240, -inf
      %245 = vmax.xlane.f32.xlu0 %v244
      %v246 = vpop.xlane.xlu0 %245
      %v247 = vsel %vm156, %v242, -inf
      %248 = vmax.xlane.f32.xlu0 %v247
      %v249 = vpop.xlane.xlu0 %248
      %v250 = vsub.f32 %v240, %v246
      %v251 = vsub.f32 %v242, %v249
      %v252 = vmul.f32 %v250, 1.442695
      %v253 = vpow.pop %v252
      %v254 = vmul.f32 %v251, 1.442695
      %v255 = vpow.pop %v254
      %v256 = vsel %vm156, %v253, 0.0
      %257 = vadd.xlane.f32.xlu0 %v256
      %v258 = vpop.xlane.xlu0 %257
      %v259 = vsel %vm156, %v255, 0.0
      %260 = vadd.xlane.f32.xlu0 %v259
      %v261 = vpop.xlane.xlu0 %260
      %v262 = vrcp.pop %v258
      %v263 = vrcp.pop %v261
      %v264 = vmul.f32 %v253, %v262
      %v265 = vmul.f32 %v255, %v263
      %v266 = vpack.c.bf16 %v265, %v264
      %267 = vrot.lane.b32.xlu0 %v152, 48
      %v268 = vpop.permute.xlu0 %267
      %v271 = vsel %vm156, %v266, 0
      %273 = vmatpush.bf16.msra.mxu0 0
      %274 = vmatpush.bf16.msra.mxu0 0
      %275 = vmatpush.bf16.msra.mxu0 0
      %276 = vmatpush.bf16.msra.mxu0 0
      %277 = vmatpush.bf16.msra.mxu0 0
      %278 = vmatpush.bf16.msra.mxu0 0
      %279 = vmatpush.bf16.msra.mxu0 0
      %280 = vmatpush.bf16.msra.mxu0 %v268
      %281 = vmatmul.bf16.gmra.mxu0 %v271
      %v282 = vpop.f32.mrf.mxu0
      %v283 = vadd.f32 0.0, %v282
      %v284 = vpop.f32.mrf.mxu0
      %v285 = vadd.f32 0.0, %v284
      %286 = vdwg.mxu0
      %289 = vrot.lane.b32.xlu0 %v283, 16
      %v290 = vpop.permute.xlu0 %289
      %291 = vrot.lane.b32.xlu0 %v285, 16
      %v292 = vpop.permute.xlu0 %291
      %v295 = vsel %vm156, %v216, %v290
      %v296 = vsel %vm156, %v218, %v292
      %vm297 = vcmask 261120
      %298 = vst.msk [vmem:[%s145] sm:$0xff] %vm297, %v295
      %299 = vst.msk [vmem:[%s145 + $0x8] sm:$0xff] %vm297, %v296
      %s300 = smul.u32 2, %s13
      %p301 = scmp.lt.s32.totalorder %s300, 3
      %s302 = scalar_select %p301, %s300, 3
      %s303 = smul.addr %s302, 8
      %s304 = scalar_lea.vmem %s2, %s303
      // Predicated region
      $region29: #{gpt2_transformer_forward.19} parent=27 // pred_check
        %p305 = pneg %p78
      $region30: #{gpt2_transformer_forward.19} parent=27 // pred_check_branch
        %307 = sbr.rel (%p305) target = $region32
      $region31: #{gpt2_transformer_forward.19} parent=27 // pred_region
        %s308 = smul.u32 2, %s13
      $region32: #{gpt2_transformer_forward.19} parent=27 // pred_fallthru
        _
    $region28: #{gpt2_transformer_forward.19} parent=5 // pred_fallthru
      _
    %p309 = scmp.le.s32.totalorder 2, %s8
    // Predicated region
    $region33: #{gpt2_transformer_forward.19} parent=5 // pred_check
      %p310 = pneg %p309
    $region34: #{gpt2_transformer_forward.19} parent=5 // pred_check_branch
      %312 = sbr.rel (%p310) target = $region36
    $region35: #{gpt2_transformer_forward.19} parent=5 // pred_region
      %s313 = ssub.s32 %s8, 2
      // Predicated region
      $region37: #{gpt2_transformer_forward.19} parent=35 // pred_check
        %p314 = pneg %p84
      $region38: #{gpt2_transformer_forward.19} parent=35 // pred_check_branch
        %316 = sbr.rel (%p314) target = $region40
      $region39: #{gpt2_transformer_forward.19} parent=35 // pred_region
        %s317 = smul.u32 2, %s14
        %p318 = scmp.lt.s32.totalorder %s317, 3
        %s319 = scalar_select %p318, %s317, 3
        %s320 = smul.addr %s319, 8
        %s321 = scalar_lea.vmem %s2, %s320
      $region40: #{gpt2_transformer_forward.19} parent=35 // pred_fallthru
        _
    $region36: #{gpt2_transformer_forward.19} parent=5 // pred_fallthru
      _
  $region6: #{gpt2_transformer_forward.19} parent=0 // loop_footer
    %s12 = sadd.s32 1, %s8
  $region7: #{gpt2_transformer_forward.19} parent=0 // loop_footer_branch
    %7 = sbr.rel target = $region3
  $region8: #{gpt2_transformer_forward.19} parent=0 // loop_exit
    _

// kernel: gpt2_transformer_forward.17
$region0: #{gpt2_transformer_forward.17}
  #allocation0 [shape = 'u32[]', space=smem, size = 0x4, offset = 0x4, fixed_abs, tag = 'smem constant byte address 0x4 - core index']
  #allocation1 [shape = 'u32[72,128]{1,0:T(1,128)}', space=vmem, size = 0x9000, scoped, tag = 'internal scratch']
  #allocation2 [shape = 'f32[32,32]{1,0:T(8,128)}', space=vmem, size = 0x4000, scoped, tag = 'scratch operand']
  %s0 = inlined_call_operand.vmem [shape: f32[32,128], index: 0, kind: input, shape index: {}]
  %s1 = inlined_call_operand.vmem [shape: bf16[128,32], index: 1, kind: input, shape index: {}]
  %s2 = inlined_call_operand.vmem [shape: f32[1,32], index: 2, kind: input, shape index: {}]
  %s3 = inlined_call_operand.vmem [shape: f32[32,32], index: 3, kind: input, shape index: {}]
  %s4 = inlined_call_operand.vmem [shape: f32[32,32], index: 4, kind: output, shape index: {}]
  %s5 = sld [smem:[#allocation0]]
  $region34: #{gpt2_transformer_forward.17} parent=0
    _
  %s7 = ssub.s32 1, %s5
  %s8 = scalar_select 0, %s7, %s5
  // Predicated region
  $region2: #{gpt2_transformer_forward.17} parent=0 // pred_check
    _
  $region3: #{gpt2_transformer_forward.17} parent=0 // pred_check_branch
    %10 = sbr.rel (0) target = $region5
  $region4: #{gpt2_transformer_forward.17} parent=0 // pred_region
    _
  $region5: #{gpt2_transformer_forward.17} parent=0 // pred_fallthru
    _
  // Predicated region
  $region6: #{gpt2_transformer_forward.17} parent=0 // pred_check
    _
  $region7: #{gpt2_transformer_forward.17} parent=0 // pred_check_branch
    %12 = sbr.rel (0) target = $region9
  $region8: #{gpt2_transformer_forward.17} parent=0 // pred_region
    _
  $region9: #{gpt2_transformer_forward.17} parent=0 // pred_fallthru
    _
  // Predicated region
  $region10: #{gpt2_transformer_forward.17} parent=0 // pred_check
    _
  $region11: #{gpt2_transformer_forward.17} parent=0 // pred_check_branch
    %14 = sbr.rel (0) target = $region13
  $region12: #{gpt2_transformer_forward.17} parent=0 // pred_region
    _
  $region13: #{gpt2_transformer_forward.17} parent=0 // pred_fallthru
    _
  // Predicated region
  $region14: #{gpt2_transformer_forward.17} parent=0 // pred_check
    _
  $region15: #{gpt2_transformer_forward.17} parent=0 // pred_check_branch
    %16 = sbr.rel (0) target = $region17
  $region16: #{gpt2_transformer_forward.17} parent=0 // pred_region
    _
  $region17: #{gpt2_transformer_forward.17} parent=0 // pred_fallthru
    _
  %p17 = scmp.eq.s32.totalorder 0, 0
  // Predicated region
  $region18: #{gpt2_transformer_forward.17} parent=0 // pred_check
    %p18 = pneg %p17
  $region19: #{gpt2_transformer_forward.17} parent=0 // pred_check_branch
    %20 = sbr.rel (%p18) target = $region21
  $region20: #{gpt2_transformer_forward.17} parent=0 // pred_region
    %vm21 = vcmask 261120
    %22 = vst.msk [vmem:[#allocation2] sm:$0xff] %vm21, 0.0
    %23 = vst.msk [vmem:[#allocation2 + $0x8] sm:$0xff] %vm21, 0.0
    %24 = vst.msk [vmem:[#allocation2 + $0x10] sm:$0xff] %vm21, 0.0
    %25 = vst.msk [vmem:[#allocation2 + $0x18] sm:$0xff] %vm21, 0.0
  $region21: #{gpt2_transformer_forward.17} parent=0 // pred_fallthru
    _
  %v26 = vld [vmem:[#allocation2] sm:$0xff]
  %v27 = vld [vmem:[#allocation2 + $0x8] sm:$0xff]
  %v28 = vld [vmem:[#allocation2 + $0x10] sm:$0xff]
  %v29 = vld [vmem:[#allocation2 + $0x18] sm:$0xff]
  %v30 = vld [vmem:[%s0] sm:$0xff]
  %v31 = vld [vmem:[%s0 + $0x8] sm:$0xff]
  %v32 = vld [vmem:[%s0 + $0x10] sm:$0xff]
  %v33 = vld [vmem:[%s0 + $0x18] sm:$0xff]
  %v34 = vpack.c.bf16 %v31, %v30
  %v35 = vpack.c.bf16 %v33, %v32
  %v36 = vld [vmem:[%s1] sm:$0xf]
  %v37 = vld [vmem:[%s1 + $0x4] sm:$0xf]
  %v38 = vld [vmem:[%s1 + $0x8] sm:$0xf]
  %v39 = vld [vmem:[%s1 + $0xc] sm:$0xf]
  %v40 = vld [vmem:[%s1 + $0x10] sm:$0xf]
  %v41 = vld [vmem:[%s1 + $0x14] sm:$0xf]
  %v42 = vld [vmem:[%s1 + $0x18] sm:$0xf]
  %v43 = vld [vmem:[%s1 + $0x1c] sm:$0xf]
  %v44 = vld [vmem:[%s1 + $0x20] sm:$0xf]
  %v45 = vld [vmem:[%s1 + $0x24] sm:$0xf]
  %v46 = vld [vmem:[%s1 + $0x28] sm:$0xf]
  %v47 = vld [vmem:[%s1 + $0x2c] sm:$0xf]
  %v48 = vld [vmem:[%s1 + $0x30] sm:$0xf]
  %v49 = vld [vmem:[%s1 + $0x34] sm:$0xf]
  %v50 = vld [vmem:[%s1 + $0x38] sm:$0xf]
  %v51 = vld [vmem:[%s1 + $0x3c] sm:$0xf]
  %v68 = vunpack.c.l.b16 %v36
  %v69 = vunpack.c.l.b16 %v37
  %v70 = vunpack.c.l.b16 %v38
  %v71 = vunpack.c.l.b16 %v39
  %v72 = vunpack.c.l.b16 %v40
  %v73 = vunpack.c.l.b16 %v41
  %v74 = vunpack.c.l.b16 %v42
  %v75 = vunpack.c.l.b16 %v43
  %v76 = vunpack.c.l.b16 %v44
  %v77 = vunpack.c.l.b16 %v45
  %v78 = vunpack.c.l.b16 %v46
  %v79 = vunpack.c.l.b16 %v47
  %v80 = vunpack.c.l.b16 %v48
  %v81 = vunpack.c.l.b16 %v49
  %v82 = vunpack.c.l.b16 %v50
  %v83 = vunpack.c.l.b16 %v51
  %v84 = vpack.c.b16 %v69, %v68
  %v85 = vpack.c.b16 %v71, %v70
  %v86 = vpack.c.b16 %v73, %v72
  %v87 = vpack.c.b16 %v75, %v74
  %v88 = vpack.c.b16 %v77, %v76
  %v89 = vpack.c.b16 %v79, %v78
  %v90 = vpack.c.b16 %v81, %v80
  %v91 = vpack.c.b16 %v83, %v82
  %100 = vmatpush.bf16.msra.mxu0 %v91
  %101 = vmatpush.bf16.msra.mxu0 %v90
  %102 = vmatpush.bf16.msra.mxu0 %v89
  %103 = vmatpush.bf16.msra.mxu0 %v88
  %104 = vmatpush.bf16.msra.mxu0 %v87
  %105 = vmatpush.bf16.msra.mxu0 %v86
  %106 = vmatpush.bf16.msra.mxu0 %v85
  %107 = vmatpush.bf16.msra.mxu0 %v84
  %108 = vmatmul.bf16.gmra.mxu0 %v34
  %v109 = vpop.f32.mrf.mxu0
  %v110 = vadd.f32 0.0, %v109
  %v111 = vpop.f32.mrf.mxu0
  %v112 = vadd.f32 0.0, %v111
  %113 = vmatmul.bf16.gmra.mxu0 %v35
  %v114 = vpop.f32.mrf.mxu0
  %v115 = vadd.f32 0.0, %v114
  %v116 = vpop.f32.mrf.mxu0
  %v117 = vadd.f32 0.0, %v116
  %118 = vdwg.mxu0
  %v119 = vadd.f32 %v26, %v110
  %v120 = vadd.f32 %v27, %v112
  %v121 = vadd.f32 %v28, %v115
  %v122 = vadd.f32 %v29, %v117
  %vm123 = vcmask 261120
  %124 = vst.msk [vmem:[#allocation2] sm:$0xff] %vm123, %v119
  %125 = vst.msk [vmem:[#allocation2 + $0x8] sm:$0xff] %vm123, %v120
  %126 = vst.msk [vmem:[#allocation2 + $0x10] sm:$0xff] %vm123, %v121
  %127 = vst.msk [vmem:[#allocation2 + $0x18] sm:$0xff] %vm123, %v122
  // Predicated region
  $region22: #{gpt2_transformer_forward.17} parent=0 // pred_check
    %p128 = pneg %p17
  $region23: #{gpt2_transformer_forward.17} parent=0 // pred_check_branch
    %130 = sbr.rel (%p128) target = $region25
  $region24: #{gpt2_transformer_forward.17} parent=0 // pred_region
    %v131 = vld [vmem:[#allocation2] sm:$0xff]
    %v132 = vld [vmem:[#allocation2 + $0x8] sm:$0xff]
    %v133 = vld [vmem:[#allocation2 + $0x10] sm:$0xff]
    %v134 = vld [vmem:[#allocation2 + $0x18] sm:$0xff]
    %v135 = vld [vmem:[%s2] sm:$0x1]
    %v137 = vperm.slane %v135, 0
    %v139 = vadd.f32 %v131, %v137
    %v140 = vadd.f32 %v132, %v137
    %v141 = vadd.f32 %v133, %v137
    %v142 = vadd.f32 %v134, %v137
    %v143 = vld [vmem:[%s3] sm:$0xff]
    %v144 = vld [vmem:[%s3 + $0x8] sm:$0xff]
    %v145 = vld [vmem:[%s3 + $0x10] sm:$0xff]
    %v146 = vld [vmem:[%s3 + $0x18] sm:$0xff]
    %v147 = vadd.f32 %v139, %v143
    %v148 = vadd.f32 %v140, %v144
    %v149 = vadd.f32 %v141, %v145
    %v150 = vadd.f32 %v142, %v146
    %151 = vst.msk [vmem:[%s4] sm:$0xff] %vm123, %v147
    %152 = vst.msk [vmem:[%s4 + $0x8] sm:$0xff] %vm123, %v148
    %153 = vst.msk [vmem:[%s4 + $0x10] sm:$0xff] %vm123, %v149
    %154 = vst.msk [vmem:[%s4 + $0x18] sm:$0xff] %vm123, %v150
  $region25: #{gpt2_transformer_forward.17} parent=0 // pred_fallthru
    _
  // Predicated region
  $region26: #{gpt2_transformer_forward.17} parent=0 // pred_check
    _
  $region27: #{gpt2_transformer_forward.17} parent=0 // pred_check_branch
    %156 = sbr.rel (0) target = $region29
  $region28: #{gpt2_transformer_forward.17} parent=0 // pred_region
    _
  $region29: #{gpt2_transformer_forward.17} parent=0 // pred_fallthru
    _
  // Predicated region
  $region30: #{gpt2_transformer_forward.17} parent=0 // pred_check
    _
  $region31: #{gpt2_transformer_forward.17} parent=0 // pred_check_branch
    %158 = sbr.rel (0) target = $region33
  $region32: #{gpt2_transformer_forward.17} parent=0 // pred_region
    _
  $region33: #{gpt2_transformer_forward.17} parent=0 // pred_fallthru
    _

// kernel: gpt2_transformer_forward.20
$region0: #{gpt2_transformer_forward.20}
  #allocation0 [shape = 'u32[]', space=smem, size = 0x4, offset = 0x4, fixed_abs, tag = 'smem constant byte address 0x4 - core index']
  #allocation1 [shape = 'u32[72,128]{1,0:T(1,128)}', space=vmem, size = 0x9000, scoped, tag = 'internal scratch']
  #allocation2 [shape = 'f32[32,32]{1,0:T(8,128)}', space=vmem, size = 0x4000, scoped, tag = 'scratch operand']
  %s0 = inlined_call_operand.vmem [shape: f32[32,32], index: 0, kind: input, shape index: {}]
  %s1 = inlined_call_operand.vmem [shape: bf16[32,32], index: 1, kind: input, shape index: {}]
  %s2 = inlined_call_operand.vmem [shape: f32[1,32], index: 2, kind: input, shape index: {}]
  %s3 = inlined_call_operand.vmem [shape: f32[32,32], index: 3, kind: input, shape index: {}]
  %s4 = inlined_call_operand.vmem [shape: f32[32,32], index: 4, kind: output, shape index: {}]
  %s5 = sld [smem:[#allocation0]]
  $region34: #{gpt2_transformer_forward.20} parent=0
    _
  %s7 = ssub.s32 1, %s5
  %s8 = scalar_select 0, %s7, %s5
  // Predicated region
  $region2: #{gpt2_transformer_forward.20} parent=0 // pred_check
    _
  $region3: #{gpt2_transformer_forward.20} parent=0 // pred_check_branch
    %10 = sbr.rel (0) target = $region5
  $region4: #{gpt2_transformer_forward.20} parent=0 // pred_region
    _
  $region5: #{gpt2_transformer_forward.20} parent=0 // pred_fallthru
    _
  // Predicated region
  $region6: #{gpt2_transformer_forward.20} parent=0 // pred_check
    _
  $region7: #{gpt2_transformer_forward.20} parent=0 // pred_check_branch
    %12 = sbr.rel (0) target = $region9
  $region8: #{gpt2_transformer_forward.20} parent=0 // pred_region
    _
  $region9: #{gpt2_transformer_forward.20} parent=0 // pred_fallthru
    _
  // Predicated region
  $region10: #{gpt2_transformer_forward.20} parent=0 // pred_check
    _
  $region11: #{gpt2_transformer_forward.20} parent=0 // pred_check_branch
    %14 = sbr.rel (0) target = $region13
  $region12: #{gpt2_transformer_forward.20} parent=0 // pred_region
    _
  $region13: #{gpt2_transformer_forward.20} parent=0 // pred_fallthru
    _
  // Predicated region
  $region14: #{gpt2_transformer_forward.20} parent=0 // pred_check
    _
  $region15: #{gpt2_transformer_forward.20} parent=0 // pred_check_branch
    %16 = sbr.rel (0) target = $region17
  $region16: #{gpt2_transformer_forward.20} parent=0 // pred_region
    _
  $region17: #{gpt2_transformer_forward.20} parent=0 // pred_fallthru
    _
  %p18 = scmp.eq.s32.totalorder 0, 0
  // Predicated region
  $region18: #{gpt2_transformer_forward.20} parent=0 // pred_check
    %p19 = pneg %p18
  $region19: #{gpt2_transformer_forward.20} parent=0 // pred_check_branch
    %21 = sbr.rel (%p19) target = $region21
  $region20: #{gpt2_transformer_forward.20} parent=0 // pred_region
    %vm22 = vcmask 261120
    %23 = vst.msk [vmem:[#allocation2] sm:$0xff] %vm22, 0.0
    %24 = vst.msk [vmem:[#allocation2 + $0x8] sm:$0xff] %vm22, 0.0
    %25 = vst.msk [vmem:[#allocation2 + $0x10] sm:$0xff] %vm22, 0.0
    %26 = vst.msk [vmem:[#allocation2 + $0x18] sm:$0xff] %vm22, 0.0
  $region21: #{gpt2_transformer_forward.20} parent=0 // pred_fallthru
    _
  %v27 = vld [vmem:[#allocation2] sm:$0xff]
  %v28 = vld [vmem:[#allocation2 + $0x8] sm:$0xff]
  %v29 = vld [vmem:[#allocation2 + $0x10] sm:$0xff]
  %v30 = vld [vmem:[#allocation2 + $0x18] sm:$0xff]
  %v31 = vld [vmem:[%s0] sm:$0xff]
  %v32 = vld [vmem:[%s0 + $0x8] sm:$0xff]
  %v33 = vld [vmem:[%s0 + $0x10] sm:$0xff]
  %v34 = vld [vmem:[%s0 + $0x18] sm:$0xff]
  %v35 = vpack.c.bf16 %v32, %v31
  %v36 = vpack.c.bf16 %v34, %v33
  %v37 = vld [vmem:[%s1] sm:$0xf]
  %v38 = vld [vmem:[%s1 + $0x4] sm:$0xf]
  %v39 = vld [vmem:[%s1 + $0x8] sm:$0xf]
  %v40 = vld [vmem:[%s1 + $0xc] sm:$0xf]
  %v45 = vunpack.c.l.b16 %v37
  %v46 = vunpack.c.l.b16 %v38
  %v47 = vunpack.c.l.b16 %v39
  %v48 = vunpack.c.l.b16 %v40
  %v49 = vpack.c.b16 %v46, %v45
  %v50 = vpack.c.b16 %v48, %v47
  %vm53 = vcmask 261120
  %v55 = vsel %vm53, %v35, 0
  %v58 = vsel %vm53, %v36, 0
  %60 = vmatpush.bf16.msra.mxu0 0
  %61 = vmatpush.bf16.msra.mxu0 0
  %62 = vmatpush.bf16.msra.mxu0 0
  %63 = vmatpush.bf16.msra.mxu0 0
  %64 = vmatpush.bf16.msra.mxu0 0
  %65 = vmatpush.bf16.msra.mxu0 0
  %66 = vmatpush.bf16.msra.mxu0 %v50
  %67 = vmatpush.bf16.msra.mxu0 %v49
  %68 = vmatmul.bf16.gmra.mxu0 %v55
  %v69 = vpop.f32.mrf.mxu0
  %v70 = vadd.f32 0.0, %v69
  %v71 = vpop.f32.mrf.mxu0
  %v72 = vadd.f32 0.0, %v71
  %73 = vmatmul.bf16.gmra.mxu0 %v58
  %v74 = vpop.f32.mrf.mxu0
  %v75 = vadd.f32 0.0, %v74
  %v76 = vpop.f32.mrf.mxu0
  %v77 = vadd.f32 0.0, %v76
  %78 = vdwg.mxu0
  %v79 = vadd.f32 %v27, %v70
  %v80 = vadd.f32 %v28, %v72
  %v81 = vadd.f32 %v29, %v75
  %v82 = vadd.f32 %v30, %v77
  %83 = vst.msk [vmem:[#allocation2] sm:$0xff] %vm53, %v79
  %84 = vst.msk [vmem:[#allocation2 + $0x8] sm:$0xff] %vm53, %v80
  %85 = vst.msk [vmem:[#allocation2 + $0x10] sm:$0xff] %vm53, %v81
  %86 = vst.msk [vmem:[#allocation2 + $0x18] sm:$0xff] %vm53, %v82
  // Predicated region
  $region22: #{gpt2_transformer_forward.20} parent=0 // pred_check
    %p87 = pneg %p18
  $region23: #{gpt2_transformer_forward.20} parent=0 // pred_check_branch
    %89 = sbr.rel (%p87) target = $region25
  $region24: #{gpt2_transformer_forward.20} parent=0 // pred_region
    %v90 = vld [vmem:[#allocation2] sm:$0xff]
    %v91 = vld [vmem:[#allocation2 + $0x8] sm:$0xff]
    %v92 = vld [vmem:[#allocation2 + $0x10] sm:$0xff]
    %v93 = vld [vmem:[#allocation2 + $0x18] sm:$0xff]
    %v94 = vld [vmem:[%s2] sm:$0x1]
    %v96 = vperm.slane %v94, 0
    %v98 = vadd.f32 %v90, %v96
    %v99 = vadd.f32 %v91, %v96
    %v100 = vadd.f32 %v92, %v96
    %v101 = vadd.f32 %v93, %v96
    %v102 = vld [vmem:[%s3] sm:$0xff]
    %v103 = vld [vmem:[%s3 + $0x8] sm:$0xff]
    %v104 = vld [vmem:[%s3 + $0x10] sm:$0xff]
    %v105 = vld [vmem:[%s3 + $0x18] sm:$0xff]
    %v106 = vadd.f32 %v98, %v102
    %v107 = vadd.f32 %v99, %v103
    %v108 = vadd.f32 %v100, %v104
    %v109 = vadd.f32 %v101, %v105
    %110 = vst.msk [vmem:[%s4] sm:$0xff] %vm53, %v106
    %111 = vst.msk [vmem:[%s4 + $0x8] sm:$0xff] %vm53, %v107
    %112 = vst.msk [vmem:[%s4 + $0x10] sm:$0xff] %vm53, %v108
    %113 = vst.msk [vmem:[%s4 + $0x18] sm:$0xff] %vm53, %v109
  $region25: #{gpt2_transformer_forward.20} parent=0 // pred_fallthru
    _
  // Predicated region
  $region26: #{gpt2_transformer_forward.20} parent=0 // pred_check
    _
  $region27: #{gpt2_transformer_forward.20} parent=0 // pred_check_branch
    %115 = sbr.rel (0) target = $region29
  $region28: #{gpt2_transformer_forward.20} parent=0 // pred_region
    _
  $region29: #{gpt2_transformer_forward.20} parent=0 // pred_fallthru
    _
  // Predicated region
  $region30: #{gpt2_transformer_forward.20} parent=0 // pred_check
    _
  $region31: #{gpt2_transformer_forward.20} parent=0 // pred_check_branch
    %117 = sbr.rel (0) target = $region33
  $region32: #{gpt2_transformer_forward.20} parent=0 // pred_region
    _
  $region33: #{gpt2_transformer_forward.20} parent=0 // pred_fallthru
    _

// kernel: gpt2_transformer_forward.21
$region0: #{gpt2_transformer_forward.21}
  #allocation0 [shape = 'u32[]', space=smem, size = 0x4, offset = 0x4, fixed_abs, tag = 'smem constant byte address 0x4 - core index']
  #allocation1 [shape = 'u32[72,128]{1,0:T(1,128)}', space=vmem, size = 0x9000, scoped, tag = 'internal scratch']
  #allocation2 [shape = 'bf16[32,32]{1,0:T(8,128)(2,1)}', space=vmem, size = 0x2000, scoped, tag = 'scratch operand']
  %s0 = inlined_call_operand.vmem [shape: f32[32,32], index: 0, kind: input, shape index: {}]
  %s1 = inlined_call_operand.hbm [shape: f32[1,32], index: 1, kind: input, shape index: {}]
  %s2 = inlined_call_operand.hbm [shape: f32[1,32], index: 2, kind: input, shape index: {}]
  %s3 = inlined_call_operand.vmem [shape: bf16[32,128], index: 3, kind: input, shape index: {}]
  %s4 = inlined_call_operand.hbm [shape: f32[1,128], index: 4, kind: input, shape index: {}]
  %s5 = inlined_call_operand.vmem [shape: f32[32,128], index: 5, kind: output, shape index: {}]
  %s6 = sld [smem:[#allocation0]]
  $region46: #{gpt2_transformer_forward.21} parent=0
    _
  %s8 = ssub.s32 1, %s6
  %s9 = scalar_select 0, %s8, %s6
  $region1: #{gpt2_transformer_forward.21} parent=0
    #allocation3 [shape = 'u8[512]{0}', space=vmem, size = 0x400, scoped, tag = 'input window, operand 1, single buffered']
    #allocation4 [shape = 's32[1]{0}', space=sflag, size = 0x4, scoped, tag = 'scoped memory for gpt2_transformer_forward.21']
    #allocation5 [shape = 'u8[512]{0}', space=vmem, size = 0x400, scoped, tag = 'input window, operand 2, single buffered']
    #allocation6 [shape = 's32[1]{0}', space=sflag, size = 0x4, scoped, tag = 'scoped memory for gpt2_transformer_forward.21']
    #allocation7 [shape = 'u8[512]{0}', space=vmem, size = 0x400, scoped, tag = 'input window, operand 4, single buffered']
    %10 = vsyncpa [#allocation4], 0
    %11 = vsyncpa [#allocation6], 0
    // Predicated region
    $region2: #{gpt2_transformer_forward.21} parent=1 // pred_check
      _
    $region3: #{gpt2_transformer_forward.21} parent=1 // pred_check_branch
      %13 = sbr.rel (0) target = $region5
    $region4: #{gpt2_transformer_forward.21} parent=1 // pred_region
      _
    $region5: #{gpt2_transformer_forward.21} parent=1 // pred_fallthru
      _
    // Predicated region
    $region6: #{gpt2_transformer_forward.21} parent=1 // pred_check
      _
    $region7: #{gpt2_transformer_forward.21} parent=1 // pred_check_branch
      %15 = sbr.rel (0) target = $region9
    $region8: #{gpt2_transformer_forward.21} parent=1 // pred_region
      %17 = vsyncadd [#allocation4], 0
      %s19 = sshll.u32 %s1, 4
      %s20 = int_to_ptr.hbm [resolvable:$true] %s19
      %s21 = sshll.u32 [#allocation3], 4
      %s22 = int_to_ptr.vmem [resolvable:$true] %s21
      %24 = dma.hbm_to_vmem [thread:$0]  %s20, 16, %s22, [#allocation4]
    $region9: #{gpt2_transformer_forward.21} parent=1 // pred_fallthru
      _
    // Predicated region
    $region10: #{gpt2_transformer_forward.21} parent=1 // pred_check
      _
    $region11: #{gpt2_transformer_forward.21} parent=1 // pred_check_branch
      %26 = sbr.rel (0) target = $region13
    $region12: #{gpt2_transformer_forward.21} parent=1 // pred_region
      %28 = vsyncadd [#allocation6], 0
      %s30 = sshll.u32 %s2, 4
      %s31 = int_to_ptr.hbm [resolvable:$true] %s30
      %s32 = sshll.u32 [#allocation5], 4
      %s33 = int_to_ptr.vmem [resolvable:$true] %s32
      %35 = dma.hbm_to_vmem [thread:$0]  %s31, 16, %s33, [#allocation6]
    $region13: #{gpt2_transformer_forward.21} parent=1 // pred_fallthru
      _
    // Predicated region
    $region14: #{gpt2_transformer_forward.21} parent=1 // pred_check
      _
    $region15: #{gpt2_transformer_forward.21} parent=1 // pred_check_branch
      %37 = sbr.rel (0) target = $region17
    $region16: #{gpt2_transformer_forward.21} parent=1 // pred_region
      _
    $region17: #{gpt2_transformer_forward.21} parent=1 // pred_fallthru
      _
    // Predicated region
    $region18: #{gpt2_transformer_forward.21} parent=1 // pred_check
      _
    $region19: #{gpt2_transformer_forward.21} parent=1 // pred_check_branch
      %39 = sbr.rel (0) target = $region21
    $region20: #{gpt2_transformer_forward.21} parent=1 // pred_region
      %41 = vsyncadd [#allocation6], 0
      %s43 = sshll.u32 %s4, 4
      %s44 = int_to_ptr.hbm [resolvable:$true] %s43
      %s45 = sshll.u32 [#allocation7], 4
      %s46 = int_to_ptr.vmem [resolvable:$true] %s45
      %48 = dma.hbm_to_vmem [thread:$0]  %s44, 16, %s46, [#allocation6]
    $region21: #{gpt2_transformer_forward.21} parent=1 // pred_fallthru
      _
    // Predicated region
    $region22: #{gpt2_transformer_forward.21} parent=1 // pred_check
      _
    $region23: #{gpt2_transformer_forward.21} parent=1 // pred_check_branch
      %50 = sbr.rel (0) target = $region25
    $region24: #{gpt2_transformer_forward.21} parent=1 // pred_region
      %52 = dma.done [#allocation4], 16
    $region25: #{gpt2_transformer_forward.21} parent=1 // pred_fallthru
      _
    // Predicated region
    $region26: #{gpt2_transformer_forward.21} parent=1 // pred_check
      _
    $region27: #{gpt2_transformer_forward.21} parent=1 // pred_check_branch
      %54 = sbr.rel (0) target = $region29
    $region28: #{gpt2_transformer_forward.21} parent=1 // pred_region
      %56 = dma.done [#allocation6], 16
    $region29: #{gpt2_transformer_forward.21} parent=1 // pred_fallthru
      _
    // Predicated region
    $region30: #{gpt2_transformer_forward.21} parent=1 // pred_check
      _
    $region31: #{gpt2_transformer_forward.21} parent=1 // pred_check_branch
      %58 = sbr.rel (0) target = $region33
    $region32: #{gpt2_transformer_forward.21} parent=1 // pred_region
      %60 = dma.done [#allocation6], 16
    $region33: #{gpt2_transformer_forward.21} parent=1 // pred_fallthru
      _
    %p62 = scmp.eq.s32.totalorder 0, 0
    // Predicated region
    $region34: #{gpt2_transformer_forward.21} parent=1 // pred_check
      %p63 = pneg %p62
    $region35: #{gpt2_transformer_forward.21} parent=1 // pred_check_branch
      %65 = sbr.rel (%p63) target = $region37
    $region36: #{gpt2_transformer_forward.21} parent=1 // pred_region
      %v66 = vld [vmem:[%s0] sm:$0xff]
      %v67 = vld [vmem:[%s0 + $0x8] sm:$0xff]
      %v68 = vld [vmem:[%s0 + $0x10] sm:$0xff]
      %v69 = vld [vmem:[%s0 + $0x18] sm:$0xff]
      %vm70 = vcmask 261120
      %v71 = vsel %vm70, %v66, 0.0
      %72 = vadd.xlane.f32.xlu0 %v71
      %v73 = vpop.xlane.xlu0 %72
      %v74 = vsel %vm70, %v67, 0.0
      %75 = vadd.xlane.f32.xlu0 %v74
      %v76 = vpop.xlane.xlu0 %75
      %v77 = vsel %vm70, %v68, 0.0
      %78 = vadd.xlane.f32.xlu0 %v77
      %v79 = vpop.xlane.xlu0 %78
      %v80 = vsel %vm70, %v69, 0.0
      %81 = vadd.xlane.f32.xlu0 %v80
      %v82 = vpop.xlane.xlu0 %81
      %v83 = vrcp.pop 32.0
      %v84 = vmul.f32 32.0, %v83
      %v85 = vsub.f32 1.0, %v84
      %v86 = vmul.f32 %v83, %v85
      %v87 = vadd.f32 %v83, %v86
      %vm88 = vweird.f32 %v83
      %v89 = vsel %vm88, %v83, %v87
      %v90 = vmul.f32 %v73, %v89
      %v91 = vmul.f32 %v76, %v89
      %v92 = vmul.f32 %v79, %v89
      %v93 = vmul.f32 %v82, %v89
      %v94 = vsub.f32 %v66, %v90
      %v95 = vsub.f32 %v67, %v91
      %v96 = vsub.f32 %v68, %v92
      %v97 = vsub.f32 %v69, %v93
      %v98 = vmul.f32 %v94, %v94
      %v99 = vmul.f32 %v95, %v95
      %v100 = vmul.f32 %v96, %v96
      %v101 = vmul.f32 %v97, %v97
      %v102 = vsel %vm70, %v98, 0.0
      %103 = vadd.xlane.f32.xlu0 %v102
      %v104 = vpop.xlane.xlu0 %103
      %v105 = vsel %vm70, %v99, 0.0
      %106 = vadd.xlane.f32.xlu0 %v105
      %v107 = vpop.xlane.xlu0 %106
      %v108 = vsel %vm70, %v100, 0.0
      %109 = vadd.xlane.f32.xlu0 %v108
      %v110 = vpop.xlane.xlu0 %109
      %v111 = vsel %vm70, %v101, 0.0
      %112 = vadd.xlane.f32.xlu0 %v111
      %v113 = vpop.xlane.xlu0 %112
      %v114 = vmul.f32 %v104, %v89
      %v115 = vmul.f32 %v107, %v89
      %v116 = vmul.f32 %v110, %v89
      %v117 = vmul.f32 %v113, %v89
      %v118 = vadd.f32 %v114, 1e-05
      %v119 = vadd.f32 %v115, 1e-05
      %v120 = vadd.f32 %v116, 1e-05
      %v121 = vadd.f32 %v117, 1e-05
      %v122 = vrsqrt.pop %v118
      %v123 = vmul.f32 %v122, %v118
      %v124 = vmul.f32 %v123, %v122
      %v125 = vmul.f32 0.5, %v124
      %v126 = vsub.f32 1.5, %v125
      %v127 = vmul.f32 %v122, %v126
      %vm128 = vweird.f32 %v118
      %vm129 = vweird.f32 %v122
      %vm130 = vmor %vm128, %vm129
      %v131 = vsel %vm130, %v122, %v127
      %v132 = vrsqrt.pop %v119
      %v133 = vmul.f32 %v132, %v119
      %v134 = vmul.f32 %v133, %v132
      %v135 = vmul.f32 0.5, %v134
      %v136 = vsub.f32 1.5, %v135
      %v137 = vmul.f32 %v132, %v136
      %vm138 = vweird.f32 %v119
      %vm139 = vweird.f32 %v132
      %vm140 = vmor %vm138, %vm139
      %v141 = vsel %vm140, %v132, %v137
      %v142 = vrsqrt.pop %v120
      %v143 = vmul.f32 %v142, %v120
      %v144 = vmul.f32 %v143, %v142
      %v145 = vmul.f32 0.5, %v144
      %v146 = vsub.f32 1.5, %v145
      %v147 = vmul.f32 %v142, %v146
      %vm148 = vweird.f32 %v120
      %vm149 = vweird.f32 %v142
      %vm150 = vmor %vm148, %vm149
      %v151 = vsel %vm150, %v142, %v147
      %v152 = vrsqrt.pop %v121
      %v153 = vmul.f32 %v152, %v121
      %v154 = vmul.f32 %v153, %v152
      %v155 = vmul.f32 0.5, %v154
      %v156 = vsub.f32 1.5, %v155
      %v157 = vmul.f32 %v152, %v156
      %vm158 = vweird.f32 %v121
      %vm159 = vweird.f32 %v152
      %vm160 = vmor %vm158, %vm159
      %v161 = vsel %vm160, %v152, %v157
      %v162 = vmul.f32 %v94, %v131
      %v163 = vmul.f32 %v95, %v141
      %v164 = vmul.f32 %v96, %v151
      %v165 = vmul.f32 %v97, %v161
      %v166 = vld [vmem:[#allocation3] sm:$0x1]
      %v168 = vperm.slane %v166, 0
      %v170 = vmul.f32 %v162, %v168
      %v171 = vmul.f32 %v163, %v168
      %v172 = vmul.f32 %v164, %v168
      %v173 = vmul.f32 %v165, %v168
      %v174 = vld [vmem:[#allocation5] sm:$0x1]
      %v176 = vperm.slane %v174, 0
      %v178 = vadd.f32 %v170, %v176
      %v179 = vadd.f32 %v171, %v176
      %v180 = vadd.f32 %v172, %v176
      %v181 = vadd.f32 %v173, %v176
      %v182 = vpack.c.bf16 %v178, %v178
      %v183 = vpack.c.bf16 %v179, %v179
      %v184 = vpack.c.bf16 %v180, %v180
      %v185 = vpack.c.bf16 %v181, %v181
      %vm186 = vcmask 257024
      %187 = vst.msk [vmem:[#allocation2] sm:$0xf] %vm186, %v182
      %188 = vst.msk [vmem:[#allocation2 + $0x4] sm:$0xf] %vm186, %v183
      %189 = vst.msk [vmem:[#allocation2 + $0x8] sm:$0xf] %vm186, %v184
      %190 = vst.msk [vmem:[#allocation2 + $0xc] sm:$0xf] %vm186, %v185
    $region37: #{gpt2_transformer_forward.21} parent=1 // pred_fallthru
      _
    %v191 = vld [vmem:[#allocation2] sm:$0xf]
    %v192 = vld [vmem:[#allocation2 + $0x4] sm:$0xf]
    %v193 = vld [vmem:[#allocation2 + $0x8] sm:$0xf]
    %v194 = vld [vmem:[#allocation2 + $0xc] sm:$0xf]
    %v195 = vld [vmem:[%s3] sm:$0xf]
    %v196 = vld [vmem:[%s3 + $0x4] sm:$0xf]
    %v197 = vld [vmem:[%s3 + $0x8] sm:$0xf]
    %v198 = vld [vmem:[%s3 + $0xc] sm:$0xf]
    %v199 = vld [vmem:[#allocation7] sm:$0x1]
    %v201 = vperm.slane %v199, 0
    %v207 = vunpack.c.l.b16 %v191
    %v208 = vunpack.c.l.b16 %v192
    %v209 = vunpack.c.l.b16 %v193
    %v210 = vunpack.c.l.b16 %v194
    %v211 = vpack.c.b16 %v208, %v207
    %v212 = vpack.c.b16 %v210, %v209
    %v217 = vunpack.c.l.b16 %v195
    %v218 = vunpack.c.l.b16 %v196
    %v219 = vunpack.c.l.b16 %v197
    %v220 = vunpack.c.l.b16 %v198
    %v221 = vpack.c.b16 %v218, %v217
    %v222 = vpack.c.b16 %v220, %v219
    %vm225 = vcmask 261120
    %v227 = vsel %vm225, %v211, 0
    %v230 = vsel %vm225, %v212, 0
    %232 = vmatpush.bf16.msra.mxu0 0
    %233 = vmatpush.bf16.msra.mxu0 0
    %234 = vmatpush.bf16.msra.mxu0 0
    %235 = vmatpush.bf16.msra.mxu0 0
    %236 = vmatpush.bf16.msra.mxu0 0
    %237 = vmatpush.bf16.msra.mxu0 0
    %238 = vmatpush.bf16.msra.mxu0 %v222
    %239 = vmatpush.bf16.msra.mxu0 %v221
    %240 = vmatmul.bf16.gmra.mxu0 %v227
    %v241 = vpop.f32.mrf.mxu0
    %v242 = vadd.f32 %v201, %v241
    %v243 = vpop.f32.mrf.mxu0
    %v244 = vadd.f32 %v201, %v243
    %245 = vmatmul.bf16.gmra.mxu0 %v230
    %v246 = vpop.f32.mrf.mxu0
    %v247 = vadd.f32 %v201, %v246
    %v248 = vpop.f32.mrf.mxu0
    %v249 = vadd.f32 %v201, %v248
    %250 = vdwg.mxu0
    %v251 = vmul.f32 %v242, 0.5
    %v252 = vmul.f32 %v244, 0.5
    %v253 = vmul.f32 %v247, 0.5
    %v254 = vmul.f32 %v249, 0.5
    %v255 = vmul.f32 %v242, 0.044715
    %v256 = vmul.f32 %v244, 0.044715
    %v257 = vmul.f32 %v247, 0.044715
    %v258 = vmul.f32 %v249, 0.044715
    %v259 = vmul.f32 %v255, %v242
    %v260 = vmul.f32 %v256, %v244
    %v261 = vmul.f32 %v257, %v247
    %v262 = vmul.f32 %v258, %v249
    %v263 = vmul.f32 %v259, %v242
    %v264 = vmul.f32 %v260, %v244
    %v265 = vmul.f32 %v261, %v247
    %v266 = vmul.f32 %v262, %v249
    %v267 = vadd.f32 %v242, %v263
    %v268 = vadd.f32 %v244, %v264
    %v269 = vadd.f32 %v247, %v265
    %v270 = vadd.f32 %v249, %v266
    %v271 = vmul.f32 %v267, 0.7978846
    %v272 = vmul.f32 %v268, 0.7978846
    %v273 = vmul.f32 %v269, 0.7978846
    %v274 = vmul.f32 %v270, 0.7978846
    %v275 = vtanh.pop %v271
    %v276 = vtanh.pop %v272
    %v277 = vtanh.pop %v273
    %v278 = vtanh.pop %v274
    %v279 = vadd.f32 %v275, 1.0
    %v280 = vadd.f32 %v276, 1.0
    %v281 = vadd.f32 %v277, 1.0
    %v282 = vadd.f32 %v278, 1.0
    %v283 = vmul.f32 %v251, %v279
    %v284 = vmul.f32 %v252, %v280
    %v285 = vmul.f32 %v253, %v281
    %v286 = vmul.f32 %v254, %v282
    %287 = vst [vmem:[%s5] sm:$0xff] %v283
    %288 = vst [vmem:[%s5 + $0x8] sm:$0xff] %v284
    %289 = vst [vmem:[%s5 + $0x10] sm:$0xff] %v285
    %290 = vst [vmem:[%s5 + $0x18] sm:$0xff] %v286
    // Predicated region
    $region38: #{gpt2_transformer_forward.21} parent=1 // pred_check
      _
    $region39: #{gpt2_transformer_forward.21} parent=1 // pred_check_branch
      %292 = sbr.rel (0) target = $region41
    $region40: #{gpt2_transformer_forward.21} parent=1 // pred_region
      _
    $region41: #{gpt2_transformer_forward.21} parent=1 // pred_fallthru
      _
    // Predicated region
    $region42: #{gpt2_transformer_forward.21} parent=1 // pred_check
      _
    $region43: #{gpt2_transformer_forward.21} parent=1 // pred_check_branch
      %294 = sbr.rel (0) target = $region45
    $region44: #{gpt2_transformer_forward.21} parent=1 // pred_region
      _
    $region45: #{gpt2_transformer_forward.21} parent=1 // pred_fallthru
      _
    %295 = vsyncpa [#allocation4], 1
    %296 = vsyncpa [#allocation6], 1

// kernel: gpt2_transformer_forward.23
$region0: #{gpt2_transformer_forward.23}
  #allocation0 [shape = 'u32[]', space=smem, size = 0x4, offset = 0x4, fixed_abs, tag = 'smem constant byte address 0x4 - core index']
  #allocation1 [shape = 'u32[72,128]{1,0:T(1,128)}', space=vmem, size = 0x9000, scoped, tag = 'internal scratch']
  #allocation2 [shape = 'bf16[32,32]{1,0:T(8,128)(2,1)}', space=vmem, size = 0x2000, scoped, tag = 'scratch operand']
  %s0 = inlined_call_operand.vmem [shape: f32[32,32], index: 0, kind: input, shape index: {}]
  %s1 = inlined_call_operand.vmem [shape: f32[1,32], index: 1, kind: input, shape index: {}]
  %s2 = inlined_call_operand.vmem [shape: f32[1,32], index: 2, kind: input, shape index: {}]
  %s3 = inlined_call_operand.vmem [shape: bf16[32,4], index: 3, kind: input, shape index: {}]
  %s4 = inlined_call_operand.vmem [shape: f32[1,4], index: 4, kind: input, shape index: {}]
  %s5 = inlined_call_operand.vmem [shape: f32[32,4], index: 5, kind: output, shape index: {}]
  %s6 = sld [smem:[#allocation0]]
  $region34: #{gpt2_transformer_forward.23} parent=0
    _
  %s8 = ssub.s32 1, %s6
  %s9 = scalar_select 0, %s8, %s6
  // Predicated region
  $region2: #{gpt2_transformer_forward.23} parent=0 // pred_check
    _
  $region3: #{gpt2_transformer_forward.23} parent=0 // pred_check_branch
    %11 = sbr.rel (0) target = $region5
  $region4: #{gpt2_transformer_forward.23} parent=0 // pred_region
    _
  $region5: #{gpt2_transformer_forward.23} parent=0 // pred_fallthru
    _
  // Predicated region
  $region6: #{gpt2_transformer_forward.23} parent=0 // pred_check
    _
  $region7: #{gpt2_transformer_forward.23} parent=0 // pred_check_branch
    %13 = sbr.rel (0) target = $region9
  $region8: #{gpt2_transformer_forward.23} parent=0 // pred_region
    _
  $region9: #{gpt2_transformer_forward.23} parent=0 // pred_fallthru
    _
  // Predicated region
  $region10: #{gpt2_transformer_forward.23} parent=0 // pred_check
    _
  $region11: #{gpt2_transformer_forward.23} parent=0 // pred_check_branch
    %15 = sbr.rel (0) target = $region13
  $region12: #{gpt2_transformer_forward.23} parent=0 // pred_region
    _
  $region13: #{gpt2_transformer_forward.23} parent=0 // pred_fallthru
    _
  // Predicated region
  $region14: #{gpt2_transformer_forward.23} parent=0 // pred_check
    _
  $region15: #{gpt2_transformer_forward.23} parent=0 // pred_check_branch
    %17 = sbr.rel (0) target = $region17
  $region16: #{gpt2_transformer_forward.23} parent=0 // pred_region
    _
  $region17: #{gpt2_transformer_forward.23} parent=0 // pred_fallthru
    _
  // Predicated region
  $region18: #{gpt2_transformer_forward.23} parent=0 // pred_check
    _
  $region19: #{gpt2_transformer_forward.23} parent=0 // pred_check_branch
    %19 = sbr.rel (0) target = $region21
  $region20: #{gpt2_transformer_forward.23} parent=0 // pred_region
    _
  $region21: #{gpt2_transformer_forward.23} parent=0 // pred_fallthru
    _
  %p21 = scmp.eq.s32.totalorder 0, 0
  // Predicated region
  $region22: #{gpt2_transformer_forward.23} parent=0 // pred_check
    %p22 = pneg %p21
  $region23: #{gpt2_transformer_forward.23} parent=0 // pred_check_branch
    %24 = sbr.rel (%p22) target = $region25
  $region24: #{gpt2_transformer_forward.23} parent=0 // pred_region
    %v25 = vld [vmem:[%s0] sm:$0xff]
    %v26 = vld [vmem:[%s0 + $0x8] sm:$0xff]
    %v27 = vld [vmem:[%s0 + $0x10] sm:$0xff]
    %v28 = vld [vmem:[%s0 + $0x18] sm:$0xff]
    %vm29 = vcmask 261120
    %v30 = vsel %vm29, %v25, 0.0
    %31 = vadd.xlane.f32.xlu0 %v30
    %v32 = vpop.xlane.xlu0 %31
    %v33 = vsel %vm29, %v26, 0.0
    %34 = vadd.xlane.f32.xlu0 %v33
    %v35 = vpop.xlane.xlu0 %34
    %v36 = vsel %vm29, %v27, 0.0
    %37 = vadd.xlane.f32.xlu0 %v36
    %v38 = vpop.xlane.xlu0 %37
    %v39 = vsel %vm29, %v28, 0.0
    %40 = vadd.xlane.f32.xlu0 %v39
    %v41 = vpop.xlane.xlu0 %40
    %v42 = vrcp.pop 32.0
    %v43 = vmul.f32 32.0, %v42
    %v44 = vsub.f32 1.0, %v43
    %v45 = vmul.f32 %v42, %v44
    %v46 = vadd.f32 %v42, %v45
    %vm47 = vweird.f32 %v42
    %v48 = vsel %vm47, %v42, %v46
    %v49 = vmul.f32 %v32, %v48
    %v50 = vmul.f32 %v35, %v48
    %v51 = vmul.f32 %v38, %v48
    %v52 = vmul.f32 %v41, %v48
    %v53 = vsub.f32 %v25, %v49
    %v54 = vsub.f32 %v26, %v50
    %v55 = vsub.f32 %v27, %v51
    %v56 = vsub.f32 %v28, %v52
    %v57 = vmul.f32 %v53, %v53
    %v58 = vmul.f32 %v54, %v54
    %v59 = vmul.f32 %v55, %v55
    %v60 = vmul.f32 %v56, %v56
    %v61 = vsel %vm29, %v57, 0.0
    %62 = vadd.xlane.f32.xlu0 %v61
    %v63 = vpop.xlane.xlu0 %62
    %v64 = vsel %vm29, %v58, 0.0
    %65 = vadd.xlane.f32.xlu0 %v64
    %v66 = vpop.xlane.xlu0 %65
    %v67 = vsel %vm29, %v59, 0.0
    %68 = vadd.xlane.f32.xlu0 %v67
    %v69 = vpop.xlane.xlu0 %68
    %v70 = vsel %vm29, %v60, 0.0
    %71 = vadd.xlane.f32.xlu0 %v70
    %v72 = vpop.xlane.xlu0 %71
    %v73 = vmul.f32 %v63, %v48
    %v74 = vmul.f32 %v66, %v48
    %v75 = vmul.f32 %v69, %v48
    %v76 = vmul.f32 %v72, %v48
    %v77 = vadd.f32 %v73, 1e-05
    %v78 = vadd.f32 %v74, 1e-05
    %v79 = vadd.f32 %v75, 1e-05
    %v80 = vadd.f32 %v76, 1e-05
    %v81 = vrsqrt.pop %v77
    %v82 = vmul.f32 %v81, %v77
    %v83 = vmul.f32 %v82, %v81
    %v84 = vmul.f32 0.5, %v83
    %v85 = vsub.f32 1.5, %v84
    %v86 = vmul.f32 %v81, %v85
    %vm87 = vweird.f32 %v77
    %vm88 = vweird.f32 %v81
    %vm89 = vmor %vm87, %vm88
    %v90 = vsel %vm89, %v81, %v86
    %v91 = vrsqrt.pop %v78
    %v92 = vmul.f32 %v91, %v78
    %v93 = vmul.f32 %v92, %v91
    %v94 = vmul.f32 0.5, %v93
    %v95 = vsub.f32 1.5, %v94
    %v96 = vmul.f32 %v91, %v95
    %vm97 = vweird.f32 %v78
    %vm98 = vweird.f32 %v91
    %vm99 = vmor %vm97, %vm98
    %v100 = vsel %vm99, %v91, %v96
    %v101 = vrsqrt.pop %v79
    %v102 = vmul.f32 %v101, %v79
    %v103 = vmul.f32 %v102, %v101
    %v104 = vmul.f32 0.5, %v103
    %v105 = vsub.f32 1.5, %v104
    %v106 = vmul.f32 %v101, %v105
    %vm107 = vweird.f32 %v79
    %vm108 = vweird.f32 %v101
    %vm109 = vmor %vm107, %vm108
    %v110 = vsel %vm109, %v101, %v106
    %v111 = vrsqrt.pop %v80
    %v112 = vmul.f32 %v111, %v80
    %v113 = vmul.f32 %v112, %v111
    %v114 = vmul.f32 0.5, %v113
    %v115 = vsub.f32 1.5, %v114
    %v116 = vmul.f32 %v111, %v115
    %vm117 = vweird.f32 %v80
    %vm118 = vweird.f32 %v111
    %vm119 = vmor %vm117, %vm118
    %v120 = vsel %vm119, %v111, %v116
    %v121 = vmul.f32 %v53, %v90
    %v122 = vmul.f32 %v54, %v100
    %v123 = vmul.f32 %v55, %v110
    %v124 = vmul.f32 %v56, %v120
    %v125 = vld [vmem:[%s1] sm:$0x1]
    %v127 = vperm.slane %v125, 0
    %v129 = vmul.f32 %v121, %v127
    %v130 = vmul.f32 %v122, %v127
    %v131 = vmul.f32 %v123, %v127
    %v132 = vmul.f32 %v124, %v127
    %v133 = vld [vmem:[%s2] sm:$0x1]
    %v135 = vperm.slane %v133, 0
    %v137 = vadd.f32 %v129, %v135
    %v138 = vadd.f32 %v130, %v135
    %v139 = vadd.f32 %v131, %v135
    %v140 = vadd.f32 %v132, %v135
    %v141 = vpack.c.bf16 %v137, %v137
    %v142 = vpack.c.bf16 %v138, %v138
    %v143 = vpack.c.bf16 %v139, %v139
    %v144 = vpack.c.bf16 %v140, %v140
    %vm145 = vcmask 257024
    %146 = vst.msk [vmem:[#allocation2] sm:$0xf] %vm145, %v141
    %147 = vst.msk [vmem:[#allocation2 + $0x4] sm:$0xf] %vm145, %v142
    %148 = vst.msk [vmem:[#allocation2 + $0x8] sm:$0xf] %vm145, %v143
    %149 = vst.msk [vmem:[#allocation2 + $0xc] sm:$0xf] %vm145, %v144
  $region25: #{gpt2_transformer_forward.23} parent=0 // pred_fallthru
    _
  %v150 = vld [vmem:[#allocation2] sm:$0xf]
  %v151 = vld [vmem:[#allocation2 + $0x4] sm:$0xf]
  %v152 = vld [vmem:[#allocation2 + $0x8] sm:$0xf]
  %v153 = vld [vmem:[#allocation2 + $0xc] sm:$0xf]
  %v154 = vld [vmem:[%s3] sm:$0xf]
  %v155 = vld [vmem:[%s3 + $0x4] sm:$0xf]
  %v156 = vld [vmem:[%s3 + $0x8] sm:$0xf]
  %v157 = vld [vmem:[%s3 + $0xc] sm:$0xf]
  %v158 = vld [vmem:[%s4] sm:$0x1]
  %v160 = vperm.slane %v158, 0
  %v166 = vunpack.c.l.b16 %v150
  %v167 = vunpack.c.l.b16 %v151
  %v168 = vunpack.c.l.b16 %v152
  %v169 = vunpack.c.l.b16 %v153
  %v170 = vpack.c.b16 %v167, %v166
  %v171 = vpack.c.b16 %v169, %v168
  %v176 = vunpack.c.l.b16 %v154
  %v177 = vunpack.c.l.b16 %v155
  %v178 = vunpack.c.l.b16 %v156
  %v179 = vunpack.c.l.b16 %v157
  %v180 = vpack.c.b16 %v177, %v176
  %v181 = vpack.c.b16 %v179, %v178
  %vm184 = vcmask 261120
  %v186 = vsel %vm184, %v170, 0
  %v189 = vsel %vm184, %v171, 0
  %191 = vmatpush.bf16.msra.mxu0 0
  %192 = vmatpush.bf16.msra.mxu0 0
  %193 = vmatpush.bf16.msra.mxu0 0
  %194 = vmatpush.bf16.msra.mxu0 0
  %195 = vmatpush.bf16.msra.mxu0 0
  %196 = vmatpush.bf16.msra.mxu0 0
  %197 = vmatpush.bf16.msra.mxu0 %v181
  %198 = vmatpush.bf16.msra.mxu0 %v180
  %199 = vmatmul.bf16.gmra.mxu0 %v186
  %v200 = vpop.f32.mrf.mxu0
  %v201 = vadd.f32 %v160, %v200
  %v202 = vpop.f32.mrf.mxu0
  %v203 = vadd.f32 %v160, %v202
  %204 = vmatmul.bf16.gmra.mxu0 %v189
  %v205 = vpop.f32.mrf.mxu0
  %v206 = vadd.f32 %v160, %v205
  %v207 = vpop.f32.mrf.mxu0
  %v208 = vadd.f32 %v160, %v207
  %209 = vdwg.mxu0
  %vm210 = vcmask 31744
  %211 = vst.msk [vmem:[%s5] sm:$0xff] %vm210, %v201
  %212 = vst.msk [vmem:[%s5 + $0x8] sm:$0xff] %vm210, %v203
  %213 = vst.msk [vmem:[%s5 + $0x10] sm:$0xff] %vm210, %v206
  %214 = vst.msk [vmem:[%s5 + $0x18] sm:$0xff] %vm210, %v208
  // Predicated region
  $region26: #{gpt2_transformer_forward.23} parent=0 // pred_check
    _
  $region27: #{gpt2_transformer_forward.23} parent=0 // pred_check_branch
    %216 = sbr.rel (0) target = $region29
  $region28: #{gpt2_transformer_forward.23} parent=0 // pred_region
    _
  $region29: #{gpt2_transformer_forward.23} parent=0 // pred_fallthru
    _
  // Predicated region
  $region30: #{gpt2_transformer_forward.23} parent=0 // pred_check
    _
  $region31: #{gpt2_transformer_forward.23} parent=0 // pred_check_branch
    %218 = sbr.rel (0) target = $region33
  $region32: #{gpt2_transformer_forward.23} parent=0 // pred_region
    _
  $region33: #{gpt2_transformer_forward.23} parent=0 // pred_fallthru
    _

</llo_original>
